<compile_context>
chip_gen: v7x
topology: tpu7x:2x2x1
jax: 0.10.0
libtpu: 0.0.40
codegen_flags: <defaults>
</compile_context>

<pallas_src>
import numpy as np
import jax
import jax.numpy as jnp
from jax.experimental import pallas as pl
from jax.experimental.pallas import tpu as pltpu

NDF = 16
IN_CHANNEL = 2
EPS = 1e-5          # PyTorch InstanceNorm2d default eps
PRELU_INIT = 0.25   # PyTorch PReLU default
LANES = 256         # conv-output lane width at every layer (wout*cout)


def _round_up(x, m):
    return (x + m - 1) // m * m


# ---------------------------------------------------------------------------
# Fused Pallas kernel (entire forward pass, single grid step, batch-fused)
# ---------------------------------------------------------------------------
def _make_kernel(B, H, W, offs):
    cins = [IN_CHANNEL, NDF, 2 * NDF, 4 * NDF]
    couts = [NDF, 2 * NDF, 4 * NDF, 8 * NDF]
    hins = [H, H // 2, H // 4, H // 8]
    wins = [W, W // 2, W // 4, W // 8]

    def kernel(plane0_ref, wslab_ref, vslab_ref, o_ref, p1, p2, p3):
        planes = [plane0_ref, p1, p2, p3]

        # Zero only the tail padding rows of the scratch planes (the single row the
        # shifted kh{2,3} slice reads; everything else is fully rewritten below).
        for l in range(1, 4):
            nrows_l = B * (hins[l] // 2 + 1)
            pref = planes[l]
            pad = pref.shape[0] - nrows_l
            pref[nrows_l:, :] = jnp.zeros((pad, pref.shape[1]), pref.dtype)

        for l in range(4):
            cout = couts[l]
            hin, win = hins[l], wins[l]
            hout, wout = hin // 2, win // 2
            K = 2 * win * cins[l]
            block = hout + 1
            nrows = B * block

            # ---- conv: 2 kernel-row-pair matmuls (bf16 MXU, f32 accumulation) ------
            pref = planes[l]
            xA = pref[0:nrows, :].astype(jnp.bfloat16)          # rows j   -> kh 0/1
            xB = pref[1:1 + nrows, :].astype(jnp.bfloat16)      # rows j+1 -> kh 2/3
            m_off = offs[f"M{l}"]
            mA = wslab_ref[m_off:m_off + K, :]
            mB = wslab_ref[m_off + K:m_off + 2 * K, :]
            acc = (jnp.dot(xA, mA, preferred_element_type=jnp.float32)
                   + jnp.dot(xB, mB, preferred_element_type=jnp.float32))  # (nrows, 256)

            # ---- InstanceNorm2d (per sample, per channel) + PReLU, batch-fused -----
            inv_n = 1.0 / float(hout * wout)
            parts, stat_rows = [], []
            for b in range(B):
                yb = acc[b * block: b * block + hout, :]        # valid rows only
                parts.append(yb)
                stat_rows.append(jnp.sum(yb, axis=0, keepdims=True))
                stat_rows.append(jnp.sum(yb * yb, axis=0, keepdims=True))
            stats = jnp.concatenate(stat_rows, axis=0)          # (2B, 256) f32
            # Per-channel reduce over the wout lane-groups via an XLU roll tree; the
            # result is replicated across groups, i.e. already broadcast-ready.
            sh = LANES // 2
            while sh >= cout:
                stats = stats + pltpu.roll(stats, sh, axis=1)
                sh //= 2
            stats = stats * inv_n
            yn_parts = []
            for b in range(B):
                mean = stats[2 * b:2 * b + 1, :]
                # TODO(synk): one-pass variance (E[x^2]-mean^2, clamped) — not the
                # two-pass formula PyTorch uses; fine at these magnitudes.
                var = jnp.maximum(stats[2 * b + 1:2 * b + 2, :] - mean * mean, 0.0)
                yn_parts.append((parts[b] - mean) * jax.lax.rsqrt(var + EPS))
            yn = jnp.concatenate(yn_parts, axis=0)              # (B*hout, 256)
            a_off = offs["A"] + 8 * l
            gamma = vslab_ref[a_off:a_off + 1, :]
            beta = vslab_ref[a_off + 1:a_off + 2, :]
            alpha = vslab_ref[a_off + 2:a_off + 3, :]
            ya = yn * gamma + beta
            yact = jnp.where(ya >= 0.0, ya, alpha * ya)         # PReLU, (B*hout, 256)

            if l < 3:
                # ---- epilogue: ONE 0/1 selection matmul produces both lane-halves
                #      of the next layer's concat plane for both samples ------------
                rt = B * (hout // 2 + 1)                        # valid next-plane rows
                pad_rt = _round_up(rt, 8)
                ncols = B * hout
                s_off = offs[f"S{l}"]
                sel = wslab_ref[s_off:s_off + 2 * pad_rt, 0:ncols]      # bf16 0/1
                nxt = jnp.dot(sel, yact.astype(jnp.bfloat16),
                              preferred_element_type=jnp.float32)       # (2*pad_rt, 256)
                nref = planes[l + 1]
                nref[0:rt, 0:LANES] = nxt[0:rt, :]                       # rows 2j-1
                nref[0:rt, LANES:2 * LANES] = nxt[pad_rt:pad_rt + rt, :]  # rows 2j
            else:
                # ---- head: AdaptiveMaxPool2d(1) -> Linear -> (Dropout=id) -> PReLU
                #            -> Linear -> LearnableSigmoid(beta=1), batched ----------
                fm_rows = []
                for b in range(B):
                    m = jnp.max(yact[b * hout:(b + 1) * hout, :], axis=0, keepdims=True)
                    fmb = m[:, 0:cout]
                    for j in range(1, wout):
                        fmb = jnp.maximum(fmb, m[:, j * cout:(j + 1) * cout])
                    fm_rows.append(fmb)
                fm = jnp.concatenate(fm_rows, axis=0)           # (B, 8*ndf)
                w1_off = offs["W1"]
                w1 = wslab_ref[w1_off:w1_off + 8 * NDF, 0:4 * NDF]
                hv = offs["HV"]
                b1 = vslab_ref[hv:hv + 1, 0:4 * NDF]
                al1 = vslab_ref[hv + 1:hv + 2, 0:4 * NDF]
                w2 = vslab_ref[hv + 2:hv + 3, 0:4 * NDF]
                b2 = vslab_ref[hv + 3:hv + 4, 0:1]
                slope = vslab_ref[hv + 3:hv + 4, 1:2]
                h = jnp.dot(fm.astype(jnp.bfloat16), w1,
                            preferred_element_type=jnp.float32) + b1
                # TODO(synk): nn.Dropout(0.3) is eval-mode identity here (no RNG mask).
                h = jnp.where(h >= 0.0, h, al1 * h)             # PReLU
                z = jnp.sum(h * w2, axis=1, keepdims=True) + b2  # Linear(4*ndf -> 1)
                o_ref[...] = 1.0 / (1.0 + jnp.exp(-(slope * z)))  # beta=1 * sigmoid(slope*z)

    return kernel


# ---------------------------------------------------------------------------
# Host-side glue: concat-plane input prep, banded conv weights, packed slabs
# ---------------------------------------------------------------------------
def _prep_input(x, y):
    """x, y: (B, 1, H, W) -> f32 concat plane: per-sample blocks of H//2+1 rows where
    row j = [input row 2j-1 | input row 2j] (NHWC rows flattened, channel fastest)."""
    B, _, H, W = x.shape
    xy = jnp.concatenate([x, y], axis=1)                               # (B, 2, H, W)
    a = jnp.transpose(xy, (0, 2, 3, 1)).reshape(B, H, W * IN_CHANNEL)  # rows flat
    hout = H // 2
    block = hout + 1
    lanes = W * IN_CHANNEL
    plane = jnp.zeros((B, block, 2 * lanes), jnp.float32)
    plane = plane.at[:, 1:, :lanes].set(a[:, 1::2, :])    # left half: rows 1,3,...
    plane = plane.at[:, :hout, lanes:].set(a[:, 0::2, :])  # right half: rows 0,2,...
    plane = plane.reshape(B * block, 2 * lanes)
    total = _round_up(B * block + 1, 8)
    return jnp.pad(plane, ((0, total - B * block), (0, 0)))


def _spectral_normalize(w_mat):
    """Fold spectral norm: divide by the exact largest singular value.
    (PyTorch uses one power iteration with persistent u/v; values differ slightly.)"""
    sigma = jnp.linalg.svd(w_mat, compute_uv=False)[0]
    return w_mat / sigma


def _paired_banded(w, win):
    """w: (cout, cin, 4, 4) -> (2, 2*win*cin, (win//2)*cout).
    Pair p handles kernel rows kh=2p (left lane-half of the concat plane) and kh=2p+1
    (right half); the band absorbs the stride-2 / pad-1 window selection along W."""
    cout, cin = w.shape[0], w.shape[1]
    wout = win // 2
    m = np.zeros((2, 2 * win * cin, wout * cout), np.float32)
    for p in range(2):
        for half in range(2):
            kh = 2 * p + half
            base = half * win * cin
            for j in range(wout):
                for kw in range(4):
                    col = 2 * j + kw - 1           # interior (unpadded) input column
                    if 0 <= col < win:
                        m[p, base + col * cin: base + (col + 1) * cin,
                             j * cout:(j + 1) * cout] = w[:, :, kh, kw].T
    return m


def init_params(key, B=2, H=32, W=32):
    keys = jax.random.split(key, 8)
    cins = [IN_CHANNEL, NDF, 2 * NDF, 4 * NDF]
    couts = [NDF, 2 * NDF, 4 * NDF, 8 * NDF]
    wins = [W, W // 2, W // 4, W // 8]
    hins = [H, H // 2, H // 4, H // 8]

    offs, blocks = {}, []
    cur = 0

    def add(name, arr):
        nonlocal cur
        r, c = arr.shape
        pad_r = _round_up(r, 8)
        buf = np.zeros((pad_r, LANES), np.float32)
        buf[:r, :c] = arr
        offs[name] = cur
        blocks.append(buf)
        cur += pad_r

    # Conv weights (spectral norm folded) -> paired banded matrices.
    for l, (cin, cout, win) in enumerate(zip(cins, couts, wins)):
        w = jax.random.normal(keys[l], (cout, cin, 4, 4), jnp.float32) * 0.1
        w = _spectral_normalize(w.reshape(cout, -1)).reshape(cout, cin, 4, 4)
        m = _paired_banded(np.asarray(w, np.float32), win)
        add(f"M{l}", m.reshape(-1, m.shape[-1]))

    # Head Linear(8*ndf -> 4*ndf), stored transposed as the matmul RHS (128, 64).
    w1 = _spectral_normalize(
        jax.random.normal(keys[4], (4 * NDF, 8 * NDF), jnp.float32) * 0.1)
    add("W1", np.asarray(w1, np.float32).T)

    # 0/1 selection matrices for the row-phase-split epilogues of layers 0..2
    # (padding rows are all-zero rows, so the next plane gets exact zeros there).
    for l in range(3):
        hout = hins[l] // 2
        block_next = hout // 2 + 1
        rt = B * block_next
        pad_rt = _round_up(rt, 8)
        sel = np.zeros((2 * pad_rt, B * hout), np.float32)
        for b in range(B):
            for j in range(block_next):
                r = b * block_next + j
                if 1 <= 2 * j - 1 < hout:
                    sel[r, b * hout + 2 * j - 1] = 1.0          # left half: row 2j-1
                if 2 * j < hout:
                    sel[pad_rt + r, b * hout + 2 * j] = 1.0     # right half: row 2j
        add(f"S{l}", sel)

    wslab = jnp.asarray(np.concatenate(blocks, axis=0), jnp.bfloat16)

    # f32 slab: per-layer [gamma; beta; alpha] (lane-tiled), head vectors.
    vrows = np.zeros((8 * 4 + 8, LANES), np.float32)
    offs["A"] = 0
    for l in range(4):
        cout, wout = couts[l], wins[l] // 2
        vrows[8 * l + 0, :] = np.tile(np.ones(cout, np.float32), wout)        # gamma
        vrows[8 * l + 2, :] = np.tile(np.full(cout, PRELU_INIT, np.float32), wout)  # alpha
    offs["HV"] = 32
    b1 = np.asarray(jax.random.normal(keys[5], (4 * NDF,), jnp.float32) * 0.1)
    w2 = np.asarray(_spectral_normalize(
        jax.random.normal(keys[6], (1, 4 * NDF), jnp.float32) * 0.1))
    b2 = float(jax.random.normal(keys[7], (1,), jnp.float32)[0]) * 0.1
    vrows[32, :4 * NDF] = b1
    vrows[33, :4 * NDF] = PRELU_INIT
    vrows[34, :4 * NDF] = w2[0]
    vrows[35, 0] = b2
    vrows[35, 1] = 1.0                      # LearnableSigmoid slope init (torch.ones)
    vslab = jnp.asarray(vrows)

    return {"wslab": wslab, "vslab": vslab, "offs": offs}


# ---------------------------------------------------------------------------
# Forward (mirrors Discriminator_spectrogram.forward) -- single pallas_call
# ---------------------------------------------------------------------------
def discriminator_forward(x, y, params):
    B, _, H, W = x.shape
    plane0 = _prep_input(x, y)
    kernel = _make_kernel(B, H, W, params["offs"])
    wslab, vslab = params["wslab"], params["vslab"]

    # f32 concat-plane scratches for layers 1..3 (width = 2 * win_l * cin_l = 512).
    scratch = []
    for l in range(1, 4):
        hout = (H >> l) // 2
        rows = _round_up(B * (hout + 1) + 1, 8)
        width = 2 * (W >> l) * (NDF << (l - 1))
        scratch.append(pltpu.VMEM((rows, width), jnp.float32))

    return pl.pallas_call(
        kernel,
        out_shape=jax.ShapeDtypeStruct((B, 1), jnp.float32),
        grid=(1,),
        in_specs=[pl.BlockSpec(plane0.shape, lambda i: (0, 0)),
                  pl.BlockSpec(wslab.shape, lambda i: (0, 0)),
                  pl.BlockSpec(vslab.shape, lambda i: (0, 0))],
        out_specs=pl.BlockSpec((B, 1), lambda i: (0, 0)),
        scratch_shapes=scratch,
        compiler_params=pltpu.CompilerParams(
            dimension_semantics=("arbitrary",)),
    )(plane0, wslab, vslab)


if __name__ == "__main__":
    key = jax.random.PRNGKey(0)
    k_x, k_y, k_p = jax.random.split(key, 3)

    B, H, W = 2, 32, 32
    x = jax.random.normal(k_x, (B, 1, H, W), jnp.float32)
    y = jax.random.normal(k_y, (B, 1, H, W), jnp.float32)

    params = init_params(k_p, B, H, W)

    fwd = jax.jit(lambda a, b: discriminator_forward(a, b, params))
    out = fwd(x, y)
    jax.block_until_ready(out)
    assert out.shape == (B, 1) and out.dtype == jnp.float32
    assert bool(jnp.all(jnp.isfinite(out)))
    print("KERNEL_OK")
</pallas_src>

<mosaic_0001>
module attributes {stable_mosaic.version = 11 : i64} {
  func.func @kernel(%arg0: i32, %arg1: memref<40x128xf32, #tpu.memory_space<vmem>>, %arg2: memref<3552x256xbf16, #tpu.memory_space<vmem>>, %arg3: memref<40x256xf32, #tpu.memory_space<vmem>>, %arg4: memref<2x1xf32, #tpu.memory_space<vmem>>, %arg5: memref<24x512xf32, #tpu.memory_space<vmem>>, %arg6: memref<16x512xf32, #tpu.memory_space<vmem>>, %arg7: memref<8x512xf32, #tpu.memory_space<vmem>>) attributes {dimension_semantics = [#tpu.dimension_semantics<arbitrary>], iteration_bounds = array<i64: 1>, scalar_prefetch = 0 : i64, scratch_operands = 3 : i64, tpu.core_type = #tpu.core_type<tc>, window_params = [{pipeline_mode = #tpu.pipeline_mode<synchronous>, transform_indices = @transform_0, window_bounds = array<i64: 40, 128>}, {pipeline_mode = #tpu.pipeline_mode<synchronous>, transform_indices = @transform_1, window_bounds = array<i64: 3552, 256>}, {pipeline_mode = #tpu.pipeline_mode<synchronous>, transform_indices = @transform_2, window_bounds = array<i64: 40, 256>}, {pipeline_mode = #tpu.pipeline_mode<synchronous>, transform_indices = @transform_3, window_bounds = array<i64: 2, 1>}]} {
    %cst = arith.constant 0.000000e+00 : f32
    %0 = vector.broadcast %cst : f32 to vector<6x512xf32>
    %c18 = arith.constant 18 : index
    %c0 = arith.constant 0 : index
    %1 = vector.load %arg5[%c18, %c0] : memref<24x512xf32, #tpu.memory_space<vmem>>, vector<6x512xf32>
    tpu.vector_store %arg5[%c18, %c0], %0 {strides = array<i32>} : memref<24x512xf32, #tpu.memory_space<vmem>>, vector<6x512xf32>,
    %cst_0 = arith.constant 0.000000e+00 : f32
    %2 = vector.broadcast %cst_0 : f32 to vector<6x512xf32>
    %c10 = arith.constant 10 : index
    %c0_1 = arith.constant 0 : index
    %3 = vector.load %arg6[%c10, %c0_1] : memref<16x512xf32, #tpu.memory_space<vmem>>, vector<6x512xf32>
    tpu.vector_store %arg6[%c10, %c0_1], %2 {strides = array<i32>} : memref<16x512xf32, #tpu.memory_space<vmem>>, vector<6x512xf32>,
    %cst_2 = arith.constant 0.000000e+00 : f32
    %4 = vector.broadcast %cst_2 : f32 to vector<2x512xf32>
    %c6 = arith.constant 6 : index
    %c0_3 = arith.constant 0 : index
    %5 = vector.load %arg7[%c6, %c0_3] : memref<8x512xf32, #tpu.memory_space<vmem>>, vector<2x512xf32>
    tpu.vector_store %arg7[%c6, %c0_3], %4 {strides = array<i32>} : memref<8x512xf32, #tpu.memory_space<vmem>>, vector<2x512xf32>,
    %c0_4 = arith.constant 0 : index
    %c0_5 = arith.constant 0 : index
    %6 = vector.load %arg1[%c0_4, %c0_5] : memref<40x128xf32, #tpu.memory_space<vmem>>, vector<34x128xf32>
    %7 = arith.truncf %6 : vector<34x128xf32> to vector<34x128xbf16>
    %c1 = arith.constant 1 : index
    %c0_6 = arith.constant 0 : index
    %8 = vector.load %arg1[%c1, %c0_6] : memref<40x128xf32, #tpu.memory_space<vmem>>, vector<34x128xf32>
    %9 = arith.truncf %8 : vector<34x128xf32> to vector<34x128xbf16>
    %c0_7 = arith.constant 0 : index
    %c0_8 = arith.constant 0 : index
    %10 = vector.load %arg2[%c0_7, %c0_8] : memref<3552x256xbf16, #tpu.memory_space<vmem>>, vector<128x256xbf16>
    %c128 = arith.constant 128 : index
    %c0_9 = arith.constant 0 : index
    %11 = vector.load %arg2[%c128, %c0_9] : memref<3552x256xbf16, #tpu.memory_space<vmem>>, vector<128x256xbf16>
    %cst_10 = arith.constant dense<0.000000e+00> : vector<34x256xf32>
    %12 = tpu.matmul %7, %10, %cst_10 {dimension_numbers = #tpu.dot_dimension_numbers<[1], [0], [0], [1], [0, 0, 1, 1], [], []>} : vector<34x128xbf16>, vector<128x256xbf16>, vector<34x256xf32> -> vector<34x256xf32>
    %cst_11 = arith.constant dense<0.000000e+00> : vector<34x256xf32>
    %13 = tpu.matmul %9, %11, %cst_11 {dimension_numbers = #tpu.dot_dimension_numbers<[1], [0], [0], [1], [0, 0, 1, 1], [], []>} : vector<34x128xbf16>, vector<128x256xbf16>, vector<34x256xf32> -> vector<34x256xf32>
    %14 = arith.addf %12, %13 : vector<34x256xf32>
    %15 = vector.extract_strided_slice %14 {offsets = [0, 0], sizes = [16, 256], strides = [1, 1]} : vector<34x256xf32> to vector<16x256xf32>
    %cst_12 = arith.constant dense<0.000000e+00> : vector<256xf32>
    %16 = vector.multi_reduction <add>, %15, %cst_12 [0] : vector<16x256xf32> to vector<256xf32>
    %17 = vector.shape_cast %16 : vector<256xf32> to vector<1x256xf32>
    %18 = arith.mulf %15, %15 : vector<16x256xf32>
    %cst_13 = arith.constant dense<0.000000e+00> : vector<256xf32>
    %19 = vector.multi_reduction <add>, %18, %cst_13 [0] : vector<16x256xf32> to vector<256xf32>
    %20 = vector.shape_cast %19 : vector<256xf32> to vector<1x256xf32>
    %21 = vector.extract_strided_slice %14 {offsets = [17, 0], sizes = [16, 256], strides = [1, 1]} : vector<34x256xf32> to vector<16x256xf32>
    %cst_14 = arith.constant dense<0.000000e+00> : vector<256xf32>
    %22 = vector.multi_reduction <add>, %21, %cst_14 [0] : vector<16x256xf32> to vector<256xf32>
    %23 = vector.shape_cast %22 : vector<256xf32> to vector<1x256xf32>
    %24 = arith.mulf %21, %21 : vector<16x256xf32>
    %cst_15 = arith.constant dense<0.000000e+00> : vector<256xf32>
    %25 = vector.multi_reduction <add>, %24, %cst_15 [0] : vector<16x256xf32> to vector<256xf32>
    %26 = vector.shape_cast %25 : vector<256xf32> to vector<1x256xf32>
    %27 = tpu.concatenate %17, %20, %23, %26 in 0 : vector<1x256xf32>, vector<1x256xf32>, vector<1x256xf32>, vector<1x256xf32> -> vector<4x256xf32>
    %c128_i32 = arith.constant 128 : i32
    %28 = tpu.dynamic_rotate %27 by %c128_i32 dim 1 : vector<4x256xf32>, i32 -> vector<4x256xf32>
    %29 = arith.addf %27, %28 : vector<4x256xf32>
    %c64_i32 = arith.constant 64 : i32
    %30 = tpu.dynamic_rotate %29 by %c64_i32 dim 1 : vector<4x256xf32>, i32 -> vector<4x256xf32>
    %31 = arith.addf %29, %30 : vector<4x256xf32>
    %c32_i32 = arith.constant 32 : i32
    %32 = tpu.dynamic_rotate %31 by %c32_i32 dim 1 : vector<4x256xf32>, i32 -> vector<4x256xf32>
    %33 = arith.addf %31, %32 : vector<4x256xf32>
    %c16_i32 = arith.constant 16 : i32
    %34 = tpu.dynamic_rotate %33 by %c16_i32 dim 1 : vector<4x256xf32>, i32 -> vector<4x256xf32>
    %35 = arith.addf %33, %34 : vector<4x256xf32>
    %cst_16 = arith.constant 3.906250e-03 : f32
    %36 = vector.broadcast %cst_16 : f32 to vector<4x256xf32>
    %37 = arith.mulf %35, %36 : vector<4x256xf32>
    %38 = vector.extract_strided_slice %37 {offsets = [0, 0], sizes = [1, 256], strides = [1, 1]} : vector<4x256xf32> to vector<1x256xf32>
    %39 = vector.extract_strided_slice %37 {offsets = [1, 0], sizes = [1, 256], strides = [1, 1]} : vector<4x256xf32> to vector<1x256xf32>
    %40 = arith.mulf %38, %38 : vector<1x256xf32>
    %41 = arith.subf %39, %40 : vector<1x256xf32>
    %cst_17 = arith.constant 0.000000e+00 : f32
    %42 = vector.broadcast %cst_17 : f32 to vector<1x256xf32>
    %43 = arith.maximumf %41, %42 : vector<1x256xf32>
    %44 = vector.broadcast %38 : vector<1x256xf32> to vector<16x256xf32>
    %45 = arith.subf %15, %44 : vector<16x256xf32>
    %cst_18 = arith.constant 9.99999974E-6 : f32
    %46 = vector.broadcast %cst_18 : f32 to vector<1x256xf32>
    %47 = arith.addf %43, %46 : vector<1x256xf32>
    %48 = math.rsqrt %47 : vector<1x256xf32>
    %49 = vector.broadcast %48 : vector<1x256xf32> to vector<16x256xf32>
    %50 = arith.mulf %45, %49 : vector<16x256xf32>
    %51 = vector.extract_strided_slice %37 {offsets = [2, 0], sizes = [1, 256], strides = [1, 1]} : vector<4x256xf32> to vector<1x256xf32>
    %52 = vector.extract_strided_slice %37 {offsets = [3, 0], sizes = [1, 256], strides = [1, 1]} : vector<4x256xf32> to vector<1x256xf32>
    %53 = arith.mulf %51, %51 : vector<1x256xf32>
    %54 = arith.subf %52, %53 : vector<1x256xf32>
    %cst_19 = arith.constant 0.000000e+00 : f32
    %55 = vector.broadcast %cst_19 : f32 to vector<1x256xf32>
    %56 = arith.maximumf %54, %55 : vector<1x256xf32>
    %57 = vector.broadcast %51 : vector<1x256xf32> to vector<16x256xf32>
    %58 = arith.subf %21, %57 : vector<16x256xf32>
    %cst_20 = arith.constant 9.99999974E-6 : f32
    %59 = vector.broadcast %cst_20 : f32 to vector<1x256xf32>
    %60 = arith.addf %56, %59 : vector<1x256xf32>
    %61 = math.rsqrt %60 : vector<1x256xf32>
    %62 = vector.broadcast %61 : vector<1x256xf32> to vector<16x256xf32>
    %63 = arith.mulf %58, %62 : vector<16x256xf32>
    %64 = tpu.concatenate %50, %63 in 0 : vector<16x256xf32>, vector<16x256xf32> -> vector<32x256xf32>
    %c0_21 = arith.constant 0 : index
    %c0_22 = arith.constant 0 : index
    %65 = vector.load %arg3[%c0_21, %c0_22] : memref<40x256xf32, #tpu.memory_space<vmem>>, vector<1x256xf32>
    %c1_23 = arith.constant 1 : index
    %c0_24 = arith.constant 0 : index
    %66 = vector.load %arg3[%c1_23, %c0_24] : memref<40x256xf32, #tpu.memory_space<vmem>>, vector<1x256xf32>
    %c2 = arith.constant 2 : index
    %c0_25 = arith.constant 0 : index
    %67 = vector.load %arg3[%c2, %c0_25] : memref<40x256xf32, #tpu.memory_space<vmem>>, vector<1x256xf32>
    %68 = vector.broadcast %65 : vector<1x256xf32> to vector<32x256xf32>
    %69 = arith.mulf %64, %68 : vector<32x256xf32>
    %70 = vector.broadcast %66 : vector<1x256xf32> to vector<32x256xf32>
    %71 = arith.addf %69, %70 : vector<32x256xf32>
    %cst_26 = arith.constant 0.000000e+00 : f32
    %72 = vector.broadcast %cst_26 : f32 to vector<32x256xf32>
    %73 = arith.cmpf oge, %71, %72 : vector<32x256xf32>
    %74 = vector.broadcast %67 : vector<1x256xf32> to vector<32x256xf32>
    %75 = arith.mulf %74, %71 : vector<32x256xf32>
    %76 = arith.select %73, %71, %75 : vector<32x256xi1>, vector<32x256xf32>
    %c3456 = arith.constant 3456 : index
    %c0_27 = arith.constant 0 : index
    %77 = vector.load %arg2[%c3456, %c0_27] : memref<3552x256xbf16, #tpu.memory_space<vmem>>, vector<48x32xbf16>
    %78 = arith.truncf %76 : vector<32x256xf32> to vector<32x256xbf16>
    %cst_28 = arith.constant dense<0.000000e+00> : vector<48x256xf32>
    %79 = tpu.matmul %77, %78, %cst_28 {dimension_numbers = #tpu.dot_dimension_numbers<[1], [0], [0], [1], [0, 0, 1, 1], [], []>} : vector<48x32xbf16>, vector<32x256xbf16>, vector<48x256xf32> -> vector<48x256xf32>
    %80 = vector.extract_strided_slice %79 {offsets = [0, 0], sizes = [18, 256], strides = [1, 1]} : vector<48x256xf32> to vector<18x256xf32>
    %c0_29 = arith.constant 0 : index
    %c0_30 = arith.constant 0 : index
    %81 = vector.load %arg5[%c0_29, %c0_30] : memref<24x512xf32, #tpu.memory_space<vmem>>, vector<18x256xf32>
    tpu.vector_store %arg5[%c0_29, %c0_30], %80 {strides = array<i32>} : memref<24x512xf32, #tpu.memory_space<vmem>>, vector<18x256xf32>,
    %82 = vector.extract_strided_slice %79 {offsets = [24, 0], sizes = [18, 256], strides = [1, 1]} : vector<48x256xf32> to vector<18x256xf32>
    %c0_31 = arith.constant 0 : index
    %c256 = arith.constant 256 : index
    %83 = vector.load %arg5[%c0_31, %c256] : memref<24x512xf32, #tpu.memory_space<vmem>>, vector<18x256xf32>
    tpu.vector_store %arg5[%c0_31, %c256], %82 {strides = array<i32>} : memref<24x512xf32, #tpu.memory_space<vmem>>, vector<18x256xf32>,
    %c0_32 = arith.constant 0 : index
    %c0_33 = arith.constant 0 : index
    %84 = vector.load %arg5[%c0_32, %c0_33] : memref<24x512xf32, #tpu.memory_space<vmem>>, vector<18x512xf32>
    %85 = arith.truncf %84 : vector<18x512xf32> to vector<18x512xbf16>
    %c1_34 = arith.constant 1 : index
    %c0_35 = arith.constant 0 : index
    %86 = vector.load %arg5[%c1_34, %c0_35] : memref<24x512xf32, #tpu.memory_space<vmem>>, vector<18x512xf32>
    %87 = arith.truncf %86 : vector<18x512xf32> to vector<18x512xbf16>
    %c256_36 = arith.constant 256 : index
    %c0_37 = arith.constant 0 : index
    %88 = vector.load %arg2[%c256_36, %c0_37] : memref<3552x256xbf16, #tpu.memory_space<vmem>>, vector<512x256xbf16>
    %c768 = arith.constant 768 : index
    %c0_38 = arith.constant 0 : index
    %89 = vector.load %arg2[%c768, %c0_38] : memref<3552x256xbf16, #tpu.memory_space<vmem>>, vector<512x256xbf16>
    %cst_39 = arith.constant dense<0.000000e+00> : vector<18x256xf32>
    %90 = tpu.matmul %85, %88, %cst_39 {dimension_numbers = #tpu.dot_dimension_numbers<[1], [0], [0], [1], [0, 0, 1, 1], [], []>} : vector<18x512xbf16>, vector<512x256xbf16>, vector<18x256xf32> -> vector<18x256xf32>
    %cst_40 = arith.constant dense<0.000000e+00> : vector<18x256xf32>
    %91 = tpu.matmul %87, %89, %cst_40 {dimension_numbers = #tpu.dot_dimension_numbers<[1], [0], [0], [1], [0, 0, 1, 1], [], []>} : vector<18x512xbf16>, vector<512x256xbf16>, vector<18x256xf32> -> vector<18x256xf32>
    %92 = arith.addf %90, %91 : vector<18x256xf32>
    %93 = vector.extract_strided_slice %92 {offsets = [0, 0], sizes = [8, 256], strides = [1, 1]} : vector<18x256xf32> to vector<8x256xf32>
    %cst_41 = arith.constant dense<0.000000e+00> : vector<256xf32>
    %94 = vector.multi_reduction <add>, %93, %cst_41 [0] : vector<8x256xf32> to vector<256xf32>
    %95 = vector.shape_cast %94 : vector<256xf32> to vector<1x256xf32>
    %96 = arith.mulf %93, %93 : vector<8x256xf32>
    %cst_42 = arith.constant dense<0.000000e+00> : vector<256xf32>
    %97 = vector.multi_reduction <add>, %96, %cst_42 [0] : vector<8x256xf32> to vector<256xf32>
    %98 = vector.shape_cast %97 : vector<256xf32> to vector<1x256xf32>
    %99 = vector.extract_strided_slice %92 {offsets = [9, 0], sizes = [8, 256], strides = [1, 1]} : vector<18x256xf32> to vector<8x256xf32>
    %cst_43 = arith.constant dense<0.000000e+00> : vector<256xf32>
    %100 = vector.multi_reduction <add>, %99, %cst_43 [0] : vector<8x256xf32> to vector<256xf32>
    %101 = vector.shape_cast %100 : vector<256xf32> to vector<1x256xf32>
    %102 = arith.mulf %99, %99 : vector<8x256xf32>
    %cst_44 = arith.constant dense<0.000000e+00> : vector<256xf32>
    %103 = vector.multi_reduction <add>, %102, %cst_44 [0] : vector<8x256xf32> to vector<256xf32>
    %104 = vector.shape_cast %103 : vector<256xf32> to vector<1x256xf32>
    %105 = tpu.concatenate %95, %98, %101, %104 in 0 : vector<1x256xf32>, vector<1x256xf32>, vector<1x256xf32>, vector<1x256xf32> -> vector<4x256xf32>
    %c128_i32_45 = arith.constant 128 : i32
    %106 = tpu.dynamic_rotate %105 by %c128_i32_45 dim 1 : vector<4x256xf32>, i32 -> vector<4x256xf32>
    %107 = arith.addf %105, %106 : vector<4x256xf32>
    %c64_i32_46 = arith.constant 64 : i32
    %108 = tpu.dynamic_rotate %107 by %c64_i32_46 dim 1 : vector<4x256xf32>, i32 -> vector<4x256xf32>
    %109 = arith.addf %107, %108 : vector<4x256xf32>
    %c32_i32_47 = arith.constant 32 : i32
    %110 = tpu.dynamic_rotate %109 by %c32_i32_47 dim 1 : vector<4x256xf32>, i32 -> vector<4x256xf32>
    %111 = arith.addf %109, %110 : vector<4x256xf32>
    %cst_48 = arith.constant 1.562500e-02 : f32
    %112 = vector.broadcast %cst_48 : f32 to vector<4x256xf32>
    %113 = arith.mulf %111, %112 : vector<4x256xf32>
    %114 = vector.extract_strided_slice %113 {offsets = [0, 0], sizes = [1, 256], strides = [1, 1]} : vector<4x256xf32> to vector<1x256xf32>
    %115 = vector.extract_strided_slice %113 {offsets = [1, 0], sizes = [1, 256], strides = [1, 1]} : vector<4x256xf32> to vector<1x256xf32>
    %116 = arith.mulf %114, %114 : vector<1x256xf32>
    %117 = arith.subf %115, %116 : vector<1x256xf32>
    %cst_49 = arith.constant 0.000000e+00 : f32
    %118 = vector.broadcast %cst_49 : f32 to vector<1x256xf32>
    %119 = arith.maximumf %117, %118 : vector<1x256xf32>
    %120 = vector.broadcast %114 : vector<1x256xf32> to vector<8x256xf32>
    %121 = arith.subf %93, %120 : vector<8x256xf32>
    %cst_50 = arith.constant 9.99999974E-6 : f32
    %122 = vector.broadcast %cst_50 : f32 to vector<1x256xf32>
    %123 = arith.addf %119, %122 : vector<1x256xf32>
    %124 = math.rsqrt %123 : vector<1x256xf32>
    %125 = vector.broadcast %124 : vector<1x256xf32> to vector<8x256xf32>
    %126 = arith.mulf %121, %125 : vector<8x256xf32>
    %127 = vector.extract_strided_slice %113 {offsets = [2, 0], sizes = [1, 256], strides = [1, 1]} : vector<4x256xf32> to vector<1x256xf32>
    %128 = vector.extract_strided_slice %113 {offsets = [3, 0], sizes = [1, 256], strides = [1, 1]} : vector<4x256xf32> to vector<1x256xf32>
    %129 = arith.mulf %127, %127 : vector<1x256xf32>
    %130 = arith.subf %128, %129 : vector<1x256xf32>
    %cst_51 = arith.constant 0.000000e+00 : f32
    %131 = vector.broadcast %cst_51 : f32 to vector<1x256xf32>
    %132 = arith.maximumf %130, %131 : vector<1x256xf32>
    %133 = vector.broadcast %127 : vector<1x256xf32> to vector<8x256xf32>
    %134 = arith.subf %99, %133 : vector<8x256xf32>
    %cst_52 = arith.constant 9.99999974E-6 : f32
    %135 = vector.broadcast %cst_52 : f32 to vector<1x256xf32>
    %136 = arith.addf %132, %135 : vector<1x256xf32>
    %137 = math.rsqrt %136 : vector<1x256xf32>
    %138 = vector.broadcast %137 : vector<1x256xf32> to vector<8x256xf32>
    %139 = arith.mulf %134, %138 : vector<8x256xf32>
    %140 = tpu.concatenate %126, %139 in 0 : vector<8x256xf32>, vector<8x256xf32> -> vector<16x256xf32>
    %c8 = arith.constant 8 : index
    %c0_53 = arith.constant 0 : index
    %141 = vector.load %arg3[%c8, %c0_53] : memref<40x256xf32, #tpu.memory_space<vmem>>, vector<1x256xf32>
    %c9 = arith.constant 9 : index
    %c0_54 = arith.constant 0 : index
    %142 = vector.load %arg3[%c9, %c0_54] : memref<40x256xf32, #tpu.memory_space<vmem>>, vector<1x256xf32>
    %c10_55 = arith.constant 10 : index
    %c0_56 = arith.constant 0 : index
    %143 = vector.load %arg3[%c10_55, %c0_56] : memref<40x256xf32, #tpu.memory_space<vmem>>, vector<1x256xf32>
    %144 = vector.broadcast %141 : vector<1x256xf32> to vector<16x256xf32>
    %145 = arith.mulf %140, %144 : vector<16x256xf32>
    %146 = vector.broadcast %142 : vector<1x256xf32> to vector<16x256xf32>
    %147 = arith.addf %145, %146 : vector<16x256xf32>
    %cst_57 = arith.constant 0.000000e+00 : f32
    %148 = vector.broadcast %cst_57 : f32 to vector<16x256xf32>
    %149 = arith.cmpf oge, %147, %148 : vector<16x256xf32>
    %150 = vector.broadcast %143 : vector<1x256xf32> to vector<16x256xf32>
    %151 = arith.mulf %150, %147 : vector<16x256xf32>
    %152 = arith.select %149, %147, %151 : vector<16x256xi1>, vector<16x256xf32>
    %c3504 = arith.constant 3504 : index
    %c0_58 = arith.constant 0 : index
    %153 = vector.load %arg2[%c3504, %c0_58] : memref<3552x256xbf16, #tpu.memory_space<vmem>>, vector<32x16xbf16>
    %154 = arith.truncf %152 : vector<16x256xf32> to vector<16x256xbf16>
    %cst_59 = arith.constant dense<0.000000e+00> : vector<32x256xf32>
    %155 = tpu.matmul %153, %154, %cst_59 {dimension_numbers = #tpu.dot_dimension_numbers<[1], [0], [0], [1], [0, 0, 1, 1], [], []>} : vector<32x16xbf16>, vector<16x256xbf16>, vector<32x256xf32> -> vector<32x256xf32>
    %156 = vector.extract_strided_slice %155 {offsets = [0, 0], sizes = [10, 256], strides = [1, 1]} : vector<32x256xf32> to vector<10x256xf32>
    %c0_60 = arith.constant 0 : index
    %c0_61 = arith.constant 0 : index
    %157 = vector.load %arg6[%c0_60, %c0_61] : memref<16x512xf32, #tpu.memory_space<vmem>>, vector<10x256xf32>
    tpu.vector_store %arg6[%c0_60, %c0_61], %156 {strides = array<i32>} : memref<16x512xf32, #tpu.memory_space<vmem>>, vector<10x256xf32>,
    %158 = vector.extract_strided_slice %155 {offsets = [16, 0], sizes = [10, 256], strides = [1, 1]} : vector<32x256xf32> to vector<10x256xf32>
    %c0_62 = arith.constant 0 : index
    %c256_63 = arith.constant 256 : index
    %159 = vector.load %arg6[%c0_62, %c256_63] : memref<16x512xf32, #tpu.memory_space<vmem>>, vector<10x256xf32>
    tpu.vector_store %arg6[%c0_62, %c256_63], %158 {strides = array<i32>} : memref<16x512xf32, #tpu.memory_space<vmem>>, vector<10x256xf32>,
    %c0_64 = arith.constant 0 : index
    %c0_65 = arith.constant 0 : index
    %160 = vector.load %arg6[%c0_64, %c0_65] : memref<16x512xf32, #tpu.memory_space<vmem>>, vector<10x512xf32>
    %161 = arith.truncf %160 : vector<10x512xf32> to vector<10x512xbf16>
    %c1_66 = arith.constant 1 : index
    %c0_67 = arith.constant 0 : index
    %162 = vector.load %arg6[%c1_66, %c0_67] : memref<16x512xf32, #tpu.memory_space<vmem>>, vector<10x512xf32>
    %163 = arith.truncf %162 : vector<10x512xf32> to vector<10x512xbf16>
    %c1280 = arith.constant 1280 : index
    %c0_68 = arith.constant 0 : index
    %164 = vector.load %arg2[%c1280, %c0_68] : memref<3552x256xbf16, #tpu.memory_space<vmem>>, vector<512x256xbf16>
    %c1792 = arith.constant 1792 : index
    %c0_69 = arith.constant 0 : index
    %165 = vector.load %arg2[%c1792, %c0_69] : memref<3552x256xbf16, #tpu.memory_space<vmem>>, vector<512x256xbf16>
    %cst_70 = arith.constant dense<0.000000e+00> : vector<10x256xf32>
    %166 = tpu.matmul %161, %164, %cst_70 {dimension_numbers = #tpu.dot_dimension_numbers<[1], [0], [0], [1], [0, 0, 1, 1], [], []>} : vector<10x512xbf16>, vector<512x256xbf16>, vector<10x256xf32> -> vector<10x256xf32>
    %cst_71 = arith.constant dense<0.000000e+00> : vector<10x256xf32>
    %167 = tpu.matmul %163, %165, %cst_71 {dimension_numbers = #tpu.dot_dimension_numbers<[1], [0], [0], [1], [0, 0, 1, 1], [], []>} : vector<10x512xbf16>, vector<512x256xbf16>, vector<10x256xf32> -> vector<10x256xf32>
    %168 = arith.addf %166, %167 : vector<10x256xf32>
    %169 = vector.extract_strided_slice %168 {offsets = [0, 0], sizes = [4, 256], strides = [1, 1]} : vector<10x256xf32> to vector<4x256xf32>
    %cst_72 = arith.constant dense<0.000000e+00> : vector<256xf32>
    %170 = vector.multi_reduction <add>, %169, %cst_72 [0] : vector<4x256xf32> to vector<256xf32>
    %171 = vector.shape_cast %170 : vector<256xf32> to vector<1x256xf32>
    %172 = arith.mulf %169, %169 : vector<4x256xf32>
    %cst_73 = arith.constant dense<0.000000e+00> : vector<256xf32>
    %173 = vector.multi_reduction <add>, %172, %cst_73 [0] : vector<4x256xf32> to vector<256xf32>
    %174 = vector.shape_cast %173 : vector<256xf32> to vector<1x256xf32>
    %175 = vector.extract_strided_slice %168 {offsets = [5, 0], sizes = [4, 256], strides = [1, 1]} : vector<10x256xf32> to vector<4x256xf32>
    %cst_74 = arith.constant dense<0.000000e+00> : vector<256xf32>
    %176 = vector.multi_reduction <add>, %175, %cst_74 [0] : vector<4x256xf32> to vector<256xf32>
    %177 = vector.shape_cast %176 : vector<256xf32> to vector<1x256xf32>
    %178 = arith.mulf %175, %175 : vector<4x256xf32>
    %cst_75 = arith.constant dense<0.000000e+00> : vector<256xf32>
    %179 = vector.multi_reduction <add>, %178, %cst_75 [0] : vector<4x256xf32> to vector<256xf32>
    %180 = vector.shape_cast %179 : vector<256xf32> to vector<1x256xf32>
    %181 = tpu.concatenate %171, %174, %177, %180 in 0 : vector<1x256xf32>, vector<1x256xf32>, vector<1x256xf32>, vector<1x256xf32> -> vector<4x256xf32>
    %c128_i32_76 = arith.constant 128 : i32
    %182 = tpu.dynamic_rotate %181 by %c128_i32_76 dim 1 : vector<4x256xf32>, i32 -> vector<4x256xf32>
    %183 = arith.addf %181, %182 : vector<4x256xf32>
    %c64_i32_77 = arith.constant 64 : i32
    %184 = tpu.dynamic_rotate %183 by %c64_i32_77 dim 1 : vector<4x256xf32>, i32 -> vector<4x256xf32>
    %185 = arith.addf %183, %184 : vector<4x256xf32>
    %cst_78 = arith.constant 6.250000e-02 : f32
    %186 = vector.broadcast %cst_78 : f32 to vector<4x256xf32>
    %187 = arith.mulf %185, %186 : vector<4x256xf32>
    %188 = vector.extract_strided_slice %187 {offsets = [0, 0], sizes = [1, 256], strides = [1, 1]} : vector<4x256xf32> to vector<1x256xf32>
    %189 = vector.extract_strided_slice %187 {offsets = [1, 0], sizes = [1, 256], strides = [1, 1]} : vector<4x256xf32> to vector<1x256xf32>
    %190 = arith.mulf %188, %188 : vector<1x256xf32>
    %191 = arith.subf %189, %190 : vector<1x256xf32>
    %cst_79 = arith.constant 0.000000e+00 : f32
    %192 = vector.broadcast %cst_79 : f32 to vector<1x256xf32>
    %193 = arith.maximumf %191, %192 : vector<1x256xf32>
    %194 = vector.broadcast %188 : vector<1x256xf32> to vector<4x256xf32>
    %195 = arith.subf %169, %194 : vector<4x256xf32>
    %cst_80 = arith.constant 9.99999974E-6 : f32
    %196 = vector.broadcast %cst_80 : f32 to vector<1x256xf32>
    %197 = arith.addf %193, %196 : vector<1x256xf32>
    %198 = math.rsqrt %197 : vector<1x256xf32>
    %199 = vector.broadcast %198 : vector<1x256xf32> to vector<4x256xf32>
    %200 = arith.mulf %195, %199 : vector<4x256xf32>
    %201 = vector.extract_strided_slice %187 {offsets = [2, 0], sizes = [1, 256], strides = [1, 1]} : vector<4x256xf32> to vector<1x256xf32>
    %202 = vector.extract_strided_slice %187 {offsets = [3, 0], sizes = [1, 256], strides = [1, 1]} : vector<4x256xf32> to vector<1x256xf32>
    %203 = arith.mulf %201, %201 : vector<1x256xf32>
    %204 = arith.subf %202, %203 : vector<1x256xf32>
    %cst_81 = arith.constant 0.000000e+00 : f32
    %205 = vector.broadcast %cst_81 : f32 to vector<1x256xf32>
    %206 = arith.maximumf %204, %205 : vector<1x256xf32>
    %207 = vector.broadcast %201 : vector<1x256xf32> to vector<4x256xf32>
    %208 = arith.subf %175, %207 : vector<4x256xf32>
    %cst_82 = arith.constant 9.99999974E-6 : f32
    %209 = vector.broadcast %cst_82 : f32 to vector<1x256xf32>
    %210 = arith.addf %206, %209 : vector<1x256xf32>
    %211 = math.rsqrt %210 : vector<1x256xf32>
    %212 = vector.broadcast %211 : vector<1x256xf32> to vector<4x256xf32>
    %213 = arith.mulf %208, %212 : vector<4x256xf32>
    %214 = tpu.concatenate %200, %213 in 0 : vector<4x256xf32>, vector<4x256xf32> -> vector<8x256xf32>
    %c16 = arith.constant 16 : index
    %c0_83 = arith.constant 0 : index
    %215 = vector.load %arg3[%c16, %c0_83] : memref<40x256xf32, #tpu.memory_space<vmem>>, vector<1x256xf32>
    %c17 = arith.constant 17 : index
    %c0_84 = arith.constant 0 : index
    %216 = vector.load %arg3[%c17, %c0_84] : memref<40x256xf32, #tpu.memory_space<vmem>>, vector<1x256xf32>
    %c18_85 = arith.constant 18 : index
    %c0_86 = arith.constant 0 : index
    %217 = vector.load %arg3[%c18_85, %c0_86] : memref<40x256xf32, #tpu.memory_space<vmem>>, vector<1x256xf32>
    %218 = vector.broadcast %215 : vector<1x256xf32> to vector<8x256xf32>
    %219 = arith.mulf %214, %218 : vector<8x256xf32>
    %220 = vector.broadcast %216 : vector<1x256xf32> to vector<8x256xf32>
    %221 = arith.addf %219, %220 : vector<8x256xf32>
    %cst_87 = arith.constant 0.000000e+00 : f32
    %222 = vector.broadcast %cst_87 : f32 to vector<8x256xf32>
    %223 = arith.cmpf oge, %221, %222 : vector<8x256xf32>
    %224 = vector.broadcast %217 : vector<1x256xf32> to vector<8x256xf32>
    %225 = arith.mulf %224, %221 : vector<8x256xf32>
    %226 = arith.select %223, %221, %225 : vector<8x256xi1>, vector<8x256xf32>
    %c3536 = arith.constant 3536 : index
    %c0_88 = arith.constant 0 : index
    %227 = vector.load %arg2[%c3536, %c0_88] : memref<3552x256xbf16, #tpu.memory_space<vmem>>, vector<16x8xbf16>
    %228 = arith.truncf %226 : vector<8x256xf32> to vector<8x256xbf16>
    %cst_89 = arith.constant dense<0.000000e+00> : vector<16x256xf32>
    %229 = tpu.matmul %227, %228, %cst_89 {dimension_numbers = #tpu.dot_dimension_numbers<[1], [0], [0], [1], [0, 0, 1, 1], [], []>} : vector<16x8xbf16>, vector<8x256xbf16>, vector<16x256xf32> -> vector<16x256xf32>
    %230 = vector.extract_strided_slice %229 {offsets = [0, 0], sizes = [6, 256], strides = [1, 1]} : vector<16x256xf32> to vector<6x256xf32>
    %c0_90 = arith.constant 0 : index
    %c0_91 = arith.constant 0 : index
    %231 = vector.load %arg7[%c0_90, %c0_91] : memref<8x512xf32, #tpu.memory_space<vmem>>, vector<6x256xf32>
    tpu.vector_store %arg7[%c0_90, %c0_91], %230 {strides = array<i32>} : memref<8x512xf32, #tpu.memory_space<vmem>>, vector<6x256xf32>,
    %232 = vector.extract_strided_slice %229 {offsets = [8, 0], sizes = [6, 256], strides = [1, 1]} : vector<16x256xf32> to vector<6x256xf32>
    %c0_92 = arith.constant 0 : index
    %c256_93 = arith.constant 256 : index
    %233 = vector.load %arg7[%c0_92, %c256_93] : memref<8x512xf32, #tpu.memory_space<vmem>>, vector<6x256xf32>
    tpu.vector_store %arg7[%c0_92, %c256_93], %232 {strides = array<i32>} : memref<8x512xf32, #tpu.memory_space<vmem>>, vector<6x256xf32>,
    %c0_94 = arith.constant 0 : index
    %c0_95 = arith.constant 0 : index
    %234 = vector.load %arg7[%c0_94, %c0_95] : memref<8x512xf32, #tpu.memory_space<vmem>>, vector<6x512xf32>
    %235 = arith.truncf %234 : vector<6x512xf32> to vector<6x512xbf16>
    %c1_96 = arith.constant 1 : index
    %c0_97 = arith.constant 0 : index
    %236 = vector.load %arg7[%c1_96, %c0_97] : memref<8x512xf32, #tpu.memory_space<vmem>>, vector<6x512xf32>
    %237 = arith.truncf %236 : vector<6x512xf32> to vector<6x512xbf16>
    %c2304 = arith.constant 2304 : index
    %c0_98 = arith.constant 0 : index
    %238 = vector.load %arg2[%c2304, %c0_98] : memref<3552x256xbf16, #tpu.memory_space<vmem>>, vector<512x256xbf16>
    %c2816 = arith.constant 2816 : index
    %c0_99 = arith.constant 0 : index
    %239 = vector.load %arg2[%c2816, %c0_99] : memref<3552x256xbf16, #tpu.memory_space<vmem>>, vector<512x256xbf16>
    %cst_100 = arith.constant dense<0.000000e+00> : vector<6x256xf32>
    %240 = tpu.matmul %235, %238, %cst_100 {dimension_numbers = #tpu.dot_dimension_numbers<[1], [0], [0], [1], [0, 0, 1, 1], [], []>} : vector<6x512xbf16>, vector<512x256xbf16>, vector<6x256xf32> -> vector<6x256xf32>
    %cst_101 = arith.constant dense<0.000000e+00> : vector<6x256xf32>
    %241 = tpu.matmul %237, %239, %cst_101 {dimension_numbers = #tpu.dot_dimension_numbers<[1], [0], [0], [1], [0, 0, 1, 1], [], []>} : vector<6x512xbf16>, vector<512x256xbf16>, vector<6x256xf32> -> vector<6x256xf32>
    %242 = arith.addf %240, %241 : vector<6x256xf32>
    %243 = vector.extract_strided_slice %242 {offsets = [0, 0], sizes = [2, 256], strides = [1, 1]} : vector<6x256xf32> to vector<2x256xf32>
    %cst_102 = arith.constant dense<0.000000e+00> : vector<256xf32>
    %244 = vector.multi_reduction <add>, %243, %cst_102 [0] : vector<2x256xf32> to vector<256xf32>
    %245 = vector.shape_cast %244 : vector<256xf32> to vector<1x256xf32>
    %246 = arith.mulf %243, %243 : vector<2x256xf32>
    %cst_103 = arith.constant dense<0.000000e+00> : vector<256xf32>
    %247 = vector.multi_reduction <add>, %246, %cst_103 [0] : vector<2x256xf32> to vector<256xf32>
    %248 = vector.shape_cast %247 : vector<256xf32> to vector<1x256xf32>
    %249 = vector.extract_strided_slice %242 {offsets = [3, 0], sizes = [2, 256], strides = [1, 1]} : vector<6x256xf32> to vector<2x256xf32>
    %cst_104 = arith.constant dense<0.000000e+00> : vector<256xf32>
    %250 = vector.multi_reduction <add>, %249, %cst_104 [0] : vector<2x256xf32> to vector<256xf32>
    %251 = vector.shape_cast %250 : vector<256xf32> to vector<1x256xf32>
    %252 = arith.mulf %249, %249 : vector<2x256xf32>
    %cst_105 = arith.constant dense<0.000000e+00> : vector<256xf32>
    %253 = vector.multi_reduction <add>, %252, %cst_105 [0] : vector<2x256xf32> to vector<256xf32>
    %254 = vector.shape_cast %253 : vector<256xf32> to vector<1x256xf32>
    %255 = tpu.concatenate %245, %248, %251, %254 in 0 : vector<1x256xf32>, vector<1x256xf32>, vector<1x256xf32>, vector<1x256xf32> -> vector<4x256xf32>
    %c128_i32_106 = arith.constant 128 : i32
    %256 = tpu.dynamic_rotate %255 by %c128_i32_106 dim 1 : vector<4x256xf32>, i32 -> vector<4x256xf32>
    %257 = arith.addf %255, %256 : vector<4x256xf32>
    %cst_107 = arith.constant 2.500000e-01 : f32
    %258 = vector.broadcast %cst_107 : f32 to vector<4x256xf32>
    %259 = arith.mulf %257, %258 : vector<4x256xf32>
    %260 = vector.extract_strided_slice %259 {offsets = [0, 0], sizes = [1, 256], strides = [1, 1]} : vector<4x256xf32> to vector<1x256xf32>
    %261 = vector.extract_strided_slice %259 {offsets = [1, 0], sizes = [1, 256], strides = [1, 1]} : vector<4x256xf32> to vector<1x256xf32>
    %262 = arith.mulf %260, %260 : vector<1x256xf32>
    %263 = arith.subf %261, %262 : vector<1x256xf32>
    %cst_108 = arith.constant 0.000000e+00 : f32
    %264 = vector.broadcast %cst_108 : f32 to vector<1x256xf32>
    %265 = arith.maximumf %263, %264 : vector<1x256xf32>
    %266 = vector.broadcast %260 : vector<1x256xf32> to vector<2x256xf32>
    %267 = arith.subf %243, %266 : vector<2x256xf32>
    %cst_109 = arith.constant 9.99999974E-6 : f32
    %268 = vector.broadcast %cst_109 : f32 to vector<1x256xf32>
    %269 = arith.addf %265, %268 : vector<1x256xf32>
    %270 = math.rsqrt %269 : vector<1x256xf32>
    %271 = vector.broadcast %270 : vector<1x256xf32> to vector<2x256xf32>
    %272 = arith.mulf %267, %271 : vector<2x256xf32>
    %273 = vector.extract_strided_slice %259 {offsets = [2, 0], sizes = [1, 256], strides = [1, 1]} : vector<4x256xf32> to vector<1x256xf32>
    %274 = vector.extract_strided_slice %259 {offsets = [3, 0], sizes = [1, 256], strides = [1, 1]} : vector<4x256xf32> to vector<1x256xf32>
    %275 = arith.mulf %273, %273 : vector<1x256xf32>
    %276 = arith.subf %274, %275 : vector<1x256xf32>
    %cst_110 = arith.constant 0.000000e+00 : f32
    %277 = vector.broadcast %cst_110 : f32 to vector<1x256xf32>
    %278 = arith.maximumf %276, %277 : vector<1x256xf32>
    %279 = vector.broadcast %273 : vector<1x256xf32> to vector<2x256xf32>
    %280 = arith.subf %249, %279 : vector<2x256xf32>
    %cst_111 = arith.constant 9.99999974E-6 : f32
    %281 = vector.broadcast %cst_111 : f32 to vector<1x256xf32>
    %282 = arith.addf %278, %281 : vector<1x256xf32>
    %283 = math.rsqrt %282 : vector<1x256xf32>
    %284 = vector.broadcast %283 : vector<1x256xf32> to vector<2x256xf32>
    %285 = arith.mulf %280, %284 : vector<2x256xf32>
    %286 = tpu.concatenate %272, %285 in 0 : vector<2x256xf32>, vector<2x256xf32> -> vector<4x256xf32>
    %c24 = arith.constant 24 : index
    %c0_112 = arith.constant 0 : index
    %287 = vector.load %arg3[%c24, %c0_112] : memref<40x256xf32, #tpu.memory_space<vmem>>, vector<1x256xf32>
    %c25 = arith.constant 25 : index
    %c0_113 = arith.constant 0 : index
    %288 = vector.load %arg3[%c25, %c0_113] : memref<40x256xf32, #tpu.memory_space<vmem>>, vector<1x256xf32>
    %c26 = arith.constant 26 : index
    %c0_114 = arith.constant 0 : index
    %289 = vector.load %arg3[%c26, %c0_114] : memref<40x256xf32, #tpu.memory_space<vmem>>, vector<1x256xf32>
    %290 = vector.broadcast %287 : vector<1x256xf32> to vector<4x256xf32>
    %291 = arith.mulf %286, %290 : vector<4x256xf32>
    %292 = vector.broadcast %288 : vector<1x256xf32> to vector<4x256xf32>
    %293 = arith.addf %291, %292 : vector<4x256xf32>
    %cst_115 = arith.constant 0.000000e+00 : f32
    %294 = vector.broadcast %cst_115 : f32 to vector<4x256xf32>
    %295 = arith.cmpf oge, %293, %294 : vector<4x256xf32>
    %296 = vector.broadcast %289 : vector<1x256xf32> to vector<4x256xf32>
    %297 = arith.mulf %296, %293 : vector<4x256xf32>
    %298 = arith.select %295, %293, %297 : vector<4x256xi1>, vector<4x256xf32>
    %299 = vector.extract_strided_slice %298 {offsets = [0, 0], sizes = [2, 256], strides = [1, 1]} : vector<4x256xf32> to vector<2x256xf32>
    %cst_116 = arith.constant dense<0xFF800000> : vector<256xf32>
    %300 = vector.multi_reduction <maximumf>, %299, %cst_116 [0] : vector<2x256xf32> to vector<256xf32>
    %301 = vector.shape_cast %300 : vector<256xf32> to vector<1x256xf32>
    %302 = vector.extract_strided_slice %301 {offsets = [0, 0], sizes = [1, 128], strides = [1, 1]} : vector<1x256xf32> to vector<1x128xf32>
    %303 = vector.extract_strided_slice %301 {offsets = [0, 128], sizes = [1, 128], strides = [1, 1]} : vector<1x256xf32> to vector<1x128xf32>
    %304 = arith.maximumf %302, %303 : vector<1x128xf32>
    %305 = vector.extract_strided_slice %298 {offsets = [2, 0], sizes = [2, 256], strides = [1, 1]} : vector<4x256xf32> to vector<2x256xf32>
    %cst_117 = arith.constant dense<0xFF800000> : vector<256xf32>
    %306 = vector.multi_reduction <maximumf>, %305, %cst_117 [0] : vector<2x256xf32> to vector<256xf32>
    %307 = vector.shape_cast %306 : vector<256xf32> to vector<1x256xf32>
    %308 = vector.extract_strided_slice %307 {offsets = [0, 0], sizes = [1, 128], strides = [1, 1]} : vector<1x256xf32> to vector<1x128xf32>
    %309 = vector.extract_strided_slice %307 {offsets = [0, 128], sizes = [1, 128], strides = [1, 1]} : vector<1x256xf32> to vector<1x128xf32>
    %310 = arith.maximumf %308, %309 : vector<1x128xf32>
    %311 = tpu.concatenate %304, %310 in 0 : vector<1x128xf32>, vector<1x128xf32> -> vector<2x128xf32>
    %c3328 = arith.constant 3328 : index
    %c0_118 = arith.constant 0 : index
    %312 = vector.load %arg2[%c3328, %c0_118] : memref<3552x256xbf16, #tpu.memory_space<vmem>>, vector<128x64xbf16>
    %c32 = arith.constant 32 : index
    %c0_119 = arith.constant 0 : index
    %313 = vector.load %arg3[%c32, %c0_119] : memref<40x256xf32, #tpu.memory_space<vmem>>, vector<1x64xf32>
    %c33 = arith.constant 33 : index
    %c0_120 = arith.constant 0 : index
    %314 = vector.load %arg3[%c33, %c0_120] : memref<40x256xf32, #tpu.memory_space<vmem>>, vector<1x64xf32>
    %c34 = arith.constant 34 : index
    %c0_121 = arith.constant 0 : index
    %315 = vector.load %arg3[%c34, %c0_121] : memref<40x256xf32, #tpu.memory_space<vmem>>, vector<1x64xf32>
    %c35 = arith.constant 35 : index
    %c0_122 = arith.constant 0 : index
    %316 = vector.load %arg3[%c35, %c0_122] : memref<40x256xf32, #tpu.memory_space<vmem>>, vector<1x1xf32>
    %c35_123 = arith.constant 35 : index
    %c1_124 = arith.constant 1 : index
    %317 = vector.load %arg3[%c35_123, %c1_124] : memref<40x256xf32, #tpu.memory_space<vmem>>, vector<1x1xf32>
    %318 = arith.truncf %311 : vector<2x128xf32> to vector<2x128xbf16>
    %cst_125 = arith.constant dense<0.000000e+00> : vector<2x64xf32>
    %319 = tpu.matmul %318, %312, %cst_125 {dimension_numbers = #tpu.dot_dimension_numbers<[1], [0], [0], [1], [0, 0, 1, 1], [], []>} : vector<2x128xbf16>, vector<128x64xbf16>, vector<2x64xf32> -> vector<2x64xf32>
    %320 = vector.broadcast %313 : vector<1x64xf32> to vector<2x64xf32>
    %321 = arith.addf %319, %320 : vector<2x64xf32>
    %cst_126 = arith.constant 0.000000e+00 : f32
    %322 = vector.broadcast %cst_126 : f32 to vector<2x64xf32>
    %323 = arith.cmpf oge, %321, %322 : vector<2x64xf32>
    %324 = vector.broadcast %314 : vector<1x64xf32> to vector<2x64xf32>
    %325 = arith.mulf %324, %321 : vector<2x64xf32>
    %326 = arith.select %323, %321, %325 : vector<2x64xi1>, vector<2x64xf32>
    %327 = vector.broadcast %315 : vector<1x64xf32> to vector<2x64xf32>
    %328 = arith.mulf %326, %327 : vector<2x64xf32>
    %cst_127 = arith.constant dense<0.000000e+00> : vector<2xf32>
    %329 = vector.multi_reduction <add>, %328, %cst_127 [1] : vector<2x64xf32> to vector<2xf32>
    %330 = vector.shape_cast %329 : vector<2xf32> to vector<2x1xf32>
    %331 = vector.broadcast %316 : vector<1x1xf32> to vector<2x1xf32>
    %332 = arith.addf %330, %331 : vector<2x1xf32>
    %333 = vector.broadcast %317 : vector<1x1xf32> to vector<2x1xf32>
    %334 = arith.mulf %333, %332 : vector<2x1xf32>
    %cst_128 = arith.constant 0.000000e+00 : f32
    %335 = vector.broadcast %cst_128 : f32 to vector<2x1xf32>
    %336 = arith.subf %335, %334 : vector<2x1xf32>
    %337 = math.exp %336 : vector<2x1xf32>
    %cst_129 = arith.constant 1.000000e+00 : f32
    %338 = vector.broadcast %cst_129 : f32 to vector<2x1xf32>
    %339 = arith.addf %338, %337 : vector<2x1xf32>
    %cst_130 = arith.constant 1.000000e+00 : f32
    %340 = vector.broadcast %cst_130 : f32 to vector<2x1xf32>
    %341 = arith.divf %340, %339 : vector<2x1xf32>
    %c0_131 = arith.constant 0 : index
    %c0_132 = arith.constant 0 : index
    %342 = vector.load %arg4[%c0_131, %c0_132] : memref<2x1xf32, #tpu.memory_space<vmem>>, vector<2x1xf32>
    tpu.vector_store %arg4[%c0_131, %c0_132], %341 {strides = array<i32>} : memref<2x1xf32, #tpu.memory_space<vmem>>, vector<2x1xf32>,
    return
  }
  func.func @transform_0(%arg0: i32) -> (i32, i32) {
    %c0_i32 = arith.constant 0 : i32
    %c0_i32_0 = arith.constant 0 : i32
    %c0_i32_1 = arith.constant 0 : i32
    return %c0_i32, %c0_i32_0 : i32, i32
  }
  func.func @transform_1(%arg0: i32) -> (i32, i32) {
    %c0_i32 = arith.constant 0 : i32
    %c0_i32_0 = arith.constant 0 : i32
    %c0_i32_1 = arith.constant 0 : i32
    return %c0_i32, %c0_i32_0 : i32, i32
  }
  func.func @transform_2(%arg0: i32) -> (i32, i32) {
    %c0_i32 = arith.constant 0 : i32
    %c0_i32_0 = arith.constant 0 : i32
    %c0_i32_1 = arith.constant 0 : i32
    return %c0_i32, %c0_i32_0 : i32, i32
  }
  func.func @transform_3(%arg0: i32) -> (i32, i32) {
    %c0_i32 = arith.constant 0 : i32
    %c0_i32_0 = arith.constant 0 : i32
    %c0_i32_1 = arith.constant 0 : i32
    return %c0_i32, %c0_i32_0 : i32, i32
  }
}

</mosaic_0001>

<llo_original>
// kernel: _lambda_.1
$region0: #{_lambda_.1}
  #allocation0 [shape = 'u32[]', space=smem, size = 0x4, offset = 0x4, fixed_abs, tag = 'smem constant byte address 0x4 - core index']
  #allocation1 [shape = 'u32[144,128]{1,0:T(1,128)}', space=vmem, size = 0x12000, scoped, tag = 'internal scratch']
  #allocation2 [shape = 'f32[24,512]{1,0:T(8,128)}', space=vmem, size = 0xc000, scoped, tag = 'scratch operand']
  #allocation3 [shape = 'f32[16,512]{1,0:T(8,128)}', space=vmem, size = 0x8000, scoped, tag = 'scratch operand']
  #allocation4 [shape = 'f32[8,512]{1,0:T(8,128)}', space=vmem, size = 0x4000, scoped, tag = 'scratch operand']
  %s0 = inlined_call_operand.vmem [shape: f32[40,128], index: 0, kind: input, shape index: {}]
  %s1 = inlined_call_operand.vmem [shape: bf16[3552,256], index: 1, kind: input, shape index: {}]
  %s2 = inlined_call_operand.vmem [shape: f32[40,256], index: 2, kind: input, shape index: {}]
  %s3 = inlined_call_operand.vmem [shape: f32[2,1], index: 3, kind: output, shape index: {}]
  %s4 = sld [smem:[#allocation0]]
  $region22: #{_lambda_.1} parent=0
    _
  %s6 = ssub.s32 1, %s4
  %s7 = scalar_select 0, %s6, %s4
  // Predicated region
  $region2: #{_lambda_.1} parent=0 // pred_check
    _
  $region3: #{_lambda_.1} parent=0 // pred_check_branch
    %9 = sbr.rel (0) target = $region5
  $region4: #{_lambda_.1} parent=0 // pred_region
    _
  $region5: #{_lambda_.1} parent=0 // pred_fallthru
    _
  // Predicated region
  $region6: #{_lambda_.1} parent=0 // pred_check
    _
  $region7: #{_lambda_.1} parent=0 // pred_check_branch
    %11 = sbr.rel (0) target = $region9
  $region8: #{_lambda_.1} parent=0 // pred_region
    _
  $region9: #{_lambda_.1} parent=0 // pred_fallthru
    _
  // Predicated region
  $region10: #{_lambda_.1} parent=0 // pred_check
    _
  $region11: #{_lambda_.1} parent=0 // pred_check_branch
    %13 = sbr.rel (0) target = $region13
  $region12: #{_lambda_.1} parent=0 // pred_region
    _
  $region13: #{_lambda_.1} parent=0 // pred_fallthru
    _
  %15 = vst [vmem:[#allocation2 + $0x40] sm:$0xfc] 0.0
  %16 = vst [vmem:[#allocation2 + $0x48] sm:$0xfc] 0.0
  %17 = vst [vmem:[#allocation2 + $0x50] sm:$0xfc] 0.0
  %18 = vst [vmem:[#allocation2 + $0x58] sm:$0xfc] 0.0
  %19 = vst [vmem:[#allocation3 + $0x20] sm:$0xfc] 0.0
  %20 = vst [vmem:[#allocation3 + $0x28] sm:$0xfc] 0.0
  %21 = vst [vmem:[#allocation3 + $0x30] sm:$0xfc] 0.0
  %22 = vst [vmem:[#allocation3 + $0x38] sm:$0xfc] 0.0
  %23 = vst [vmem:[#allocation4] sm:$0xc0] 0.0
  %24 = vst [vmem:[#allocation4 + $0x8] sm:$0xc0] 0.0
  %25 = vst [vmem:[#allocation4 + $0x10] sm:$0xc0] 0.0
  %26 = vst [vmem:[#allocation4 + $0x18] sm:$0xc0] 0.0
  %v27 = vld [vmem:[%s0] sm:$0xff]
  %v28 = vld [vmem:[%s0 + $0x8] sm:$0xff]
  %v29 = vld [vmem:[%s0 + $0x10] sm:$0xff]
  %v30 = vld [vmem:[%s0 + $0x18] sm:$0xff]
  %v31 = vld [vmem:[%s0 + $0x20] sm:$0x3]
  %v32 = vpack.c.bf16 %v28, %v27
  %v33 = vpack.c.bf16 %v30, %v29
  %v34 = vpack.c.bf16 %v31, %v31
  %v35 = vld [vmem:[%s0 + $0x1] sm:$0xff]
  %v36 = vld [vmem:[%s0 + $0x9] sm:$0xff]
  %v37 = vld [vmem:[%s0 + $0x11] sm:$0xff]
  %v38 = vld [vmem:[%s0 + $0x19] sm:$0xff]
  %v39 = vld [vmem:[%s0 + $0x21] sm:$0x3]
  %v40 = vpack.c.bf16 %v36, %v35
  %v41 = vpack.c.bf16 %v38, %v37
  %v42 = vpack.c.bf16 %v39, %v39
  %v43 = vld [vmem:[%s1] sm:$0xff]
  %v44 = vld [vmem:[%s1 + $0x8] sm:$0xff]
  %v45 = vld [vmem:[%s1 + $0x10] sm:$0xff]
  %v46 = vld [vmem:[%s1 + $0x18] sm:$0xff]
  %v47 = vld [vmem:[%s1 + $0x20] sm:$0xff]
  %v48 = vld [vmem:[%s1 + $0x28] sm:$0xff]
  %v49 = vld [vmem:[%s1 + $0x30] sm:$0xff]
  %v50 = vld [vmem:[%s1 + $0x38] sm:$0xff]
  %v51 = vld [vmem:[%s1 + $0x40] sm:$0xff]
  %v52 = vld [vmem:[%s1 + $0x48] sm:$0xff]
  %v53 = vld [vmem:[%s1 + $0x50] sm:$0xff]
  %v54 = vld [vmem:[%s1 + $0x58] sm:$0xff]
  %v55 = vld [vmem:[%s1 + $0x60] sm:$0xff]
  %v56 = vld [vmem:[%s1 + $0x68] sm:$0xff]
  %v57 = vld [vmem:[%s1 + $0x70] sm:$0xff]
  %v58 = vld [vmem:[%s1 + $0x78] sm:$0xff]
  %v59 = vld [vmem:[%s1 + $0x80] sm:$0xff]
  %v60 = vld [vmem:[%s1 + $0x88] sm:$0xff]
  %v61 = vld [vmem:[%s1 + $0x90] sm:$0xff]
  %v62 = vld [vmem:[%s1 + $0x98] sm:$0xff]
  %v63 = vld [vmem:[%s1 + $0xa0] sm:$0xff]
  %v64 = vld [vmem:[%s1 + $0xa8] sm:$0xff]
  %v65 = vld [vmem:[%s1 + $0xb0] sm:$0xff]
  %v66 = vld [vmem:[%s1 + $0xb8] sm:$0xff]
  %v67 = vld [vmem:[%s1 + $0xc0] sm:$0xff]
  %v68 = vld [vmem:[%s1 + $0xc8] sm:$0xff]
  %v69 = vld [vmem:[%s1 + $0xd0] sm:$0xff]
  %v70 = vld [vmem:[%s1 + $0xd8] sm:$0xff]
  %v71 = vld [vmem:[%s1 + $0xe0] sm:$0xff]
  %v72 = vld [vmem:[%s1 + $0xe8] sm:$0xff]
  %v73 = vld [vmem:[%s1 + $0xf0] sm:$0xff]
  %v74 = vld [vmem:[%s1 + $0xf8] sm:$0xff]
  %v91 = vunpack.c.l.b16 %v59
  %v92 = vunpack.c.h.b16 %v59
  %v93 = vunpack.c.l.b16 %v60
  %v94 = vunpack.c.h.b16 %v60
  %v95 = vunpack.c.l.b16 %v61
  %v96 = vunpack.c.h.b16 %v61
  %v97 = vunpack.c.l.b16 %v62
  %v98 = vunpack.c.h.b16 %v62
  %v99 = vunpack.c.l.b16 %v63
  %v100 = vunpack.c.h.b16 %v63
  %v101 = vunpack.c.l.b16 %v64
  %v102 = vunpack.c.h.b16 %v64
  %v103 = vunpack.c.l.b16 %v65
  %v104 = vunpack.c.h.b16 %v65
  %v105 = vunpack.c.l.b16 %v66
  %v106 = vunpack.c.h.b16 %v66
  %v107 = vunpack.c.l.b16 %v67
  %v108 = vunpack.c.h.b16 %v67
  %v109 = vunpack.c.l.b16 %v68
  %v110 = vunpack.c.h.b16 %v68
  %v111 = vunpack.c.l.b16 %v69
  %v112 = vunpack.c.h.b16 %v69
  %v113 = vunpack.c.l.b16 %v70
  %v114 = vunpack.c.h.b16 %v70
  %v115 = vunpack.c.l.b16 %v71
  %v116 = vunpack.c.h.b16 %v71
  %v117 = vunpack.c.l.b16 %v72
  %v118 = vunpack.c.h.b16 %v72
  %v119 = vunpack.c.l.b16 %v73
  %v120 = vunpack.c.h.b16 %v73
  %v121 = vunpack.c.l.b16 %v74
  %v122 = vunpack.c.h.b16 %v74
  %v123 = vpack.c.b16 %v93, %v91
  %v124 = vpack.c.b16 %v94, %v92
  %v125 = vpack.c.b16 %v97, %v95
  %v126 = vpack.c.b16 %v98, %v96
  %v127 = vpack.c.b16 %v101, %v99
  %v128 = vpack.c.b16 %v102, %v100
  %v129 = vpack.c.b16 %v105, %v103
  %v130 = vpack.c.b16 %v106, %v104
  %v131 = vpack.c.b16 %v109, %v107
  %v132 = vpack.c.b16 %v110, %v108
  %v133 = vpack.c.b16 %v113, %v111
  %v134 = vpack.c.b16 %v114, %v112
  %v135 = vpack.c.b16 %v117, %v115
  %v136 = vpack.c.b16 %v118, %v116
  %v137 = vpack.c.b16 %v121, %v119
  %v138 = vpack.c.b16 %v122, %v120
  %155 = vmatprep.subr.bf16.mxu0 %v124
  %156 = vmatpush1.bf16.msra.mxu0 %v123
  %157 = vmatprep.subr.bf16.mxu0 %v126
  %158 = vmatpush1.bf16.msra.mxu0 %v125
  %159 = vmatprep.subr.bf16.mxu0 %v128
  %160 = vmatpush1.bf16.msra.mxu0 %v127
  %161 = vmatprep.subr.bf16.mxu0 %v130
  %162 = vmatpush1.bf16.msra.mxu0 %v129
  %163 = vmatprep.subr.bf16.mxu0 %v132
  %164 = vmatpush1.bf16.msra.mxu0 %v131
  %165 = vmatprep.subr.bf16.mxu0 %v134
  %166 = vmatpush1.bf16.msra.mxu0 %v133
  %167 = vmatprep.subr.bf16.mxu0 %v136
  %168 = vmatpush1.bf16.msra.mxu0 %v135
  %169 = vmatprep.subr.bf16.mxu0 %v138
  %170 = vmatpush1.bf16.msra.mxu0 %v137
  %171 = vmatprep.subr.bf16.mxu0 0
  %172 = vmatpush1.bf16.msra.mxu0 0
  %173 = vmatprep.subr.bf16.mxu0 0
  %174 = vmatpush1.bf16.msra.mxu0 0
  %175 = vmatprep.subr.bf16.mxu0 0
  %176 = vmatpush1.bf16.msra.mxu0 0
  %177 = vmatprep.subr.bf16.mxu0 0
  %178 = vmatpush1.bf16.msra.mxu0 0
  %179 = vmatprep.subr.bf16.mxu0 0
  %180 = vmatpush1.bf16.msra.mxu0 0
  %181 = vmatprep.subr.bf16.mxu0 0
  %182 = vmatpush1.bf16.msra.mxu0 0
  %183 = vmatprep.subr.bf16.mxu0 0
  %184 = vmatpush1.bf16.msra.mxu0 0
  %185 = vmatprep.subr.bf16.mxu0 0
  %186 = vmatpush1.bf16.msra.mxu0 0
  %187 = vmatprep.mubr.bf16.mxu0 0
  %188 = vmatmul.mubr.bf16.gmra.mrb[0].mxu0 %v40
  %v189 = vpop.f32.mrb[0].mxu0
  %v190 = vadd.f32 0.0, %v189
  %v191 = vpop.f32.mrb[0].mxu0
  %v192 = vadd.f32 0.0, %v191
  %v193 = vpop.f32.mrb[0].mxu0
  %v194 = vadd.f32 0.0, %v193
  %v195 = vpop.f32.mrb[0].mxu0
  %v196 = vadd.f32 0.0, %v195
  %197 = vmatprep.mubr.bf16.mxu0 0
  %198 = vmatmul.mubr.bf16.gmra.mrb[0].mxu0 %v41
  %v199 = vpop.f32.mrb[0].mxu0
  %v200 = vadd.f32 0.0, %v199
  %v201 = vpop.f32.mrb[0].mxu0
  %v202 = vadd.f32 0.0, %v201
  %v203 = vpop.f32.mrb[0].mxu0
  %v204 = vadd.f32 0.0, %v203
  %v205 = vpop.f32.mrb[0].mxu0
  %v206 = vadd.f32 0.0, %v205
  %207 = vmatprep.mubr.bf16.mxu0 0
  %208 = vmatmul.mubr.bf16.gmra.mrb[0].mxu0 %v42
  %v209 = vpop.f32.mrb[0].mxu0
  %v210 = vadd.f32 0.0, %v209
  %v211 = vpop.f32.mrb[0].mxu0
  %v212 = vadd.f32 0.0, %v211
  %v213 = vpop.f32.mrb[0].mxu0
  %v214 = vpop.f32.mrb[0].mxu0
  %215 = vdwg.mxu0
  %v232 = vunpack.c.l.b16 %v43
  %v233 = vunpack.c.h.b16 %v43
  %v234 = vunpack.c.l.b16 %v44
  %v235 = vunpack.c.h.b16 %v44
  %v236 = vunpack.c.l.b16 %v45
  %v237 = vunpack.c.h.b16 %v45
  %v238 = vunpack.c.l.b16 %v46
  %v239 = vunpack.c.h.b16 %v46
  %v240 = vunpack.c.l.b16 %v47
  %v241 = vunpack.c.h.b16 %v47
  %v242 = vunpack.c.l.b16 %v48
  %v243 = vunpack.c.h.b16 %v48
  %v244 = vunpack.c.l.b16 %v49
  %v245 = vunpack.c.h.b16 %v49
  %v246 = vunpack.c.l.b16 %v50
  %v247 = vunpack.c.h.b16 %v50
  %v248 = vunpack.c.l.b16 %v51
  %v249 = vunpack.c.h.b16 %v51
  %v250 = vunpack.c.l.b16 %v52
  %v251 = vunpack.c.h.b16 %v52
  %v252 = vunpack.c.l.b16 %v53
  %v253 = vunpack.c.h.b16 %v53
  %v254 = vunpack.c.l.b16 %v54
  %v255 = vunpack.c.h.b16 %v54
  %v256 = vunpack.c.l.b16 %v55
  %v257 = vunpack.c.h.b16 %v55
  %v258 = vunpack.c.l.b16 %v56
  %v259 = vunpack.c.h.b16 %v56
  %v260 = vunpack.c.l.b16 %v57
  %v261 = vunpack.c.h.b16 %v57
  %v262 = vunpack.c.l.b16 %v58
  %v263 = vunpack.c.h.b16 %v58
  %v264 = vpack.c.b16 %v234, %v232
  %v265 = vpack.c.b16 %v235, %v233
  %v266 = vpack.c.b16 %v238, %v236
  %v267 = vpack.c.b16 %v239, %v237
  %v268 = vpack.c.b16 %v242, %v240
  %v269 = vpack.c.b16 %v243, %v241
  %v270 = vpack.c.b16 %v246, %v244
  %v271 = vpack.c.b16 %v247, %v245
  %v272 = vpack.c.b16 %v250, %v248
  %v273 = vpack.c.b16 %v251, %v249
  %v274 = vpack.c.b16 %v254, %v252
  %v275 = vpack.c.b16 %v255, %v253
  %v276 = vpack.c.b16 %v258, %v256
  %v277 = vpack.c.b16 %v259, %v257
  %v278 = vpack.c.b16 %v262, %v260
  %v279 = vpack.c.b16 %v263, %v261
  %296 = vmatprep.subr.bf16.mxu0 %v265
  %297 = vmatpush1.bf16.msra.mxu0 %v264
  %298 = vmatprep.subr.bf16.mxu0 %v267
  %299 = vmatpush1.bf16.msra.mxu0 %v266
  %300 = vmatprep.subr.bf16.mxu0 %v269
  %301 = vmatpush1.bf16.msra.mxu0 %v268
  %302 = vmatprep.subr.bf16.mxu0 %v271
  %303 = vmatpush1.bf16.msra.mxu0 %v270
  %304 = vmatprep.subr.bf16.mxu0 %v273
  %305 = vmatpush1.bf16.msra.mxu0 %v272
  %306 = vmatprep.subr.bf16.mxu0 %v275
  %307 = vmatpush1.bf16.msra.mxu0 %v274
  %308 = vmatprep.subr.bf16.mxu0 %v277
  %309 = vmatpush1.bf16.msra.mxu0 %v276
  %310 = vmatprep.subr.bf16.mxu0 %v279
  %311 = vmatpush1.bf16.msra.mxu0 %v278
  %312 = vmatprep.subr.bf16.mxu0 0
  %313 = vmatpush1.bf16.msra.mxu0 0
  %314 = vmatprep.subr.bf16.mxu0 0
  %315 = vmatpush1.bf16.msra.mxu0 0
  %316 = vmatprep.subr.bf16.mxu0 0
  %317 = vmatpush1.bf16.msra.mxu0 0
  %318 = vmatprep.subr.bf16.mxu0 0
  %319 = vmatpush1.bf16.msra.mxu0 0
  %320 = vmatprep.subr.bf16.mxu0 0
  %321 = vmatpush1.bf16.msra.mxu0 0
  %322 = vmatprep.subr.bf16.mxu0 0
  %323 = vmatpush1.bf16.msra.mxu0 0
  %324 = vmatprep.subr.bf16.mxu0 0
  %325 = vmatpush1.bf16.msra.mxu0 0
  %326 = vmatprep.subr.bf16.mxu0 0
  %327 = vmatpush1.bf16.msra.mxu0 0
  %328 = vmatprep.mubr.bf16.mxu0 0
  %329 = vmatmul.mubr.bf16.gmra.mrb[0].mxu0 %v32
  %v330 = vpop.f32.mrb[0].mxu0
  %v331 = vadd.f32 %v190, %v330
  %v332 = vpop.f32.mrb[0].mxu0
  %v333 = vadd.f32 %v192, %v332
  %v334 = vpop.f32.mrb[0].mxu0
  %v335 = vadd.f32 %v194, %v334
  %v336 = vpop.f32.mrb[0].mxu0
  %v337 = vadd.f32 %v196, %v336
  %338 = vmatprep.mubr.bf16.mxu0 0
  %339 = vmatmul.mubr.bf16.gmra.mrb[0].mxu0 %v33
  %v340 = vpop.f32.mrb[0].mxu0
  %v341 = vadd.f32 %v200, %v340
  %v342 = vpop.f32.mrb[0].mxu0
  %v343 = vadd.f32 %v202, %v342
  %v344 = vpop.f32.mrb[0].mxu0
  %v345 = vadd.f32 %v204, %v344
  %v346 = vpop.f32.mrb[0].mxu0
  %v347 = vadd.f32 %v206, %v346
  %348 = vmatprep.mubr.bf16.mxu0 0
  %349 = vmatmul.mubr.bf16.gmra.mrb[0].mxu0 %v34
  %v350 = vpop.f32.mrb[0].mxu0
  %v351 = vadd.f32 %v210, %v350
  %v352 = vpop.f32.mrb[0].mxu0
  %v353 = vadd.f32 %v212, %v352
  %v354 = vpop.f32.mrb[0].mxu0
  %v355 = vpop.f32.mrb[0].mxu0
  %356 = vdwg.mxu0
  %v357 = vadd.f32 %v331, %v335
  %v358 = vrot.slane %v357, 4
  %v359 = vadd.f32 %v357, %v358
  %v360 = vrot.slane %v359, 2
  %v361 = vadd.f32 %v359, %v360
  %v362 = vrot.slane %v361, 1
  %v363 = vadd.f32 %v361, %v362
  %v364 = vadd.f32 %v333, %v337
  %v365 = vrot.slane %v364, 4
  %v366 = vadd.f32 %v364, %v365
  %v367 = vrot.slane %v366, 2
  %v368 = vadd.f32 %v366, %v367
  %v369 = vrot.slane %v368, 1
  %v370 = vadd.f32 %v368, %v369
  %v371 = vmul.f32 %v331, %v331
  %v372 = vmul.f32 %v333, %v333
  %v373 = vmul.f32 %v335, %v335
  %v374 = vmul.f32 %v337, %v337
  %v375 = vadd.f32 %v371, %v373
  %v376 = vrot.slane %v375, 4
  %v377 = vadd.f32 %v375, %v376
  %v378 = vrot.slane %v377, 2
  %v379 = vadd.f32 %v377, %v378
  %v380 = vrot.slane %v379, 1
  %v381 = vadd.f32 %v379, %v380
  %v382 = vadd.f32 %v372, %v374
  %v383 = vrot.slane %v382, 4
  %v384 = vadd.f32 %v382, %v383
  %v385 = vrot.slane %v384, 2
  %v386 = vadd.f32 %v384, %v385
  %v387 = vrot.slane %v386, 1
  %v388 = vadd.f32 %v386, %v387
  %vm395 = vcmask 1046528
  %v396 = vrot.slane %v341, 1
  %v397 = vrot.slane %v345, 1
  %v398 = vsel %vm395, %v396, %v397
  %v399 = vrot.slane %v343, 1
  %v400 = vrot.slane %v347, 1
  %v401 = vsel %vm395, %v399, %v400
  %v402 = vrot.slane %v351, 1
  %v403 = vsel %vm395, %v397, %v402
  %v404 = vrot.slane %v353, 1
  %v405 = vsel %vm395, %v400, %v404
  %v410 = vadd.f32 %v398, %v403
  %v411 = vrot.slane %v410, 4
  %v412 = vadd.f32 %v410, %v411
  %v413 = vrot.slane %v412, 2
  %v414 = vadd.f32 %v412, %v413
  %v415 = vrot.slane %v414, 1
  %v416 = vadd.f32 %v414, %v415
  %v417 = vadd.f32 %v401, %v405
  %v418 = vrot.slane %v417, 4
  %v419 = vadd.f32 %v417, %v418
  %v420 = vrot.slane %v419, 2
  %v421 = vadd.f32 %v419, %v420
  %v422 = vrot.slane %v421, 1
  %v423 = vadd.f32 %v421, %v422
  %v424 = vmul.f32 %v341, %v341
  %v425 = vmul.f32 %v343, %v343
  %v426 = vmul.f32 %v345, %v345
  %v427 = vmul.f32 %v347, %v347
  %v428 = vmul.f32 %v351, %v351
  %v429 = vmul.f32 %v353, %v353
  %v436 = vrot.slane %v424, 1
  %v437 = vrot.slane %v426, 1
  %v438 = vsel %vm395, %v436, %v437
  %v439 = vrot.slane %v425, 1
  %v440 = vrot.slane %v427, 1
  %v441 = vsel %vm395, %v439, %v440
  %v442 = vrot.slane %v428, 1
  %v443 = vsel %vm395, %v437, %v442
  %v444 = vrot.slane %v429, 1
  %v445 = vsel %vm395, %v440, %v444
  %v450 = vadd.f32 %v438, %v443
  %v451 = vrot.slane %v450, 4
  %v452 = vadd.f32 %v450, %v451
  %v453 = vrot.slane %v452, 2
  %v454 = vadd.f32 %v452, %v453
  %v455 = vrot.slane %v454, 1
  %v456 = vadd.f32 %v454, %v455
  %v457 = vadd.f32 %v441, %v445
  %v458 = vrot.slane %v457, 4
  %v459 = vadd.f32 %v457, %v458
  %v460 = vrot.slane %v459, 2
  %v461 = vadd.f32 %v459, %v460
  %v462 = vrot.slane %v461, 1
  %v463 = vadd.f32 %v461, %v462
  %vm464 = vcmask 1040384
  %v465 = vsel %vm464, %v363, %v381
  %v466 = vsel %vm464, %v370, %v388
  %vm467 = vcmask 1041408
  %v468 = vsel %vm467, %v465, %v416
  %v469 = vsel %vm467, %v466, %v423
  %vm470 = vcmask 1042432
  %v471 = vsel %vm470, %v468, %v456
  %v472 = vsel %vm470, %v469, %v463
  %v473 = vadd.f32 %v471, %v472
  %474 = vrot.lane.b32.xlu0 %v473, 64
  %v475 = vpop.permute.xlu0 %474
  %v476 = vlaneseq
  %v477 = vand.u32 %v476, 127
  %v478 = vadd.f32 %v473, %v475
  %479 = vrot.lane.b32.xlu0 %v478, 32
  %v480 = vpop.permute.xlu0 %479
  %v481 = vadd.f32 %v478, %v480
  %482 = vrot.lane.b32.xlu0 %v481, 16
  %v483 = vpop.permute.xlu0 %482
  %v484 = vadd.f32 %v481, %v483
  %v485 = vmul.f32 %v484, 0.00390625
  %v486 = vmul.f32 %v485, %v485
  %v488 = vrot.slane %v486, 7
  %v490 = vsub.f32 %v485, %v488
  %v491 = vmax.f32 %v490, 0.0
  %v492 = vlaneseq
  %v493 = vshrl.u32 %v492, 7
  %v494 = vsub.s32 0, %v493
  %v495 = vrot.slane %v485, %v494
  %v496 = vsub.f32 %v331, %v495
  %v497 = vsub.f32 %v333, %v495
  %v498 = vsub.f32 %v335, %v495
  %v499 = vsub.f32 %v337, %v495
  %v500 = vadd.f32 %v491, 1e-05
  %v501 = vrsqrt.pop %v500
  %v502 = vlaneseq
  %v503 = vshrl.u32 %v502, 7
  %v504 = vsub.s32 1, %v503
  %v505 = vrot.slane %v501, %v504
  %v506 = vmul.f32 %v496, %v505
  %v507 = vmul.f32 %v497, %v505
  %v508 = vmul.f32 %v498, %v505
  %v509 = vmul.f32 %v499, %v505
  %v510 = vlaneseq
  %v511 = vshrl.u32 %v510, 7
  %v512 = vsub.s32 2, %v511
  %v513 = vrot.slane %v485, %v512
  %v514 = vsub.f32 %v341, %v513
  %v515 = vsub.f32 %v343, %v513
  %v516 = vsub.f32 %v345, %v513
  %v517 = vsub.f32 %v347, %v513
  %v518 = vsub.f32 %v351, %v513
  %v519 = vsub.f32 %v353, %v513
  %v520 = vlaneseq
  %v521 = vshrl.u32 %v520, 7
  %v522 = vsub.s32 3, %v521
  %v523 = vrot.slane %v501, %v522
  %v524 = vmul.f32 %v514, %v523
  %v525 = vmul.f32 %v515, %v523
  %v526 = vmul.f32 %v516, %v523
  %v527 = vmul.f32 %v517, %v523
  %v528 = vmul.f32 %v518, %v523
  %v529 = vmul.f32 %v519, %v523
  %v536 = vrot.slane %v524, 1
  %v537 = vrot.slane %v526, 1
  %v538 = vsel %vm395, %v536, %v537
  %v539 = vrot.slane %v525, 1
  %v540 = vrot.slane %v527, 1
  %v541 = vsel %vm395, %v539, %v540
  %v542 = vrot.slane %v528, 1
  %v543 = vsel %vm395, %v537, %v542
  %v544 = vrot.slane %v529, 1
  %v545 = vsel %vm395, %v540, %v544
  %v550 = vld [vmem:[%s2] ss:$8 sm:$0x3]
  %s551 = scalar_lea.vmem %s2, 1
  %v552 = vld [vmem:[%s551] ss:$8 sm:$0x3]
  %s553 = scalar_lea.vmem %s2, 2
  %v554 = vld [vmem:[%s553] ss:$8 sm:$0x3]
  %v556 = vlaneseq
  %v557 = vshrl.u32 %v556, 7
  %v558 = vsub.s32 0, %v557
  %v559 = vrot.slane %v550, %v558
  %v560 = vlaneseq
  %v561 = vshrl.u32 %v560, 7
  %v562 = vsub.s32 1, %v561
  %v563 = vrot.slane %v550, %v562
  %v566 = vmul.f32 %v506, %v559
  %v567 = vmul.f32 %v507, %v563
  %v568 = vmul.f32 %v508, %v559
  %v569 = vmul.f32 %v509, %v563
  %v570 = vmul.f32 %v538, %v559
  %v571 = vmul.f32 %v541, %v563
  %v572 = vmul.f32 %v543, %v559
  %v573 = vmul.f32 %v545, %v563
  %v575 = vlaneseq
  %v576 = vshrl.u32 %v575, 7
  %v577 = vsub.s32 0, %v576
  %v578 = vrot.slane %v552, %v577
  %v579 = vlaneseq
  %v580 = vshrl.u32 %v579, 7
  %v581 = vsub.s32 1, %v580
  %v582 = vrot.slane %v552, %v581
  %v585 = vadd.f32 %v566, %v578
  %v586 = vadd.f32 %v567, %v582
  %v587 = vadd.f32 %v568, %v578
  %v588 = vadd.f32 %v569, %v582
  %v589 = vadd.f32 %v570, %v578
  %v590 = vadd.f32 %v571, %v582
  %v591 = vadd.f32 %v572, %v578
  %v592 = vadd.f32 %v573, %v582
  %vm593 = vcmp.ge.f32.partialorder %v585, 0.0
  %vm594 = vcmp.ge.f32.partialorder %v586, 0.0
  %vm595 = vcmp.ge.f32.partialorder %v587, 0.0
  %vm596 = vcmp.ge.f32.partialorder %v588, 0.0
  %vm597 = vcmp.ge.f32.partialorder %v589, 0.0
  %vm598 = vcmp.ge.f32.partialorder %v590, 0.0
  %vm599 = vcmp.ge.f32.partialorder %v591, 0.0
  %vm600 = vcmp.ge.f32.partialorder %v592, 0.0
  %v602 = vlaneseq
  %v603 = vshrl.u32 %v602, 7
  %v604 = vsub.s32 0, %v603
  %v605 = vrot.slane %v554, %v604
  %v606 = vlaneseq
  %v607 = vshrl.u32 %v606, 7
  %v608 = vsub.s32 1, %v607
  %v609 = vrot.slane %v554, %v608
  %v612 = vmul.f32 %v605, %v585
  %v613 = vmul.f32 %v609, %v586
  %v614 = vmul.f32 %v605, %v587
  %v615 = vmul.f32 %v609, %v588
  %v616 = vmul.f32 %v605, %v589
  %v617 = vmul.f32 %v609, %v590
  %v618 = vmul.f32 %v605, %v591
  %v619 = vmul.f32 %v609, %v592
  %v620 = vsel %vm593, %v585, %v612
  %v621 = vsel %vm594, %v586, %v613
  %v622 = vsel %vm595, %v587, %v614
  %v623 = vsel %vm596, %v588, %v615
  %v624 = vsel %vm597, %v589, %v616
  %v625 = vsel %vm598, %v590, %v617
  %v626 = vsel %vm599, %v591, %v618
  %v627 = vsel %vm600, %v592, %v619
  %v628 = vld [vmem:[%s1 + $0xd80] sm:$0xf]
  %v629 = vld [vmem:[%s1 + $0xd88] sm:$0xf]
  %v630 = vld [vmem:[%s1 + $0xd90] sm:$0xf]
  %v631 = vld [vmem:[%s1 + $0xd98] sm:$0xf]
  %v632 = vld [vmem:[%s1 + $0xda0] sm:$0xf]
  %v633 = vld [vmem:[%s1 + $0xda8] sm:$0xf]
  %v634 = vpack.c.bf16 %v622, %v620
  %v635 = vpack.c.bf16 %v623, %v621
  %v636 = vpack.c.bf16 %v626, %v624
  %v637 = vpack.c.bf16 %v627, %v625
  %v644 = vunpack.c.l.b16 %v628
  %v645 = vunpack.c.l.b16 %v629
  %v646 = vunpack.c.l.b16 %v630
  %v647 = vunpack.c.l.b16 %v631
  %v648 = vunpack.c.l.b16 %v632
  %v649 = vunpack.c.l.b16 %v633
  %v650 = vpack.c.b16 %v645, %v644
  %v651 = vpack.c.b16 %v647, %v646
  %v652 = vpack.c.b16 %v649, %v648
  %vm653 = vcmask 261120
  %v655 = vsel %vm653, %v650, 0
  %v658 = vsel %vm653, %v651, 0
  %v661 = vsel %vm653, %v652, 0
  %663 = vmatprep.subr.bf16.mxu0 %v635
  %664 = vmatpush1.bf16.msra.mxu0 %v634
  %665 = vmatprep.subr.bf16.mxu0 %v637
  %666 = vmatpush1.bf16.msra.mxu0 %v636
  %667 = vmatprep.subr.bf16.mxu0 0
  %668 = vmatpush1.bf16.msra.mxu0 0
  %669 = vmatprep.subr.bf16.mxu0 0
  %670 = vmatpush1.bf16.msra.mxu0 0
  %671 = vmatprep.subr.bf16.mxu0 0
  %672 = vmatpush1.bf16.msra.mxu0 0
  %673 = vmatprep.subr.bf16.mxu0 0
  %674 = vmatpush1.bf16.msra.mxu0 0
  %675 = vmatprep.subr.bf16.mxu0 0
  %676 = vmatpush1.bf16.msra.mxu0 0
  %677 = vmatprep.subr.bf16.mxu0 0
  %678 = vmatpush1.bf16.msra.mxu0 0
  %679 = vmatprep.subr.bf16.mxu0 0
  %680 = vmatpush1.bf16.msra.mxu0 0
  %681 = vmatprep.subr.bf16.mxu0 0
  %682 = vmatpush1.bf16.msra.mxu0 0
  %683 = vmatprep.subr.bf16.mxu0 0
  %684 = vmatpush1.bf16.msra.mxu0 0
  %685 = vmatprep.subr.bf16.mxu0 0
  %686 = vmatpush1.bf16.msra.mxu0 0
  %687 = vmatprep.subr.bf16.mxu0 0
  %688 = vmatpush1.bf16.msra.mxu0 0
  %689 = vmatprep.subr.bf16.mxu0 0
  %690 = vmatpush1.bf16.msra.mxu0 0
  %691 = vmatprep.subr.bf16.mxu0 0
  %692 = vmatpush1.bf16.msra.mxu0 0
  %693 = vmatprep.subr.bf16.mxu0 0
  %694 = vmatpush1.bf16.msra.mxu0 0
  %695 = vmatprep.mubr.bf16.mxu0 0
  %696 = vmatmul.mubr.bf16.gmra.mrb[0].mxu0 %v655
  %v697 = vpop.f32.mrb[0].mxu0
  %v698 = vadd.f32 0.0, %v697
  %v699 = vpop.f32.mrb[0].mxu0
  %v700 = vadd.f32 0.0, %v699
  %v701 = vpop.f32.mrb[0].mxu0
  %v702 = vadd.f32 0.0, %v701
  %v703 = vpop.f32.mrb[0].mxu0
  %v704 = vadd.f32 0.0, %v703
  %705 = vmatprep.mubr.bf16.mxu0 0
  %706 = vmatmul.mubr.bf16.gmra.mrb[0].mxu0 %v658
  %v707 = vpop.f32.mrb[0].mxu0
  %v708 = vadd.f32 0.0, %v707
  %v709 = vpop.f32.mrb[0].mxu0
  %v710 = vadd.f32 0.0, %v709
  %v711 = vpop.f32.mrb[0].mxu0
  %v712 = vadd.f32 0.0, %v711
  %v713 = vpop.f32.mrb[0].mxu0
  %v714 = vadd.f32 0.0, %v713
  %715 = vmatprep.mubr.bf16.mxu0 0
  %716 = vmatmul.mubr.bf16.gmra.mrb[0].mxu0 %v661
  %v717 = vpop.f32.mrb[0].mxu0
  %v718 = vadd.f32 0.0, %v717
  %v719 = vpop.f32.mrb[0].mxu0
  %v720 = vadd.f32 0.0, %v719
  %v721 = vpop.f32.mrb[0].mxu0
  %v722 = vadd.f32 0.0, %v721
  %v723 = vpop.f32.mrb[0].mxu0
  %v724 = vadd.f32 0.0, %v723
  %725 = vdwg.mxu0
  %726 = vst [vmem:[#allocation2] sm:$0xff] %v698
  %727 = vst [vmem:[#allocation2 + $0x8] sm:$0xff] %v700
  %728 = vst [vmem:[#allocation2 + $0x20] sm:$0xff] %v702
  %729 = vst [vmem:[#allocation2 + $0x28] sm:$0xff] %v704
  %730 = vst [vmem:[#allocation2 + $0x40] sm:$0x3] %v708
  %731 = vst [vmem:[#allocation2 + $0x48] sm:$0x3] %v710
  %732 = vst [vmem:[#allocation2 + $0x10] sm:$0xff] %v712
  %733 = vst [vmem:[#allocation2 + $0x18] sm:$0xff] %v714
  %734 = vst [vmem:[#allocation2 + $0x30] sm:$0xff] %v718
  %735 = vst [vmem:[#allocation2 + $0x38] sm:$0xff] %v720
  %736 = vst [vmem:[#allocation2 + $0x50] sm:$0x3] %v722
  %737 = vst [vmem:[#allocation2 + $0x58] sm:$0x3] %v724
  %v738 = vld [vmem:[#allocation2] sm:$0xff]
  %v739 = vld [vmem:[#allocation2 + $0x8] sm:$0xff]
  %v740 = vld [vmem:[#allocation2 + $0x10] sm:$0xff]
  %v741 = vld [vmem:[#allocation2 + $0x18] sm:$0xff]
  %v742 = vld [vmem:[#allocation2 + $0x20] sm:$0xff]
  %v743 = vld [vmem:[#allocation2 + $0x28] sm:$0xff]
  %v744 = vld [vmem:[#allocation2 + $0x30] sm:$0xff]
  %v745 = vld [vmem:[#allocation2 + $0x38] sm:$0xff]
  %v746 = vld [vmem:[#allocation2 + $0x40] sm:$0x3]
  %v747 = vld [vmem:[#allocation2 + $0x48] sm:$0x3]
  %v748 = vld [vmem:[#allocation2 + $0x50] sm:$0x3]
  %v749 = vld [vmem:[#allocation2 + $0x58] sm:$0x3]
  %v750 = vpack.c.bf16 %v742, %v738
  %v751 = vpack.c.bf16 %v743, %v739
  %v752 = vpack.c.bf16 %v744, %v740
  %v753 = vpack.c.bf16 %v745, %v741
  %v754 = vpack.c.bf16 %v746, %v746
  %v755 = vpack.c.bf16 %v747, %v747
  %v756 = vpack.c.bf16 %v748, %v748
  %v757 = vpack.c.bf16 %v749, %v749
  %v758 = vld [vmem:[#allocation2] sm:$0xfe]
  %v759 = vld [vmem:[#allocation2 + $0x8] sm:$0xfe]
  %v760 = vld [vmem:[#allocation2 + $0x10] sm:$0xfe]
  %v761 = vld [vmem:[#allocation2 + $0x18] sm:$0xfe]
  %v762 = vld [vmem:[#allocation2 + $0x40] sm:$0x7]
  %v763 = vld [vmem:[#allocation2 + $0x48] sm:$0x7]
  %v764 = vld [vmem:[#allocation2 + $0x50] sm:$0x7]
  %v765 = vld [vmem:[#allocation2 + $0x58] sm:$0x7]
  %v766 = vpack.c.bf16 %v742, %v758
  %v767 = vpack.c.bf16 %v743, %v759
  %v768 = vpack.c.bf16 %v744, %v760
  %v769 = vpack.c.bf16 %v745, %v761
  %v770 = vpack.c.bf16 %v762, %v762
  %v771 = vpack.c.bf16 %v763, %v763
  %v772 = vpack.c.bf16 %v764, %v764
  %v773 = vpack.c.bf16 %v765, %v765
  %v774 = vld [vmem:[%s1 + $0x100] sm:$0xff]
  %v775 = vld [vmem:[%s1 + $0x108] sm:$0xff]
  %v776 = vld [vmem:[%s1 + $0x110] sm:$0xff]
  %v777 = vld [vmem:[%s1 + $0x118] sm:$0xff]
  %v778 = vld [vmem:[%s1 + $0x120] sm:$0xff]
  %v779 = vld [vmem:[%s1 + $0x128] sm:$0xff]
  %v780 = vld [vmem:[%s1 + $0x130] sm:$0xff]
  %v781 = vld [vmem:[%s1 + $0x138] sm:$0xff]
  %v782 = vld [vmem:[%s1 + $0x140] sm:$0xff]
  %v783 = vld [vmem:[%s1 + $0x148] sm:$0xff]
  %v784 = vld [vmem:[%s1 + $0x150] sm:$0xff]
  %v785 = vld [vmem:[%s1 + $0x158] sm:$0xff]
  %v786 = vld [vmem:[%s1 + $0x160] sm:$0xff]
  %v787 = vld [vmem:[%s1 + $0x168] sm:$0xff]
  %v788 = vld [vmem:[%s1 + $0x170] sm:$0xff]
  %v789 = vld [vmem:[%s1 + $0x178] sm:$0xff]
  %v790 = vld [vmem:[%s1 + $0x180] sm:$0xff]
  %v791 = vld [vmem:[%s1 + $0x188] sm:$0xff]
  %v792 = vld [vmem:[%s1 + $0x190] sm:$0xff]
  %v793 = vld [vmem:[%s1 + $0x198] sm:$0xff]
  %v794 = vld [vmem:[%s1 + $0x1a0] sm:$0xff]
  %v795 = vld [vmem:[%s1 + $0x1a8] sm:$0xff]
  %v796 = vld [vmem:[%s1 + $0x1b0] sm:$0xff]
  %v797 = vld [vmem:[%s1 + $0x1b8] sm:$0xff]
  %v798 = vld [vmem:[%s1 + $0x1c0] sm:$0xff]
  %v799 = vld [vmem:[%s1 + $0x1c8] sm:$0xff]
  %v800 = vld [vmem:[%s1 + $0x1d0] sm:$0xff]
  %v801 = vld [vmem:[%s1 + $0x1d8] sm:$0xff]
  %v802 = vld [vmem:[%s1 + $0x1e0] sm:$0xff]
  %v803 = vld [vmem:[%s1 + $0x1e8] sm:$0xff]
  %v804 = vld [vmem:[%s1 + $0x1f0] sm:$0xff]
  %v805 = vld [vmem:[%s1 + $0x1f8] sm:$0xff]
  %v806 = vld [vmem:[%s1 + $0x200] sm:$0xff]
  %v807 = vld [vmem:[%s1 + $0x208] sm:$0xff]
  %v808 = vld [vmem:[%s1 + $0x210] sm:$0xff]
  %v809 = vld [vmem:[%s1 + $0x218] sm:$0xff]
  %v810 = vld [vmem:[%s1 + $0x220] sm:$0xff]
  %v811 = vld [vmem:[%s1 + $0x228] sm:$0xff]
  %v812 = vld [vmem:[%s1 + $0x230] sm:$0xff]
  %v813 = vld [vmem:[%s1 + $0x238] sm:$0xff]
  %v814 = vld [vmem:[%s1 + $0x240] sm:$0xff]
  %v815 = vld [vmem:[%s1 + $0x248] sm:$0xff]
  %v816 = vld [vmem:[%s1 + $0x250] sm:$0xff]
  %v817 = vld [vmem:[%s1 + $0x258] sm:$0xff]
  %v818 = vld [vmem:[%s1 + $0x260] sm:$0xff]
  %v819 = vld [vmem:[%s1 + $0x268] sm:$0xff]
  %v820 = vld [vmem:[%s1 + $0x270] sm:$0xff]
  %v821 = vld [vmem:[%s1 + $0x278] sm:$0xff]
  %v822 = vld [vmem:[%s1 + $0x280] sm:$0xff]
  %v823 = vld [vmem:[%s1 + $0x288] sm:$0xff]
  %v824 = vld [vmem:[%s1 + $0x290] sm:$0xff]
  %v825 = vld [vmem:[%s1 + $0x298] sm:$0xff]
  %v826 = vld [vmem:[%s1 + $0x2a0] sm:$0xff]
  %v827 = vld [vmem:[%s1 + $0x2a8] sm:$0xff]
  %v828 = vld [vmem:[%s1 + $0x2b0] sm:$0xff]
  %v829 = vld [vmem:[%s1 + $0x2b8] sm:$0xff]
  %v830 = vld [vmem:[%s1 + $0x2c0] sm:$0xff]
  %v831 = vld [vmem:[%s1 + $0x2c8] sm:$0xff]
  %v832 = vld [vmem:[%s1 + $0x2d0] sm:$0xff]
  %v833 = vld [vmem:[%s1 + $0x2d8] sm:$0xff]
  %v834 = vld [vmem:[%s1 + $0x2e0] sm:$0xff]
  %v835 = vld [vmem:[%s1 + $0x2e8] sm:$0xff]
  %v836 = vld [vmem:[%s1 + $0x2f0] sm:$0xff]
  %v837 = vld [vmem:[%s1 + $0x2f8] sm:$0xff]
  %v838 = vld [vmem:[%s1 + $0x300] sm:$0xff]
  %v839 = vld [vmem:[%s1 + $0x308] sm:$0xff]
  %v840 = vld [vmem:[%s1 + $0x310] sm:$0xff]
  %v841 = vld [vmem:[%s1 + $0x318] sm:$0xff]
  %v842 = vld [vmem:[%s1 + $0x320] sm:$0xff]
  %v843 = vld [vmem:[%s1 + $0x328] sm:$0xff]
  %v844 = vld [vmem:[%s1 + $0x330] sm:$0xff]
  %v845 = vld [vmem:[%s1 + $0x338] sm:$0xff]
  %v846 = vld [vmem:[%s1 + $0x340] sm:$0xff]
  %v847 = vld [vmem:[%s1 + $0x348] sm:$0xff]
  %v848 = vld [vmem:[%s1 + $0x350] sm:$0xff]
  %v849 = vld [vmem:[%s1 + $0x358] sm:$0xff]
  %v850 = vld [vmem:[%s1 + $0x360] sm:$0xff]
  %v851 = vld [vmem:[%s1 + $0x368] sm:$0xff]
  %v852 = vld [vmem:[%s1 + $0x370] sm:$0xff]
  %v853 = vld [vmem:[%s1 + $0x378] sm:$0xff]
  %v854 = vld [vmem:[%s1 + $0x380] sm:$0xff]
  %v855 = vld [vmem:[%s1 + $0x388] sm:$0xff]
  %v856 = vld [vmem:[%s1 + $0x390] sm:$0xff]
  %v857 = vld [vmem:[%s1 + $0x398] sm:$0xff]
  %v858 = vld [vmem:[%s1 + $0x3a0] sm:$0xff]
  %v859 = vld [vmem:[%s1 + $0x3a8] sm:$0xff]
  %v860 = vld [vmem:[%s1 + $0x3b0] sm:$0xff]
  %v861 = vld [vmem:[%s1 + $0x3b8] sm:$0xff]
  %v862 = vld [vmem:[%s1 + $0x3c0] sm:$0xff]
  %v863 = vld [vmem:[%s1 + $0x3c8] sm:$0xff]
  %v864 = vld [vmem:[%s1 + $0x3d0] sm:$0xff]
  %v865 = vld [vmem:[%s1 + $0x3d8] sm:$0xff]
  %v866 = vld [vmem:[%s1 + $0x3e0] sm:$0xff]
  %v867 = vld [vmem:[%s1 + $0x3e8] sm:$0xff]
  %v868 = vld [vmem:[%s1 + $0x3f0] sm:$0xff]
  %v869 = vld [vmem:[%s1 + $0x3f8] sm:$0xff]
  %v870 = vld [vmem:[%s1 + $0x400] sm:$0xff]
  %v871 = vld [vmem:[%s1 + $0x408] sm:$0xff]
  %v872 = vld [vmem:[%s1 + $0x410] sm:$0xff]
  %v873 = vld [vmem:[%s1 + $0x418] sm:$0xff]
  %v874 = vld [vmem:[%s1 + $0x420] sm:$0xff]
  %v875 = vld [vmem:[%s1 + $0x428] sm:$0xff]
  %v876 = vld [vmem:[%s1 + $0x430] sm:$0xff]
  %v877 = vld [vmem:[%s1 + $0x438] sm:$0xff]
  %v878 = vld [vmem:[%s1 + $0x440] sm:$0xff]
  %v879 = vld [vmem:[%s1 + $0x448] sm:$0xff]
  %v880 = vld [vmem:[%s1 + $0x450] sm:$0xff]
  %v881 = vld [vmem:[%s1 + $0x458] sm:$0xff]
  %v882 = vld [vmem:[%s1 + $0x460] sm:$0xff]
  %v883 = vld [vmem:[%s1 + $0x468] sm:$0xff]
  %v884 = vld [vmem:[%s1 + $0x470] sm:$0xff]
  %v885 = vld [vmem:[%s1 + $0x478] sm:$0xff]
  %v886 = vld [vmem:[%s1 + $0x480] sm:$0xff]
  %v887 = vld [vmem:[%s1 + $0x488] sm:$0xff]
  %v888 = vld [vmem:[%s1 + $0x490] sm:$0xff]
  %v889 = vld [vmem:[%s1 + $0x498] sm:$0xff]
  %v890 = vld [vmem:[%s1 + $0x4a0] sm:$0xff]
  %v891 = vld [vmem:[%s1 + $0x4a8] sm:$0xff]
  %v892 = vld [vmem:[%s1 + $0x4b0] sm:$0xff]
  %v893 = vld [vmem:[%s1 + $0x4b8] sm:$0xff]
  %v894 = vld [vmem:[%s1 + $0x4c0] sm:$0xff]
  %v895 = vld [vmem:[%s1 + $0x4c8] sm:$0xff]
  %v896 = vld [vmem:[%s1 + $0x4d0] sm:$0xff]
  %v897 = vld [vmem:[%s1 + $0x4d8] sm:$0xff]
  %v898 = vld [vmem:[%s1 + $0x4e0] sm:$0xff]
  %v899 = vld [vmem:[%s1 + $0x4e8] sm:$0xff]
  %v900 = vld [vmem:[%s1 + $0x4f0] sm:$0xff]
  %v901 = vld [vmem:[%s1 + $0x4f8] sm:$0xff]
  %vm902 = vsmask.f32 7424
  %v904 = vshrl.u32 %v766, 16
  %v906 = vshll.u32 %v766, 16
  %v908 = vrot.slane %v906, 1
  %v909 = vor.u32 %v904, %v908
  %v911 = vshll.u32 %v770, 16
  %v913 = vrot.slane %v911, 1
  %v914 = vsel %vm902, %v909, %v913
  %v916 = vshrl.u32 %v767, 16
  %v918 = vshll.u32 %v767, 16
  %v920 = vrot.slane %v918, 1
  %v921 = vor.u32 %v916, %v920
  %v923 = vshll.u32 %v771, 16
  %v925 = vrot.slane %v923, 1
  %v926 = vsel %vm902, %v921, %v925
  %v928 = vshrl.u32 %v768, 16
  %v930 = vshll.u32 %v768, 16
  %v932 = vrot.slane %v930, 1
  %v933 = vor.u32 %v928, %v932
  %v935 = vshll.u32 %v772, 16
  %v937 = vrot.slane %v935, 1
  %v938 = vsel %vm902, %v933, %v937
  %v940 = vshrl.u32 %v769, 16
  %v942 = vshll.u32 %v769, 16
  %v944 = vrot.slane %v942, 1
  %v945 = vor.u32 %v940, %v944
  %v947 = vshll.u32 %v773, 16
  %v949 = vrot.slane %v947, 1
  %v950 = vsel %vm902, %v945, %v949
  %v951 = vshrl.u32 %v770, 16
  %v953 = vor.u32 %v951, %v913
  %v954 = vshrl.u32 %v771, 16
  %v956 = vor.u32 %v954, %v925
  %v957 = vshrl.u32 %v772, 16
  %v959 = vor.u32 %v957, %v937
  %v960 = vshrl.u32 %v773, 16
  %v962 = vor.u32 %v960, %v949
  %v1035 = vunpack.c.l.b16 %v838
  %v1036 = vunpack.c.h.b16 %v838
  %v1037 = vunpack.c.l.b16 %v839
  %v1038 = vunpack.c.h.b16 %v839
  %v1039 = vunpack.c.l.b16 %v840
  %v1040 = vunpack.c.h.b16 %v840
  %v1041 = vunpack.c.l.b16 %v841
  %v1042 = vunpack.c.h.b16 %v841
  %v1043 = vunpack.c.l.b16 %v842
  %v1044 = vunpack.c.h.b16 %v842
  %v1045 = vunpack.c.l.b16 %v843
  %v1046 = vunpack.c.h.b16 %v843
  %v1047 = vunpack.c.l.b16 %v844
  %v1048 = vunpack.c.h.b16 %v844
  %v1049 = vunpack.c.l.b16 %v845
  %v1050 = vunpack.c.h.b16 %v845
  %v1051 = vunpack.c.l.b16 %v846
  %v1052 = vunpack.c.h.b16 %v846
  %v1053 = vunpack.c.l.b16 %v847
  %v1054 = vunpack.c.h.b16 %v847
  %v1055 = vunpack.c.l.b16 %v848
  %v1056 = vunpack.c.h.b16 %v848
  %v1057 = vunpack.c.l.b16 %v849
  %v1058 = vunpack.c.h.b16 %v849
  %v1059 = vunpack.c.l.b16 %v850
  %v1060 = vunpack.c.h.b16 %v850
  %v1061 = vunpack.c.l.b16 %v851
  %v1062 = vunpack.c.h.b16 %v851
  %v1063 = vunpack.c.l.b16 %v852
  %v1064 = vunpack.c.h.b16 %v852
  %v1065 = vunpack.c.l.b16 %v853
  %v1066 = vunpack.c.h.b16 %v853
  %v1067 = vunpack.c.l.b16 %v854
  %v1068 = vunpack.c.h.b16 %v854
  %v1069 = vunpack.c.l.b16 %v855
  %v1070 = vunpack.c.h.b16 %v855
  %v1071 = vunpack.c.l.b16 %v856
  %v1072 = vunpack.c.h.b16 %v856
  %v1073 = vunpack.c.l.b16 %v857
  %v1074 = vunpack.c.h.b16 %v857
  %v1075 = vunpack.c.l.b16 %v858
  %v1076 = vunpack.c.h.b16 %v858
  %v1077 = vunpack.c.l.b16 %v859
  %v1078 = vunpack.c.h.b16 %v859
  %v1079 = vunpack.c.l.b16 %v860
  %v1080 = vunpack.c.h.b16 %v860
  %v1081 = vunpack.c.l.b16 %v861
  %v1082 = vunpack.c.h.b16 %v861
  %v1083 = vunpack.c.l.b16 %v862
  %v1084 = vunpack.c.h.b16 %v862
  %v1085 = vunpack.c.l.b16 %v863
  %v1086 = vunpack.c.h.b16 %v863
  %v1087 = vunpack.c.l.b16 %v864
  %v1088 = vunpack.c.h.b16 %v864
  %v1089 = vunpack.c.l.b16 %v865
  %v1090 = vunpack.c.h.b16 %v865
  %v1091 = vunpack.c.l.b16 %v866
  %v1092 = vunpack.c.h.b16 %v866
  %v1093 = vunpack.c.l.b16 %v867
  %v1094 = vunpack.c.h.b16 %v867
  %v1095 = vunpack.c.l.b16 %v868
  %v1096 = vunpack.c.h.b16 %v868
  %v1097 = vunpack.c.l.b16 %v869
  %v1098 = vunpack.c.h.b16 %v869
  %v1099 = vunpack.c.l.b16 %v870
  %v1100 = vunpack.c.h.b16 %v870
  %v1101 = vunpack.c.l.b16 %v871
  %v1102 = vunpack.c.h.b16 %v871
  %v1103 = vunpack.c.l.b16 %v872
  %v1104 = vunpack.c.h.b16 %v872
  %v1105 = vunpack.c.l.b16 %v873
  %v1106 = vunpack.c.h.b16 %v873
  %v1107 = vunpack.c.l.b16 %v874
  %v1108 = vunpack.c.h.b16 %v874
  %v1109 = vunpack.c.l.b16 %v875
  %v1110 = vunpack.c.h.b16 %v875
  %v1111 = vunpack.c.l.b16 %v876
  %v1112 = vunpack.c.h.b16 %v876
  %v1113 = vunpack.c.l.b16 %v877
  %v1114 = vunpack.c.h.b16 %v877
  %v1115 = vunpack.c.l.b16 %v878
  %v1116 = vunpack.c.h.b16 %v878
  %v1117 = vunpack.c.l.b16 %v879
  %v1118 = vunpack.c.h.b16 %v879
  %v1119 = vunpack.c.l.b16 %v880
  %v1120 = vunpack.c.h.b16 %v880
  %v1121 = vunpack.c.l.b16 %v881
  %v1122 = vunpack.c.h.b16 %v881
  %v1123 = vunpack.c.l.b16 %v882
  %v1124 = vunpack.c.h.b16 %v882
  %v1125 = vunpack.c.l.b16 %v883
  %v1126 = vunpack.c.h.b16 %v883
  %v1127 = vunpack.c.l.b16 %v884
  %v1128 = vunpack.c.h.b16 %v884
  %v1129 = vunpack.c.l.b16 %v885
  %v1130 = vunpack.c.h.b16 %v885
  %v1131 = vunpack.c.l.b16 %v886
  %v1132 = vunpack.c.h.b16 %v886
  %v1133 = vunpack.c.l.b16 %v887
  %v1134 = vunpack.c.h.b16 %v887
  %v1135 = vunpack.c.l.b16 %v888
  %v1136 = vunpack.c.h.b16 %v888
  %v1137 = vunpack.c.l.b16 %v889
  %v1138 = vunpack.c.h.b16 %v889
  %v1139 = vunpack.c.l.b16 %v890
  %v1140 = vunpack.c.h.b16 %v890
  %v1141 = vunpack.c.l.b16 %v891
  %v1142 = vunpack.c.h.b16 %v891
  %v1143 = vunpack.c.l.b16 %v892
  %v1144 = vunpack.c.h.b16 %v892
  %v1145 = vunpack.c.l.b16 %v893
  %v1146 = vunpack.c.h.b16 %v893
  %v1147 = vunpack.c.l.b16 %v894
  %v1148 = vunpack.c.h.b16 %v894
  %v1149 = vunpack.c.l.b16 %v895
  %v1150 = vunpack.c.h.b16 %v895
  %v1151 = vunpack.c.l.b16 %v896
  %v1152 = vunpack.c.h.b16 %v896
  %v1153 = vunpack.c.l.b16 %v897
  %v1154 = vunpack.c.h.b16 %v897
  %v1155 = vunpack.c.l.b16 %v898
  %v1156 = vunpack.c.h.b16 %v898
  %v1157 = vunpack.c.l.b16 %v899
  %v1158 = vunpack.c.h.b16 %v899
  %v1159 = vunpack.c.l.b16 %v900
  %v1160 = vunpack.c.h.b16 %v900
  %v1161 = vunpack.c.l.b16 %v901
  %v1162 = vunpack.c.h.b16 %v901
  %v1163 = vpack.c.b16 %v1037, %v1035
  %v1164 = vpack.c.b16 %v1038, %v1036
  %v1165 = vpack.c.b16 %v1041, %v1039
  %v1166 = vpack.c.b16 %v1042, %v1040
  %v1167 = vpack.c.b16 %v1045, %v1043
  %v1168 = vpack.c.b16 %v1046, %v1044
  %v1169 = vpack.c.b16 %v1049, %v1047
  %v1170 = vpack.c.b16 %v1050, %v1048
  %v1171 = vpack.c.b16 %v1053, %v1051
  %v1172 = vpack.c.b16 %v1054, %v1052
  %v1173 = vpack.c.b16 %v1057, %v1055
  %v1174 = vpack.c.b16 %v1058, %v1056
  %v1175 = vpack.c.b16 %v1061, %v1059
  %v1176 = vpack.c.b16 %v1062, %v1060
  %v1177 = vpack.c.b16 %v1065, %v1063
  %v1178 = vpack.c.b16 %v1066, %v1064
  %v1179 = vpack.c.b16 %v1069, %v1067
  %v1180 = vpack.c.b16 %v1070, %v1068
  %v1181 = vpack.c.b16 %v1073, %v1071
  %v1182 = vpack.c.b16 %v1074, %v1072
  %v1183 = vpack.c.b16 %v1077, %v1075
  %v1184 = vpack.c.b16 %v1078, %v1076
  %v1185 = vpack.c.b16 %v1081, %v1079
  %v1186 = vpack.c.b16 %v1082, %v1080
  %v1187 = vpack.c.b16 %v1085, %v1083
  %v1188 = vpack.c.b16 %v1086, %v1084
  %v1189 = vpack.c.b16 %v1089, %v1087
  %v1190 = vpack.c.b16 %v1090, %v1088
  %v1191 = vpack.c.b16 %v1093, %v1091
  %v1192 = vpack.c.b16 %v1094, %v1092
  %v1193 = vpack.c.b16 %v1097, %v1095
  %v1194 = vpack.c.b16 %v1098, %v1096
  %v1195 = vpack.c.b16 %v1101, %v1099
  %v1196 = vpack.c.b16 %v1102, %v1100
  %v1197 = vpack.c.b16 %v1105, %v1103
  %v1198 = vpack.c.b16 %v1106, %v1104
  %v1199 = vpack.c.b16 %v1109, %v1107
  %v1200 = vpack.c.b16 %v1110, %v1108
  %v1201 = vpack.c.b16 %v1113, %v1111
  %v1202 = vpack.c.b16 %v1114, %v1112
  %v1203 = vpack.c.b16 %v1117, %v1115
  %v1204 = vpack.c.b16 %v1118, %v1116
  %v1205 = vpack.c.b16 %v1121, %v1119
  %v1206 = vpack.c.b16 %v1122, %v1120
  %v1207 = vpack.c.b16 %v1125, %v1123
  %v1208 = vpack.c.b16 %v1126, %v1124
  %v1209 = vpack.c.b16 %v1129, %v1127
  %v1210 = vpack.c.b16 %v1130, %v1128
  %v1211 = vpack.c.b16 %v1133, %v1131
  %v1212 = vpack.c.b16 %v1134, %v1132
  %v1213 = vpack.c.b16 %v1137, %v1135
  %v1214 = vpack.c.b16 %v1138, %v1136
  %v1215 = vpack.c.b16 %v1141, %v1139
  %v1216 = vpack.c.b16 %v1142, %v1140
  %v1217 = vpack.c.b16 %v1145, %v1143
  %v1218 = vpack.c.b16 %v1146, %v1144
  %v1219 = vpack.c.b16 %v1149, %v1147
  %v1220 = vpack.c.b16 %v1150, %v1148
  %v1221 = vpack.c.b16 %v1153, %v1151
  %v1222 = vpack.c.b16 %v1154, %v1152
  %v1223 = vpack.c.b16 %v1157, %v1155
  %v1224 = vpack.c.b16 %v1158, %v1156
  %v1225 = vpack.c.b16 %v1161, %v1159
  %v1226 = vpack.c.b16 %v1162, %v1160
  %1291 = vmatprep.subr.bf16.mxu0 %v1164
  %1292 = vmatpush1.bf16.msra.mxu0 %v1163
  %1293 = vmatprep.subr.bf16.mxu0 %v1166
  %1294 = vmatpush1.bf16.msra.mxu0 %v1165
  %1295 = vmatprep.subr.bf16.mxu0 %v1168
  %1296 = vmatpush1.bf16.msra.mxu0 %v1167
  %1297 = vmatprep.subr.bf16.mxu0 %v1170
  %1298 = vmatpush1.bf16.msra.mxu0 %v1169
  %1299 = vmatprep.subr.bf16.mxu0 %v1172
  %1300 = vmatpush1.bf16.msra.mxu0 %v1171
  %1301 = vmatprep.subr.bf16.mxu0 %v1174
  %1302 = vmatpush1.bf16.msra.mxu0 %v1173
  %1303 = vmatprep.subr.bf16.mxu0 %v1176
  %1304 = vmatpush1.bf16.msra.mxu0 %v1175
  %1305 = vmatprep.subr.bf16.mxu0 %v1178
  %1306 = vmatpush1.bf16.msra.mxu0 %v1177
  %1307 = vmatprep.subr.bf16.mxu0 %v1180
  %1308 = vmatpush1.bf16.msra.mxu0 %v1179
  %1309 = vmatprep.subr.bf16.mxu0 %v1182
  %1310 = vmatpush1.bf16.msra.mxu0 %v1181
  %1311 = vmatprep.subr.bf16.mxu0 %v1184
  %1312 = vmatpush1.bf16.msra.mxu0 %v1183
  %1313 = vmatprep.subr.bf16.mxu0 %v1186
  %1314 = vmatpush1.bf16.msra.mxu0 %v1185
  %1315 = vmatprep.subr.bf16.mxu0 %v1188
  %1316 = vmatpush1.bf16.msra.mxu0 %v1187
  %1317 = vmatprep.subr.bf16.mxu0 %v1190
  %1318 = vmatpush1.bf16.msra.mxu0 %v1189
  %1319 = vmatprep.subr.bf16.mxu0 %v1192
  %1320 = vmatpush1.bf16.msra.mxu0 %v1191
  %1321 = vmatprep.subr.bf16.mxu0 %v1194
  %1322 = vmatpush1.bf16.msra.mxu0 %v1193
  %1323 = vmatprep.mubr.bf16.mxu0 %v926
  %1324 = vmatmul.mubr.bf16.gmra.mrb[0].mxu0 %v914
  %v1325 = vpop.f32.mrb[0].mxu0
  %v1326 = vadd.f32 0.0, %v1325
  %v1327 = vpop.f32.mrb[0].mxu0
  %v1328 = vadd.f32 0.0, %v1327
  %v1329 = vpop.f32.mrb[0].mxu0
  %v1330 = vadd.f32 0.0, %v1329
  %v1331 = vpop.f32.mrb[0].mxu0
  %v1332 = vadd.f32 0.0, %v1331
  %1333 = vmatprep.mubr.bf16.mxu0 %v956
  %1334 = vmatmul.mubr.bf16.gmra.mrb[0].mxu0 %v953
  %v1335 = vpop.f32.mrb[0].mxu0
  %v1336 = vadd.f32 0.0, %v1335
  %v1337 = vpop.f32.mrb[0].mxu0
  %v1338 = vadd.f32 0.0, %v1337
  %v1339 = vpop.f32.mrb[0].mxu0
  %v1340 = vpop.f32.mrb[0].mxu0
  %1341 = vdwg.mxu0
  %1342 = vmatprep.subr.bf16.mxu0 %v1196
  %1343 = vmatpush1.bf16.msra.mxu0 %v1195
  %1344 = vmatprep.subr.bf16.mxu0 %v1198
  %1345 = vmatpush1.bf16.msra.mxu0 %v1197
  %1346 = vmatprep.subr.bf16.mxu0 %v1200
  %1347 = vmatpush1.bf16.msra.mxu0 %v1199
  %1348 = vmatprep.subr.bf16.mxu0 %v1202
  %1349 = vmatpush1.bf16.msra.mxu0 %v1201
  %1350 = vmatprep.subr.bf16.mxu0 %v1204
  %1351 = vmatpush1.bf16.msra.mxu0 %v1203
  %1352 = vmatprep.subr.bf16.mxu0 %v1206
  %1353 = vmatpush1.bf16.msra.mxu0 %v1205
  %1354 = vmatprep.subr.bf16.mxu0 %v1208
  %1355 = vmatpush1.bf16.msra.mxu0 %v1207
  %1356 = vmatprep.subr.bf16.mxu0 %v1210
  %1357 = vmatpush1.bf16.msra.mxu0 %v1209
  %1358 = vmatprep.subr.bf16.mxu0 %v1212
  %1359 = vmatpush1.bf16.msra.mxu0 %v1211
  %1360 = vmatprep.subr.bf16.mxu0 %v1214
  %1361 = vmatpush1.bf16.msra.mxu0 %v1213
  %1362 = vmatprep.subr.bf16.mxu0 %v1216
  %1363 = vmatpush1.bf16.msra.mxu0 %v1215
  %1364 = vmatprep.subr.bf16.mxu0 %v1218
  %1365 = vmatpush1.bf16.msra.mxu0 %v1217
  %1366 = vmatprep.subr.bf16.mxu0 %v1220
  %1367 = vmatpush1.bf16.msra.mxu0 %v1219
  %1368 = vmatprep.subr.bf16.mxu0 %v1222
  %1369 = vmatpush1.bf16.msra.mxu0 %v1221
  %1370 = vmatprep.subr.bf16.mxu0 %v1224
  %1371 = vmatpush1.bf16.msra.mxu0 %v1223
  %1372 = vmatprep.subr.bf16.mxu0 %v1226
  %1373 = vmatpush1.bf16.msra.mxu0 %v1225
  %1374 = vmatprep.mubr.bf16.mxu0 %v950
  %1375 = vmatmul.mubr.bf16.gmra.mrb[0].mxu0 %v938
  %v1376 = vpop.f32.mrb[0].mxu0
  %v1377 = vadd.f32 %v1326, %v1376
  %v1378 = vpop.f32.mrb[0].mxu0
  %v1379 = vadd.f32 %v1328, %v1378
  %v1380 = vpop.f32.mrb[0].mxu0
  %v1381 = vadd.f32 %v1330, %v1380
  %v1382 = vpop.f32.mrb[0].mxu0
  %v1383 = vadd.f32 %v1332, %v1382
  %1384 = vmatprep.mubr.bf16.mxu0 %v962
  %1385 = vmatmul.mubr.bf16.gmra.mrb[0].mxu0 %v959
  %v1386 = vpop.f32.mrb[0].mxu0
  %v1387 = vadd.f32 %v1336, %v1386
  %v1388 = vpop.f32.mrb[0].mxu0
  %v1389 = vadd.f32 %v1338, %v1388
  %v1390 = vpop.f32.mrb[0].mxu0
  %v1391 = vpop.f32.mrb[0].mxu0
  %1392 = vdwg.mxu0
  %v1457 = vunpack.c.l.b16 %v774
  %v1458 = vunpack.c.h.b16 %v774
  %v1459 = vunpack.c.l.b16 %v775
  %v1460 = vunpack.c.h.b16 %v775
  %v1461 = vunpack.c.l.b16 %v776
  %v1462 = vunpack.c.h.b16 %v776
  %v1463 = vunpack.c.l.b16 %v777
  %v1464 = vunpack.c.h.b16 %v777
  %v1465 = vunpack.c.l.b16 %v778
  %v1466 = vunpack.c.h.b16 %v778
  %v1467 = vunpack.c.l.b16 %v779
  %v1468 = vunpack.c.h.b16 %v779
  %v1469 = vunpack.c.l.b16 %v780
  %v1470 = vunpack.c.h.b16 %v780
  %v1471 = vunpack.c.l.b16 %v781
  %v1472 = vunpack.c.h.b16 %v781
  %v1473 = vunpack.c.l.b16 %v782
  %v1474 = vunpack.c.h.b16 %v782
  %v1475 = vunpack.c.l.b16 %v783
  %v1476 = vunpack.c.h.b16 %v783
  %v1477 = vunpack.c.l.b16 %v784
  %v1478 = vunpack.c.h.b16 %v784
  %v1479 = vunpack.c.l.b16 %v785
  %v1480 = vunpack.c.h.b16 %v785
  %v1481 = vunpack.c.l.b16 %v786
  %v1482 = vunpack.c.h.b16 %v786
  %v1483 = vunpack.c.l.b16 %v787
  %v1484 = vunpack.c.h.b16 %v787
  %v1485 = vunpack.c.l.b16 %v788
  %v1486 = vunpack.c.h.b16 %v788
  %v1487 = vunpack.c.l.b16 %v789
  %v1488 = vunpack.c.h.b16 %v789
  %v1489 = vunpack.c.l.b16 %v790
  %v1490 = vunpack.c.h.b16 %v790
  %v1491 = vunpack.c.l.b16 %v791
  %v1492 = vunpack.c.h.b16 %v791
  %v1493 = vunpack.c.l.b16 %v792
  %v1494 = vunpack.c.h.b16 %v792
  %v1495 = vunpack.c.l.b16 %v793
  %v1496 = vunpack.c.h.b16 %v793
  %v1497 = vunpack.c.l.b16 %v794
  %v1498 = vunpack.c.h.b16 %v794
  %v1499 = vunpack.c.l.b16 %v795
  %v1500 = vunpack.c.h.b16 %v795
  %v1501 = vunpack.c.l.b16 %v796
  %v1502 = vunpack.c.h.b16 %v796
  %v1503 = vunpack.c.l.b16 %v797
  %v1504 = vunpack.c.h.b16 %v797
  %v1505 = vunpack.c.l.b16 %v798
  %v1506 = vunpack.c.h.b16 %v798
  %v1507 = vunpack.c.l.b16 %v799
  %v1508 = vunpack.c.h.b16 %v799
  %v1509 = vunpack.c.l.b16 %v800
  %v1510 = vunpack.c.h.b16 %v800
  %v1511 = vunpack.c.l.b16 %v801
  %v1512 = vunpack.c.h.b16 %v801
  %v1513 = vunpack.c.l.b16 %v802
  %v1514 = vunpack.c.h.b16 %v802
  %v1515 = vunpack.c.l.b16 %v803
  %v1516 = vunpack.c.h.b16 %v803
  %v1517 = vunpack.c.l.b16 %v804
  %v1518 = vunpack.c.h.b16 %v804
  %v1519 = vunpack.c.l.b16 %v805
  %v1520 = vunpack.c.h.b16 %v805
  %v1521 = vunpack.c.l.b16 %v806
  %v1522 = vunpack.c.h.b16 %v806
  %v1523 = vunpack.c.l.b16 %v807
  %v1524 = vunpack.c.h.b16 %v807
  %v1525 = vunpack.c.l.b16 %v808
  %v1526 = vunpack.c.h.b16 %v808
  %v1527 = vunpack.c.l.b16 %v809
  %v1528 = vunpack.c.h.b16 %v809
  %v1529 = vunpack.c.l.b16 %v810
  %v1530 = vunpack.c.h.b16 %v810
  %v1531 = vunpack.c.l.b16 %v811
  %v1532 = vunpack.c.h.b16 %v811
  %v1533 = vunpack.c.l.b16 %v812
  %v1534 = vunpack.c.h.b16 %v812
  %v1535 = vunpack.c.l.b16 %v813
  %v1536 = vunpack.c.h.b16 %v813
  %v1537 = vunpack.c.l.b16 %v814
  %v1538 = vunpack.c.h.b16 %v814
  %v1539 = vunpack.c.l.b16 %v815
  %v1540 = vunpack.c.h.b16 %v815
  %v1541 = vunpack.c.l.b16 %v816
  %v1542 = vunpack.c.h.b16 %v816
  %v1543 = vunpack.c.l.b16 %v817
  %v1544 = vunpack.c.h.b16 %v817
  %v1545 = vunpack.c.l.b16 %v818
  %v1546 = vunpack.c.h.b16 %v818
  %v1547 = vunpack.c.l.b16 %v819
  %v1548 = vunpack.c.h.b16 %v819
  %v1549 = vunpack.c.l.b16 %v820
  %v1550 = vunpack.c.h.b16 %v820
  %v1551 = vunpack.c.l.b16 %v821
  %v1552 = vunpack.c.h.b16 %v821
  %v1553 = vunpack.c.l.b16 %v822
  %v1554 = vunpack.c.h.b16 %v822
  %v1555 = vunpack.c.l.b16 %v823
  %v1556 = vunpack.c.h.b16 %v823
  %v1557 = vunpack.c.l.b16 %v824
  %v1558 = vunpack.c.h.b16 %v824
  %v1559 = vunpack.c.l.b16 %v825
  %v1560 = vunpack.c.h.b16 %v825
  %v1561 = vunpack.c.l.b16 %v826
  %v1562 = vunpack.c.h.b16 %v826
  %v1563 = vunpack.c.l.b16 %v827
  %v1564 = vunpack.c.h.b16 %v827
  %v1565 = vunpack.c.l.b16 %v828
  %v1566 = vunpack.c.h.b16 %v828
  %v1567 = vunpack.c.l.b16 %v829
  %v1568 = vunpack.c.h.b16 %v829
  %v1569 = vunpack.c.l.b16 %v830
  %v1570 = vunpack.c.h.b16 %v830
  %v1571 = vunpack.c.l.b16 %v831
  %v1572 = vunpack.c.h.b16 %v831
  %v1573 = vunpack.c.l.b16 %v832
  %v1574 = vunpack.c.h.b16 %v832
  %v1575 = vunpack.c.l.b16 %v833
  %v1576 = vunpack.c.h.b16 %v833
  %v1577 = vunpack.c.l.b16 %v834
  %v1578 = vunpack.c.h.b16 %v834
  %v1579 = vunpack.c.l.b16 %v835
  %v1580 = vunpack.c.h.b16 %v835
  %v1581 = vunpack.c.l.b16 %v836
  %v1582 = vunpack.c.h.b16 %v836
  %v1583 = vunpack.c.l.b16 %v837
  %v1584 = vunpack.c.h.b16 %v837
  %v1585 = vpack.c.b16 %v1459, %v1457
  %v1586 = vpack.c.b16 %v1460, %v1458
  %v1587 = vpack.c.b16 %v1463, %v1461
  %v1588 = vpack.c.b16 %v1464, %v1462
  %v1589 = vpack.c.b16 %v1467, %v1465
  %v1590 = vpack.c.b16 %v1468, %v1466
  %v1591 = vpack.c.b16 %v1471, %v1469
  %v1592 = vpack.c.b16 %v1472, %v1470
  %v1593 = vpack.c.b16 %v1475, %v1473
  %v1594 = vpack.c.b16 %v1476, %v1474
  %v1595 = vpack.c.b16 %v1479, %v1477
  %v1596 = vpack.c.b16 %v1480, %v1478
  %v1597 = vpack.c.b16 %v1483, %v1481
  %v1598 = vpack.c.b16 %v1484, %v1482
  %v1599 = vpack.c.b16 %v1487, %v1485
  %v1600 = vpack.c.b16 %v1488, %v1486
  %v1601 = vpack.c.b16 %v1491, %v1489
  %v1602 = vpack.c.b16 %v1492, %v1490
  %v1603 = vpack.c.b16 %v1495, %v1493
  %v1604 = vpack.c.b16 %v1496, %v1494
  %v1605 = vpack.c.b16 %v1499, %v1497
  %v1606 = vpack.c.b16 %v1500, %v1498
  %v1607 = vpack.c.b16 %v1503, %v1501
  %v1608 = vpack.c.b16 %v1504, %v1502
  %v1609 = vpack.c.b16 %v1507, %v1505
  %v1610 = vpack.c.b16 %v1508, %v1506
  %v1611 = vpack.c.b16 %v1511, %v1509
  %v1612 = vpack.c.b16 %v1512, %v1510
  %v1613 = vpack.c.b16 %v1515, %v1513
  %v1614 = vpack.c.b16 %v1516, %v1514
  %v1615 = vpack.c.b16 %v1519, %v1517
  %v1616 = vpack.c.b16 %v1520, %v1518
  %v1617 = vpack.c.b16 %v1523, %v1521
  %v1618 = vpack.c.b16 %v1524, %v1522
  %v1619 = vpack.c.b16 %v1527, %v1525
  %v1620 = vpack.c.b16 %v1528, %v1526
  %v1621 = vpack.c.b16 %v1531, %v1529
  %v1622 = vpack.c.b16 %v1532, %v1530
  %v1623 = vpack.c.b16 %v1535, %v1533
  %v1624 = vpack.c.b16 %v1536, %v1534
  %v1625 = vpack.c.b16 %v1539, %v1537
  %v1626 = vpack.c.b16 %v1540, %v1538
  %v1627 = vpack.c.b16 %v1543, %v1541
  %v1628 = vpack.c.b16 %v1544, %v1542
  %v1629 = vpack.c.b16 %v1547, %v1545
  %v1630 = vpack.c.b16 %v1548, %v1546
  %v1631 = vpack.c.b16 %v1551, %v1549
  %v1632 = vpack.c.b16 %v1552, %v1550
  %v1633 = vpack.c.b16 %v1555, %v1553
  %v1634 = vpack.c.b16 %v1556, %v1554
  %v1635 = vpack.c.b16 %v1559, %v1557
  %v1636 = vpack.c.b16 %v1560, %v1558
  %v1637 = vpack.c.b16 %v1563, %v1561
  %v1638 = vpack.c.b16 %v1564, %v1562
  %v1639 = vpack.c.b16 %v1567, %v1565
  %v1640 = vpack.c.b16 %v1568, %v1566
  %v1641 = vpack.c.b16 %v1571, %v1569
  %v1642 = vpack.c.b16 %v1572, %v1570
  %v1643 = vpack.c.b16 %v1575, %v1573
  %v1644 = vpack.c.b16 %v1576, %v1574
  %v1645 = vpack.c.b16 %v1579, %v1577
  %v1646 = vpack.c.b16 %v1580, %v1578
  %v1647 = vpack.c.b16 %v1583, %v1581
  %v1648 = vpack.c.b16 %v1584, %v1582
  %1713 = vmatprep.subr.bf16.mxu0 %v1586
  %1714 = vmatpush1.bf16.msra.mxu0 %v1585
  %1715 = vmatprep.subr.bf16.mxu0 %v1588
  %1716 = vmatpush1.bf16.msra.mxu0 %v1587
  %1717 = vmatprep.subr.bf16.mxu0 %v1590
  %1718 = vmatpush1.bf16.msra.mxu0 %v1589
  %1719 = vmatprep.subr.bf16.mxu0 %v1592
  %1720 = vmatpush1.bf16.msra.mxu0 %v1591
  %1721 = vmatprep.subr.bf16.mxu0 %v1594
  %1722 = vmatpush1.bf16.msra.mxu0 %v1593
  %1723 = vmatprep.subr.bf16.mxu0 %v1596
  %1724 = vmatpush1.bf16.msra.mxu0 %v1595
  %1725 = vmatprep.subr.bf16.mxu0 %v1598
  %1726 = vmatpush1.bf16.msra.mxu0 %v1597
  %1727 = vmatprep.subr.bf16.mxu0 %v1600
  %1728 = vmatpush1.bf16.msra.mxu0 %v1599
  %1729 = vmatprep.subr.bf16.mxu0 %v1602
  %1730 = vmatpush1.bf16.msra.mxu0 %v1601
  %1731 = vmatprep.subr.bf16.mxu0 %v1604
  %1732 = vmatpush1.bf16.msra.mxu0 %v1603
  %1733 = vmatprep.subr.bf16.mxu0 %v1606
  %1734 = vmatpush1.bf16.msra.mxu0 %v1605
  %1735 = vmatprep.subr.bf16.mxu0 %v1608
  %1736 = vmatpush1.bf16.msra.mxu0 %v1607
  %1737 = vmatprep.subr.bf16.mxu0 %v1610
  %1738 = vmatpush1.bf16.msra.mxu0 %v1609
  %1739 = vmatprep.subr.bf16.mxu0 %v1612
  %1740 = vmatpush1.bf16.msra.mxu0 %v1611
  %1741 = vmatprep.subr.bf16.mxu0 %v1614
  %1742 = vmatpush1.bf16.msra.mxu0 %v1613
  %1743 = vmatprep.subr.bf16.mxu0 %v1616
  %1744 = vmatpush1.bf16.msra.mxu0 %v1615
  %1745 = vmatprep.mubr.bf16.mxu0 %v751
  %1746 = vmatmul.mubr.bf16.gmra.mrb[0].mxu0 %v750
  %v1747 = vpop.f32.mrb[0].mxu0
  %v1748 = vadd.f32 %v1377, %v1747
  %v1749 = vpop.f32.mrb[0].mxu0
  %v1750 = vadd.f32 %v1379, %v1749
  %v1751 = vpop.f32.mrb[0].mxu0
  %v1752 = vadd.f32 %v1381, %v1751
  %v1753 = vpop.f32.mrb[0].mxu0
  %v1754 = vadd.f32 %v1383, %v1753
  %1755 = vmatprep.mubr.bf16.mxu0 %v755
  %1756 = vmatmul.mubr.bf16.gmra.mrb[0].mxu0 %v754
  %v1757 = vpop.f32.mrb[0].mxu0
  %v1758 = vadd.f32 %v1387, %v1757
  %v1759 = vpop.f32.mrb[0].mxu0
  %v1760 = vadd.f32 %v1389, %v1759
  %v1761 = vpop.f32.mrb[0].mxu0
  %v1762 = vpop.f32.mrb[0].mxu0
  %1763 = vdwg.mxu0
  %1764 = vmatprep.subr.bf16.mxu0 %v1618
  %1765 = vmatpush1.bf16.msra.mxu0 %v1617
  %1766 = vmatprep.subr.bf16.mxu0 %v1620
  %1767 = vmatpush1.bf16.msra.mxu0 %v1619
  %1768 = vmatprep.subr.bf16.mxu0 %v1622
  %1769 = vmatpush1.bf16.msra.mxu0 %v1621
  %1770 = vmatprep.subr.bf16.mxu0 %v1624
  %1771 = vmatpush1.bf16.msra.mxu0 %v1623
  %1772 = vmatprep.subr.bf16.mxu0 %v1626
  %1773 = vmatpush1.bf16.msra.mxu0 %v1625
  %1774 = vmatprep.subr.bf16.mxu0 %v1628
  %1775 = vmatpush1.bf16.msra.mxu0 %v1627
  %1776 = vmatprep.subr.bf16.mxu0 %v1630
  %1777 = vmatpush1.bf16.msra.mxu0 %v1629
  %1778 = vmatprep.subr.bf16.mxu0 %v1632
  %1779 = vmatpush1.bf16.msra.mxu0 %v1631
  %1780 = vmatprep.subr.bf16.mxu0 %v1634
  %1781 = vmatpush1.bf16.msra.mxu0 %v1633
  %1782 = vmatprep.subr.bf16.mxu0 %v1636
  %1783 = vmatpush1.bf16.msra.mxu0 %v1635
  %1784 = vmatprep.subr.bf16.mxu0 %v1638
  %1785 = vmatpush1.bf16.msra.mxu0 %v1637
  %1786 = vmatprep.subr.bf16.mxu0 %v1640
  %1787 = vmatpush1.bf16.msra.mxu0 %v1639
  %1788 = vmatprep.subr.bf16.mxu0 %v1642
  %1789 = vmatpush1.bf16.msra.mxu0 %v1641
  %1790 = vmatprep.subr.bf16.mxu0 %v1644
  %1791 = vmatpush1.bf16.msra.mxu0 %v1643
  %1792 = vmatprep.subr.bf16.mxu0 %v1646
  %1793 = vmatpush1.bf16.msra.mxu0 %v1645
  %1794 = vmatprep.subr.bf16.mxu0 %v1648
  %1795 = vmatpush1.bf16.msra.mxu0 %v1647
  %1796 = vmatprep.mubr.bf16.mxu0 %v753
  %1797 = vmatmul.mubr.bf16.gmra.mrb[0].mxu0 %v752
  %v1798 = vpop.f32.mrb[0].mxu0
  %v1799 = vadd.f32 %v1748, %v1798
  %v1800 = vpop.f32.mrb[0].mxu0
  %v1801 = vadd.f32 %v1750, %v1800
  %v1802 = vpop.f32.mrb[0].mxu0
  %v1803 = vadd.f32 %v1752, %v1802
  %v1804 = vpop.f32.mrb[0].mxu0
  %v1805 = vadd.f32 %v1754, %v1804
  %1806 = vmatprep.mubr.bf16.mxu0 %v757
  %1807 = vmatmul.mubr.bf16.gmra.mrb[0].mxu0 %v756
  %v1808 = vpop.f32.mrb[0].mxu0
  %v1809 = vadd.f32 %v1758, %v1808
  %v1810 = vpop.f32.mrb[0].mxu0
  %v1811 = vadd.f32 %v1760, %v1810
  %v1812 = vpop.f32.mrb[0].mxu0
  %v1813 = vpop.f32.mrb[0].mxu0
  %1814 = vdwg.mxu0
  %v1815 = vrot.slane %v1799, 4
  %v1816 = vadd.f32 %v1799, %v1815
  %v1817 = vrot.slane %v1816, 2
  %v1818 = vadd.f32 %v1816, %v1817
  %v1819 = vrot.slane %v1818, 1
  %v1820 = vadd.f32 %v1818, %v1819
  %v1821 = vrot.slane %v1801, 4
  %v1822 = vadd.f32 %v1801, %v1821
  %v1823 = vrot.slane %v1822, 2
  %v1824 = vadd.f32 %v1822, %v1823
  %v1825 = vrot.slane %v1824, 1
  %v1826 = vadd.f32 %v1824, %v1825
  %v1827 = vmul.f32 %v1799, %v1799
  %v1828 = vmul.f32 %v1801, %v1801
  %v1829 = vrot.slane %v1827, 4
  %v1830 = vadd.f32 %v1827, %v1829
  %v1831 = vrot.slane %v1830, 2
  %v1832 = vadd.f32 %v1830, %v1831
  %v1833 = vrot.slane %v1832, 1
  %v1834 = vadd.f32 %v1832, %v1833
  %v1835 = vrot.slane %v1828, 4
  %v1836 = vadd.f32 %v1828, %v1835
  %v1837 = vrot.slane %v1836, 2
  %v1838 = vadd.f32 %v1836, %v1837
  %v1839 = vrot.slane %v1838, 1
  %v1840 = vadd.f32 %v1838, %v1839
  %v1845 = vrot.slane %v1803, 1
  %v1846 = vrot.slane %v1809, 1
  %v1847 = vsel %vm395, %v1845, %v1846
  %v1848 = vrot.slane %v1805, 1
  %v1849 = vrot.slane %v1811, 1
  %v1850 = vsel %vm395, %v1848, %v1849
  %v1853 = vrot.slane %v1847, 4
  %v1854 = vadd.f32 %v1847, %v1853
  %v1855 = vrot.slane %v1854, 2
  %v1856 = vadd.f32 %v1854, %v1855
  %v1857 = vrot.slane %v1856, 1
  %v1858 = vadd.f32 %v1856, %v1857
  %v1859 = vrot.slane %v1850, 4
  %v1860 = vadd.f32 %v1850, %v1859
  %v1861 = vrot.slane %v1860, 2
  %v1862 = vadd.f32 %v1860, %v1861
  %v1863 = vrot.slane %v1862, 1
  %v1864 = vadd.f32 %v1862, %v1863
  %v1865 = vmul.f32 %v1803, %v1803
  %v1866 = vmul.f32 %v1805, %v1805
  %v1867 = vmul.f32 %v1809, %v1809
  %v1868 = vmul.f32 %v1811, %v1811
  %v1873 = vrot.slane %v1865, 1
  %v1874 = vrot.slane %v1867, 1
  %v1875 = vsel %vm395, %v1873, %v1874
  %v1876 = vrot.slane %v1866, 1
  %v1877 = vrot.slane %v1868, 1
  %v1878 = vsel %vm395, %v1876, %v1877
  %v1881 = vrot.slane %v1875, 4
  %v1882 = vadd.f32 %v1875, %v1881
  %v1883 = vrot.slane %v1882, 2
  %v1884 = vadd.f32 %v1882, %v1883
  %v1885 = vrot.slane %v1884, 1
  %v1886 = vadd.f32 %v1884, %v1885
  %v1887 = vrot.slane %v1878, 4
  %v1888 = vadd.f32 %v1878, %v1887
  %v1889 = vrot.slane %v1888, 2
  %v1890 = vadd.f32 %v1888, %v1889
  %v1891 = vrot.slane %v1890, 1
  %v1892 = vadd.f32 %v1890, %v1891
  %v1893 = vsel %vm464, %v1820, %v1834
  %v1894 = vsel %vm464, %v1826, %v1840
  %v1895 = vsel %vm467, %v1893, %v1858
  %v1896 = vsel %vm467, %v1894, %v1864
  %v1897 = vsel %vm470, %v1895, %v1886
  %v1898 = vsel %vm470, %v1896, %v1892
  %v1899 = vadd.f32 %v1897, %v1898
  %1900 = vrot.lane.b32.xlu0 %v1899, 64
  %v1901 = vpop.permute.xlu0 %1900
  %v1902 = vadd.f32 %v1899, %v1901
  %1903 = vrot.lane.b32.xlu0 %v1902, 32
  %v1904 = vpop.permute.xlu0 %1903
  %v1905 = vadd.f32 %v1902, %v1904
  %v1906 = vmul.f32 %v1905, 0.015625
  %v1907 = vmul.f32 %v1906, %v1906
  %v1909 = vrot.slane %v1907, 7
  %v1911 = vsub.f32 %v1906, %v1909
  %v1912 = vmax.f32 %v1911, 0.0
  %v1913 = vlaneseq
  %v1914 = vshrl.u32 %v1913, 7
  %v1915 = vsub.s32 0, %v1914
  %v1916 = vrot.slane %v1906, %v1915
  %v1917 = vsub.f32 %v1799, %v1916
  %v1918 = vsub.f32 %v1801, %v1916
  %v1919 = vadd.f32 %v1912, 1e-05
  %v1920 = vrsqrt.pop %v1919
  %v1921 = vlaneseq
  %v1922 = vshrl.u32 %v1921, 7
  %v1923 = vsub.s32 1, %v1922
  %v1924 = vrot.slane %v1920, %v1923
  %v1925 = vmul.f32 %v1917, %v1924
  %v1926 = vmul.f32 %v1918, %v1924
  %v1927 = vlaneseq
  %v1928 = vshrl.u32 %v1927, 7
  %v1929 = vsub.s32 2, %v1928
  %v1930 = vrot.slane %v1906, %v1929
  %v1931 = vsub.f32 %v1803, %v1930
  %v1932 = vsub.f32 %v1805, %v1930
  %v1933 = vsub.f32 %v1809, %v1930
  %v1934 = vsub.f32 %v1811, %v1930
  %v1935 = vlaneseq
  %v1936 = vshrl.u32 %v1935, 7
  %v1937 = vsub.s32 3, %v1936
  %v1938 = vrot.slane %v1920, %v1937
  %v1939 = vmul.f32 %v1931, %v1938
  %v1940 = vmul.f32 %v1932, %v1938
  %v1941 = vmul.f32 %v1933, %v1938
  %v1942 = vmul.f32 %v1934, %v1938
  %v1947 = vrot.slane %v1939, 1
  %v1948 = vrot.slane %v1941, 1
  %v1949 = vsel %vm395, %v1947, %v1948
  %v1950 = vrot.slane %v1940, 1
  %v1951 = vrot.slane %v1942, 1
  %v1952 = vsel %vm395, %v1950, %v1951
  %s1955 = scalar_lea.vmem %s2, 16
  %v1956 = vld [vmem:[%s1955] ss:$8 sm:$0x3]
  %s1957 = scalar_lea.vmem %s2, 17
  %v1958 = vld [vmem:[%s1957] ss:$8 sm:$0x3]
  %s1959 = scalar_lea.vmem %s2, 18
  %v1960 = vld [vmem:[%s1959] ss:$8 sm:$0x3]
  %v1962 = vlaneseq
  %v1963 = vshrl.u32 %v1962, 7
  %v1964 = vsub.s32 0, %v1963
  %v1965 = vrot.slane %v1956, %v1964
  %v1966 = vlaneseq
  %v1967 = vshrl.u32 %v1966, 7
  %v1968 = vsub.s32 1, %v1967
  %v1969 = vrot.slane %v1956, %v1968
  %v1972 = vmul.f32 %v1925, %v1965
  %v1973 = vmul.f32 %v1926, %v1969
  %v1974 = vmul.f32 %v1949, %v1965
  %v1975 = vmul.f32 %v1952, %v1969
  %v1977 = vlaneseq
  %v1978 = vshrl.u32 %v1977, 7
  %v1979 = vsub.s32 0, %v1978
  %v1980 = vrot.slane %v1958, %v1979
  %v1981 = vlaneseq
  %v1982 = vshrl.u32 %v1981, 7
  %v1983 = vsub.s32 1, %v1982
  %v1984 = vrot.slane %v1958, %v1983
  %v1987 = vadd.f32 %v1972, %v1980
  %v1988 = vadd.f32 %v1973, %v1984
  %v1989 = vadd.f32 %v1974, %v1980
  %v1990 = vadd.f32 %v1975, %v1984
  %vm1991 = vcmp.ge.f32.partialorder %v1987, 0.0
  %vm1992 = vcmp.ge.f32.partialorder %v1988, 0.0
  %vm1993 = vcmp.ge.f32.partialorder %v1989, 0.0
  %vm1994 = vcmp.ge.f32.partialorder %v1990, 0.0
  %v1996 = vlaneseq
  %v1997 = vshrl.u32 %v1996, 7
  %v1998 = vsub.s32 0, %v1997
  %v1999 = vrot.slane %v1960, %v1998
  %v2000 = vlaneseq
  %v2001 = vshrl.u32 %v2000, 7
  %v2002 = vsub.s32 1, %v2001
  %v2003 = vrot.slane %v1960, %v2002
  %v2006 = vmul.f32 %v1999, %v1987
  %v2007 = vmul.f32 %v2003, %v1988
  %v2008 = vmul.f32 %v1999, %v1989
  %v2009 = vmul.f32 %v2003, %v1990
  %v2010 = vsel %vm1991, %v1987, %v2006
  %v2011 = vsel %vm1992, %v1988, %v2007
  %v2012 = vsel %vm1993, %v1989, %v2008
  %v2013 = vsel %vm1994, %v1990, %v2009
  %v2014 = vld [vmem:[%s1 + $0xdb0] sm:$0xf]
  %v2015 = vld [vmem:[%s1 + $0xdb8] sm:$0xf]
  %v2016 = vld [vmem:[%s1 + $0xdc0] sm:$0xf]
  %v2017 = vld [vmem:[%s1 + $0xdc8] sm:$0xf]
  %v2018 = vpack.c.bf16 %v2012, %v2010
  %v2019 = vpack.c.bf16 %v2013, %v2011
  %v2024 = vunpack.c.l.b16 %v2014
  %v2025 = vunpack.c.l.b16 %v2015
  %v2026 = vunpack.c.l.b16 %v2016
  %v2027 = vunpack.c.l.b16 %v2017
  %v2028 = vpack.c.b16 %v2025, %v2024
  %v2029 = vpack.c.b16 %v2027, %v2026
  %vm2030 = vcmask 130048
  %v2032 = vsel %vm2030, %v2028, 0
  %v2035 = vsel %vm2030, %v2029, 0
  %2037 = vmatprep.subr.bf16.mxu0 %v2019
  %2038 = vmatpush1.bf16.msra.mxu0 %v2018
  %2039 = vmatprep.subr.bf16.mxu0 0
  %2040 = vmatpush1.bf16.msra.mxu0 0
  %2041 = vmatprep.subr.bf16.mxu0 0
  %2042 = vmatpush1.bf16.msra.mxu0 0
  %2043 = vmatprep.subr.bf16.mxu0 0
  %2044 = vmatpush1.bf16.msra.mxu0 0
  %2045 = vmatprep.subr.bf16.mxu0 0
  %2046 = vmatpush1.bf16.msra.mxu0 0
  %2047 = vmatprep.subr.bf16.mxu0 0
  %2048 = vmatpush1.bf16.msra.mxu0 0
  %2049 = vmatprep.subr.bf16.mxu0 0
  %2050 = vmatpush1.bf16.msra.mxu0 0
  %2051 = vmatprep.subr.bf16.mxu0 0
  %2052 = vmatpush1.bf16.msra.mxu0 0
  %2053 = vmatprep.subr.bf16.mxu0 0
  %2054 = vmatpush1.bf16.msra.mxu0 0
  %2055 = vmatprep.subr.bf16.mxu0 0
  %2056 = vmatpush1.bf16.msra.mxu0 0
  %2057 = vmatprep.subr.bf16.mxu0 0
  %2058 = vmatpush1.bf16.msra.mxu0 0
  %2059 = vmatprep.subr.bf16.mxu0 0
  %2060 = vmatpush1.bf16.msra.mxu0 0
  %2061 = vmatprep.subr.bf16.mxu0 0
  %2062 = vmatpush1.bf16.msra.mxu0 0
  %2063 = vmatprep.subr.bf16.mxu0 0
  %2064 = vmatpush1.bf16.msra.mxu0 0
  %2065 = vmatprep.subr.bf16.mxu0 0
  %2066 = vmatpush1.bf16.msra.mxu0 0
  %2067 = vmatprep.subr.bf16.mxu0 0
  %2068 = vmatpush1.bf16.msra.mxu0 0
  %2069 = vmatprep.mubr.bf16.mxu0 0
  %2070 = vmatmul.mubr.bf16.gmra.mrb[0].mxu0 %v2032
  %v2071 = vpop.f32.mrb[0].mxu0
  %v2072 = vadd.f32 0.0, %v2071
  %v2073 = vpop.f32.mrb[0].mxu0
  %v2074 = vadd.f32 0.0, %v2073
  %v2075 = vpop.f32.mrb[0].mxu0
  %v2076 = vadd.f32 0.0, %v2075
  %v2077 = vpop.f32.mrb[0].mxu0
  %v2078 = vadd.f32 0.0, %v2077
  %2079 = vmatprep.mubr.bf16.mxu0 0
  %2080 = vmatmul.mubr.bf16.gmra.mrb[0].mxu0 %v2035
  %v2081 = vpop.f32.mrb[0].mxu0
  %v2082 = vadd.f32 0.0, %v2081
  %v2083 = vpop.f32.mrb[0].mxu0
  %v2084 = vadd.f32 0.0, %v2083
  %v2085 = vpop.f32.mrb[0].mxu0
  %v2086 = vadd.f32 0.0, %v2085
  %v2087 = vpop.f32.mrb[0].mxu0
  %v2088 = vadd.f32 0.0, %v2087
  %2089 = vdwg.mxu0
  %2090 = vst [vmem:[#allocation3] sm:$0xff] %v2072
  %2091 = vst [vmem:[#allocation3 + $0x8] sm:$0xff] %v2074
  %2092 = vst [vmem:[#allocation3 + $0x20] sm:$0x3] %v2076
  %2093 = vst [vmem:[#allocation3 + $0x28] sm:$0x3] %v2078
  %2094 = vst [vmem:[#allocation3 + $0x10] sm:$0xff] %v2082
  %2095 = vst [vmem:[#allocation3 + $0x18] sm:$0xff] %v2084
  %2096 = vst [vmem:[#allocation3 + $0x30] sm:$0x3] %v2086
  %2097 = vst [vmem:[#allocation3 + $0x38] sm:$0x3] %v2088
  %v2098 = vld [vmem:[#allocation3] sm:$0xff]
  %v2099 = vld [vmem:[#allocation3 + $0x8] sm:$0xff]
  %v2100 = vld [vmem:[#allocation3 + $0x10] sm:$0xff]
  %v2101 = vld [vmem:[#allocation3 + $0x18] sm:$0xff]
  %v2102 = vld [vmem:[#allocation3 + $0x20] sm:$0x3]
  %v2103 = vld [vmem:[#allocation3 + $0x28] sm:$0x3]
  %v2104 = vld [vmem:[#allocation3 + $0x30] sm:$0x3]
  %v2105 = vld [vmem:[#allocation3 + $0x38] sm:$0x3]
  %v2106 = vpack.c.bf16 %v2102, %v2098
  %v2107 = vpack.c.bf16 %v2103, %v2099
  %v2108 = vpack.c.bf16 %v2104, %v2100
  %v2109 = vpack.c.bf16 %v2105, %v2101
  %v2110 = vld [vmem:[#allocation3] sm:$0xfe]
  %v2111 = vld [vmem:[#allocation3 + $0x8] sm:$0xfe]
  %v2112 = vld [vmem:[#allocation3 + $0x10] sm:$0xfe]
  %v2113 = vld [vmem:[#allocation3 + $0x18] sm:$0xfe]
  %v2114 = vld [vmem:[#allocation3 + $0x20] sm:$0x7]
  %v2115 = vld [vmem:[#allocation3 + $0x28] sm:$0x7]
  %v2116 = vld [vmem:[#allocation3 + $0x30] sm:$0x7]
  %v2117 = vld [vmem:[#allocation3 + $0x38] sm:$0x7]
  %v2118 = vpack.c.bf16 %v2114, %v2110
  %v2119 = vpack.c.bf16 %v2115, %v2111
  %v2120 = vpack.c.bf16 %v2116, %v2112
  %v2121 = vpack.c.bf16 %v2117, %v2113
  %v2122 = vld [vmem:[%s1 + $0x500] sm:$0xff]
  %v2123 = vld [vmem:[%s1 + $0x508] sm:$0xff]
  %v2124 = vld [vmem:[%s1 + $0x510] sm:$0xff]
  %v2125 = vld [vmem:[%s1 + $0x518] sm:$0xff]
  %v2126 = vld [vmem:[%s1 + $0x520] sm:$0xff]
  %v2127 = vld [vmem:[%s1 + $0x528] sm:$0xff]
  %v2128 = vld [vmem:[%s1 + $0x530] sm:$0xff]
  %v2129 = vld [vmem:[%s1 + $0x538] sm:$0xff]
  %v2130 = vld [vmem:[%s1 + $0x540] sm:$0xff]
  %v2131 = vld [vmem:[%s1 + $0x548] sm:$0xff]
  %v2132 = vld [vmem:[%s1 + $0x550] sm:$0xff]
  %v2133 = vld [vmem:[%s1 + $0x558] sm:$0xff]
  %v2134 = vld [vmem:[%s1 + $0x560] sm:$0xff]
  %v2135 = vld [vmem:[%s1 + $0x568] sm:$0xff]
  %v2136 = vld [vmem:[%s1 + $0x570] sm:$0xff]
  %v2137 = vld [vmem:[%s1 + $0x578] sm:$0xff]
  %v2138 = vld [vmem:[%s1 + $0x580] sm:$0xff]
  %v2139 = vld [vmem:[%s1 + $0x588] sm:$0xff]
  %v2140 = vld [vmem:[%s1 + $0x590] sm:$0xff]
  %v2141 = vld [vmem:[%s1 + $0x598] sm:$0xff]
  %v2142 = vld [vmem:[%s1 + $0x5a0] sm:$0xff]
  %v2143 = vld [vmem:[%s1 + $0x5a8] sm:$0xff]
  %v2144 = vld [vmem:[%s1 + $0x5b0] sm:$0xff]
  %v2145 = vld [vmem:[%s1 + $0x5b8] sm:$0xff]
  %v2146 = vld [vmem:[%s1 + $0x5c0] sm:$0xff]
  %v2147 = vld [vmem:[%s1 + $0x5c8] sm:$0xff]
  %v2148 = vld [vmem:[%s1 + $0x5d0] sm:$0xff]
  %v2149 = vld [vmem:[%s1 + $0x5d8] sm:$0xff]
  %v2150 = vld [vmem:[%s1 + $0x5e0] sm:$0xff]
  %v2151 = vld [vmem:[%s1 + $0x5e8] sm:$0xff]
  %v2152 = vld [vmem:[%s1 + $0x5f0] sm:$0xff]
  %v2153 = vld [vmem:[%s1 + $0x5f8] sm:$0xff]
  %v2154 = vld [vmem:[%s1 + $0x600] sm:$0xff]
  %v2155 = vld [vmem:[%s1 + $0x608] sm:$0xff]
  %v2156 = vld [vmem:[%s1 + $0x610] sm:$0xff]
  %v2157 = vld [vmem:[%s1 + $0x618] sm:$0xff]
  %v2158 = vld [vmem:[%s1 + $0x620] sm:$0xff]
  %v2159 = vld [vmem:[%s1 + $0x628] sm:$0xff]
  %v2160 = vld [vmem:[%s1 + $0x630] sm:$0xff]
  %v2161 = vld [vmem:[%s1 + $0x638] sm:$0xff]
  %v2162 = vld [vmem:[%s1 + $0x640] sm:$0xff]
  %v2163 = vld [vmem:[%s1 + $0x648] sm:$0xff]
  %v2164 = vld [vmem:[%s1 + $0x650] sm:$0xff]
  %v2165 = vld [vmem:[%s1 + $0x658] sm:$0xff]
  %v2166 = vld [vmem:[%s1 + $0x660] sm:$0xff]
  %v2167 = vld [vmem:[%s1 + $0x668] sm:$0xff]
  %v2168 = vld [vmem:[%s1 + $0x670] sm:$0xff]
  %v2169 = vld [vmem:[%s1 + $0x678] sm:$0xff]
  %v2170 = vld [vmem:[%s1 + $0x680] sm:$0xff]
  %v2171 = vld [vmem:[%s1 + $0x688] sm:$0xff]
  %v2172 = vld [vmem:[%s1 + $0x690] sm:$0xff]
  %v2173 = vld [vmem:[%s1 + $0x698] sm:$0xff]
  %v2174 = vld [vmem:[%s1 + $0x6a0] sm:$0xff]
  %v2175 = vld [vmem:[%s1 + $0x6a8] sm:$0xff]
  %v2176 = vld [vmem:[%s1 + $0x6b0] sm:$0xff]
  %v2177 = vld [vmem:[%s1 + $0x6b8] sm:$0xff]
  %v2178 = vld [vmem:[%s1 + $0x6c0] sm:$0xff]
  %v2179 = vld [vmem:[%s1 + $0x6c8] sm:$0xff]
  %v2180 = vld [vmem:[%s1 + $0x6d0] sm:$0xff]
  %v2181 = vld [vmem:[%s1 + $0x6d8] sm:$0xff]
  %v2182 = vld [vmem:[%s1 + $0x6e0] sm:$0xff]
  %v2183 = vld [vmem:[%s1 + $0x6e8] sm:$0xff]
  %v2184 = vld [vmem:[%s1 + $0x6f0] sm:$0xff]
  %v2185 = vld [vmem:[%s1 + $0x6f8] sm:$0xff]
  %v2186 = vld [vmem:[%s1 + $0x700] sm:$0xff]
  %v2187 = vld [vmem:[%s1 + $0x708] sm:$0xff]
  %v2188 = vld [vmem:[%s1 + $0x710] sm:$0xff]
  %v2189 = vld [vmem:[%s1 + $0x718] sm:$0xff]
  %v2190 = vld [vmem:[%s1 + $0x720] sm:$0xff]
  %v2191 = vld [vmem:[%s1 + $0x728] sm:$0xff]
  %v2192 = vld [vmem:[%s1 + $0x730] sm:$0xff]
  %v2193 = vld [vmem:[%s1 + $0x738] sm:$0xff]
  %v2194 = vld [vmem:[%s1 + $0x740] sm:$0xff]
  %v2195 = vld [vmem:[%s1 + $0x748] sm:$0xff]
  %v2196 = vld [vmem:[%s1 + $0x750] sm:$0xff]
  %v2197 = vld [vmem:[%s1 + $0x758] sm:$0xff]
  %v2198 = vld [vmem:[%s1 + $0x760] sm:$0xff]
  %v2199 = vld [vmem:[%s1 + $0x768] sm:$0xff]
  %v2200 = vld [vmem:[%s1 + $0x770] sm:$0xff]
  %v2201 = vld [vmem:[%s1 + $0x778] sm:$0xff]
  %v2202 = vld [vmem:[%s1 + $0x780] sm:$0xff]
  %v2203 = vld [vmem:[%s1 + $0x788] sm:$0xff]
  %v2204 = vld [vmem:[%s1 + $0x790] sm:$0xff]
  %v2205 = vld [vmem:[%s1 + $0x798] sm:$0xff]
  %v2206 = vld [vmem:[%s1 + $0x7a0] sm:$0xff]
  %v2207 = vld [vmem:[%s1 + $0x7a8] sm:$0xff]
  %v2208 = vld [vmem:[%s1 + $0x7b0] sm:$0xff]
  %v2209 = vld [vmem:[%s1 + $0x7b8] sm:$0xff]
  %v2210 = vld [vmem:[%s1 + $0x7c0] sm:$0xff]
  %v2211 = vld [vmem:[%s1 + $0x7c8] sm:$0xff]
  %v2212 = vld [vmem:[%s1 + $0x7d0] sm:$0xff]
  %v2213 = vld [vmem:[%s1 + $0x7d8] sm:$0xff]
  %v2214 = vld [vmem:[%s1 + $0x7e0] sm:$0xff]
  %v2215 = vld [vmem:[%s1 + $0x7e8] sm:$0xff]
  %v2216 = vld [vmem:[%s1 + $0x7f0] sm:$0xff]
  %v2217 = vld [vmem:[%s1 + $0x7f8] sm:$0xff]
  %v2218 = vld [vmem:[%s1 + $0x800] sm:$0xff]
  %v2219 = vld [vmem:[%s1 + $0x808] sm:$0xff]
  %v2220 = vld [vmem:[%s1 + $0x810] sm:$0xff]
  %v2221 = vld [vmem:[%s1 + $0x818] sm:$0xff]
  %v2222 = vld [vmem:[%s1 + $0x820] sm:$0xff]
  %v2223 = vld [vmem:[%s1 + $0x828] sm:$0xff]
  %v2224 = vld [vmem:[%s1 + $0x830] sm:$0xff]
  %v2225 = vld [vmem:[%s1 + $0x838] sm:$0xff]
  %v2226 = vld [vmem:[%s1 + $0x840] sm:$0xff]
  %v2227 = vld [vmem:[%s1 + $0x848] sm:$0xff]
  %v2228 = vld [vmem:[%s1 + $0x850] sm:$0xff]
  %v2229 = vld [vmem:[%s1 + $0x858] sm:$0xff]
  %v2230 = vld [vmem:[%s1 + $0x860] sm:$0xff]
  %v2231 = vld [vmem:[%s1 + $0x868] sm:$0xff]
  %v2232 = vld [vmem:[%s1 + $0x870] sm:$0xff]
  %v2233 = vld [vmem:[%s1 + $0x878] sm:$0xff]
  %v2234 = vld [vmem:[%s1 + $0x880] sm:$0xff]
  %v2235 = vld [vmem:[%s1 + $0x888] sm:$0xff]
  %v2236 = vld [vmem:[%s1 + $0x890] sm:$0xff]
  %v2237 = vld [vmem:[%s1 + $0x898] sm:$0xff]
  %v2238 = vld [vmem:[%s1 + $0x8a0] sm:$0xff]
  %v2239 = vld [vmem:[%s1 + $0x8a8] sm:$0xff]
  %v2240 = vld [vmem:[%s1 + $0x8b0] sm:$0xff]
  %v2241 = vld [vmem:[%s1 + $0x8b8] sm:$0xff]
  %v2242 = vld [vmem:[%s1 + $0x8c0] sm:$0xff]
  %v2243 = vld [vmem:[%s1 + $0x8c8] sm:$0xff]
  %v2244 = vld [vmem:[%s1 + $0x8d0] sm:$0xff]
  %v2245 = vld [vmem:[%s1 + $0x8d8] sm:$0xff]
  %v2246 = vld [vmem:[%s1 + $0x8e0] sm:$0xff]
  %v2247 = vld [vmem:[%s1 + $0x8e8] sm:$0xff]
  %v2248 = vld [vmem:[%s1 + $0x8f0] sm:$0xff]
  %v2249 = vld [vmem:[%s1 + $0x8f8] sm:$0xff]
  %v2251 = vshrl.u32 %v2118, 16
  %v2253 = vshll.u32 %v2118, 16
  %v2255 = vrot.slane %v2253, 1
  %v2256 = vor.u32 %v2251, %v2255
  %v2258 = vshrl.u32 %v2119, 16
  %v2260 = vshll.u32 %v2119, 16
  %v2262 = vrot.slane %v2260, 1
  %v2263 = vor.u32 %v2258, %v2262
  %v2265 = vshrl.u32 %v2120, 16
  %v2267 = vshll.u32 %v2120, 16
  %v2269 = vrot.slane %v2267, 1
  %v2270 = vor.u32 %v2265, %v2269
  %v2272 = vshrl.u32 %v2121, 16
  %v2274 = vshll.u32 %v2121, 16
  %v2276 = vrot.slane %v2274, 1
  %v2277 = vor.u32 %v2272, %v2276
  %v2346 = vunpack.c.l.b16 %v2186
  %v2347 = vunpack.c.h.b16 %v2186
  %v2348 = vunpack.c.l.b16 %v2187
  %v2349 = vunpack.c.h.b16 %v2187
  %v2350 = vunpack.c.l.b16 %v2188
  %v2351 = vunpack.c.h.b16 %v2188
  %v2352 = vunpack.c.l.b16 %v2189
  %v2353 = vunpack.c.h.b16 %v2189
  %v2354 = vunpack.c.l.b16 %v2190
  %v2355 = vunpack.c.h.b16 %v2190
  %v2356 = vunpack.c.l.b16 %v2191
  %v2357 = vunpack.c.h.b16 %v2191
  %v2358 = vunpack.c.l.b16 %v2192
  %v2359 = vunpack.c.h.b16 %v2192
  %v2360 = vunpack.c.l.b16 %v2193
  %v2361 = vunpack.c.h.b16 %v2193
  %v2362 = vunpack.c.l.b16 %v2194
  %v2363 = vunpack.c.h.b16 %v2194
  %v2364 = vunpack.c.l.b16 %v2195
  %v2365 = vunpack.c.h.b16 %v2195
  %v2366 = vunpack.c.l.b16 %v2196
  %v2367 = vunpack.c.h.b16 %v2196
  %v2368 = vunpack.c.l.b16 %v2197
  %v2369 = vunpack.c.h.b16 %v2197
  %v2370 = vunpack.c.l.b16 %v2198
  %v2371 = vunpack.c.h.b16 %v2198
  %v2372 = vunpack.c.l.b16 %v2199
  %v2373 = vunpack.c.h.b16 %v2199
  %v2374 = vunpack.c.l.b16 %v2200
  %v2375 = vunpack.c.h.b16 %v2200
  %v2376 = vunpack.c.l.b16 %v2201
  %v2377 = vunpack.c.h.b16 %v2201
  %v2378 = vunpack.c.l.b16 %v2202
  %v2379 = vunpack.c.h.b16 %v2202
  %v2380 = vunpack.c.l.b16 %v2203
  %v2381 = vunpack.c.h.b16 %v2203
  %v2382 = vunpack.c.l.b16 %v2204
  %v2383 = vunpack.c.h.b16 %v2204
  %v2384 = vunpack.c.l.b16 %v2205
  %v2385 = vunpack.c.h.b16 %v2205
  %v2386 = vunpack.c.l.b16 %v2206
  %v2387 = vunpack.c.h.b16 %v2206
  %v2388 = vunpack.c.l.b16 %v2207
  %v2389 = vunpack.c.h.b16 %v2207
  %v2390 = vunpack.c.l.b16 %v2208
  %v2391 = vunpack.c.h.b16 %v2208
  %v2392 = vunpack.c.l.b16 %v2209
  %v2393 = vunpack.c.h.b16 %v2209
  %v2394 = vunpack.c.l.b16 %v2210
  %v2395 = vunpack.c.h.b16 %v2210
  %v2396 = vunpack.c.l.b16 %v2211
  %v2397 = vunpack.c.h.b16 %v2211
  %v2398 = vunpack.c.l.b16 %v2212
  %v2399 = vunpack.c.h.b16 %v2212
  %v2400 = vunpack.c.l.b16 %v2213
  %v2401 = vunpack.c.h.b16 %v2213
  %v2402 = vunpack.c.l.b16 %v2214
  %v2403 = vunpack.c.h.b16 %v2214
  %v2404 = vunpack.c.l.b16 %v2215
  %v2405 = vunpack.c.h.b16 %v2215
  %v2406 = vunpack.c.l.b16 %v2216
  %v2407 = vunpack.c.h.b16 %v2216
  %v2408 = vunpack.c.l.b16 %v2217
  %v2409 = vunpack.c.h.b16 %v2217
  %v2410 = vunpack.c.l.b16 %v2218
  %v2411 = vunpack.c.h.b16 %v2218
  %v2412 = vunpack.c.l.b16 %v2219
  %v2413 = vunpack.c.h.b16 %v2219
  %v2414 = vunpack.c.l.b16 %v2220
  %v2415 = vunpack.c.h.b16 %v2220
  %v2416 = vunpack.c.l.b16 %v2221
  %v2417 = vunpack.c.h.b16 %v2221
  %v2418 = vunpack.c.l.b16 %v2222
  %v2419 = vunpack.c.h.b16 %v2222
  %v2420 = vunpack.c.l.b16 %v2223
  %v2421 = vunpack.c.h.b16 %v2223
  %v2422 = vunpack.c.l.b16 %v2224
  %v2423 = vunpack.c.h.b16 %v2224
  %v2424 = vunpack.c.l.b16 %v2225
  %v2425 = vunpack.c.h.b16 %v2225
  %v2426 = vunpack.c.l.b16 %v2226
  %v2427 = vunpack.c.h.b16 %v2226
  %v2428 = vunpack.c.l.b16 %v2227
  %v2429 = vunpack.c.h.b16 %v2227
  %v2430 = vunpack.c.l.b16 %v2228
  %v2431 = vunpack.c.h.b16 %v2228
  %v2432 = vunpack.c.l.b16 %v2229
  %v2433 = vunpack.c.h.b16 %v2229
  %v2434 = vunpack.c.l.b16 %v2230
  %v2435 = vunpack.c.h.b16 %v2230
  %v2436 = vunpack.c.l.b16 %v2231
  %v2437 = vunpack.c.h.b16 %v2231
  %v2438 = vunpack.c.l.b16 %v2232
  %v2439 = vunpack.c.h.b16 %v2232
  %v2440 = vunpack.c.l.b16 %v2233
  %v2441 = vunpack.c.h.b16 %v2233
  %v2442 = vunpack.c.l.b16 %v2234
  %v2443 = vunpack.c.h.b16 %v2234
  %v2444 = vunpack.c.l.b16 %v2235
  %v2445 = vunpack.c.h.b16 %v2235
  %v2446 = vunpack.c.l.b16 %v2236
  %v2447 = vunpack.c.h.b16 %v2236
  %v2448 = vunpack.c.l.b16 %v2237
  %v2449 = vunpack.c.h.b16 %v2237
  %v2450 = vunpack.c.l.b16 %v2238
  %v2451 = vunpack.c.h.b16 %v2238
  %v2452 = vunpack.c.l.b16 %v2239
  %v2453 = vunpack.c.h.b16 %v2239
  %v2454 = vunpack.c.l.b16 %v2240
  %v2455 = vunpack.c.h.b16 %v2240
  %v2456 = vunpack.c.l.b16 %v2241
  %v2457 = vunpack.c.h.b16 %v2241
  %v2458 = vunpack.c.l.b16 %v2242
  %v2459 = vunpack.c.h.b16 %v2242
  %v2460 = vunpack.c.l.b16 %v2243
  %v2461 = vunpack.c.h.b16 %v2243
  %v2462 = vunpack.c.l.b16 %v2244
  %v2463 = vunpack.c.h.b16 %v2244
  %v2464 = vunpack.c.l.b16 %v2245
  %v2465 = vunpack.c.h.b16 %v2245
  %v2466 = vunpack.c.l.b16 %v2246
  %v2467 = vunpack.c.h.b16 %v2246
  %v2468 = vunpack.c.l.b16 %v2247
  %v2469 = vunpack.c.h.b16 %v2247
  %v2470 = vunpack.c.l.b16 %v2248
  %v2471 = vunpack.c.h.b16 %v2248
  %v2472 = vunpack.c.l.b16 %v2249
  %v2473 = vunpack.c.h.b16 %v2249
  %v2474 = vpack.c.b16 %v2348, %v2346
  %v2475 = vpack.c.b16 %v2349, %v2347
  %v2476 = vpack.c.b16 %v2352, %v2350
  %v2477 = vpack.c.b16 %v2353, %v2351
  %v2478 = vpack.c.b16 %v2356, %v2354
  %v2479 = vpack.c.b16 %v2357, %v2355
  %v2480 = vpack.c.b16 %v2360, %v2358
  %v2481 = vpack.c.b16 %v2361, %v2359
  %v2482 = vpack.c.b16 %v2364, %v2362
  %v2483 = vpack.c.b16 %v2365, %v2363
  %v2484 = vpack.c.b16 %v2368, %v2366
  %v2485 = vpack.c.b16 %v2369, %v2367
  %v2486 = vpack.c.b16 %v2372, %v2370
  %v2487 = vpack.c.b16 %v2373, %v2371
  %v2488 = vpack.c.b16 %v2376, %v2374
  %v2489 = vpack.c.b16 %v2377, %v2375
  %v2490 = vpack.c.b16 %v2380, %v2378
  %v2491 = vpack.c.b16 %v2381, %v2379
  %v2492 = vpack.c.b16 %v2384, %v2382
  %v2493 = vpack.c.b16 %v2385, %v2383
  %v2494 = vpack.c.b16 %v2388, %v2386
  %v2495 = vpack.c.b16 %v2389, %v2387
  %v2496 = vpack.c.b16 %v2392, %v2390
  %v2497 = vpack.c.b16 %v2393, %v2391
  %v2498 = vpack.c.b16 %v2396, %v2394
  %v2499 = vpack.c.b16 %v2397, %v2395
  %v2500 = vpack.c.b16 %v2400, %v2398
  %v2501 = vpack.c.b16 %v2401, %v2399
  %v2502 = vpack.c.b16 %v2404, %v2402
  %v2503 = vpack.c.b16 %v2405, %v2403
  %v2504 = vpack.c.b16 %v2408, %v2406
  %v2505 = vpack.c.b16 %v2409, %v2407
  %v2506 = vpack.c.b16 %v2412, %v2410
  %v2507 = vpack.c.b16 %v2413, %v2411
  %v2508 = vpack.c.b16 %v2416, %v2414
  %v2509 = vpack.c.b16 %v2417, %v2415
  %v2510 = vpack.c.b16 %v2420, %v2418
  %v2511 = vpack.c.b16 %v2421, %v2419
  %v2512 = vpack.c.b16 %v2424, %v2422
  %v2513 = vpack.c.b16 %v2425, %v2423
  %v2514 = vpack.c.b16 %v2428, %v2426
  %v2515 = vpack.c.b16 %v2429, %v2427
  %v2516 = vpack.c.b16 %v2432, %v2430
  %v2517 = vpack.c.b16 %v2433, %v2431
  %v2518 = vpack.c.b16 %v2436, %v2434
  %v2519 = vpack.c.b16 %v2437, %v2435
  %v2520 = vpack.c.b16 %v2440, %v2438
  %v2521 = vpack.c.b16 %v2441, %v2439
  %v2522 = vpack.c.b16 %v2444, %v2442
  %v2523 = vpack.c.b16 %v2445, %v2443
  %v2524 = vpack.c.b16 %v2448, %v2446
  %v2525 = vpack.c.b16 %v2449, %v2447
  %v2526 = vpack.c.b16 %v2452, %v2450
  %v2527 = vpack.c.b16 %v2453, %v2451
  %v2528 = vpack.c.b16 %v2456, %v2454
  %v2529 = vpack.c.b16 %v2457, %v2455
  %v2530 = vpack.c.b16 %v2460, %v2458
  %v2531 = vpack.c.b16 %v2461, %v2459
  %v2532 = vpack.c.b16 %v2464, %v2462
  %v2533 = vpack.c.b16 %v2465, %v2463
  %v2534 = vpack.c.b16 %v2468, %v2466
  %v2535 = vpack.c.b16 %v2469, %v2467
  %v2536 = vpack.c.b16 %v2472, %v2470
  %v2537 = vpack.c.b16 %v2473, %v2471
  %2602 = vmatprep.subr.bf16.mxu0 %v2475
  %2603 = vmatpush1.bf16.msra.mxu0 %v2474
  %2604 = vmatprep.subr.bf16.mxu0 %v2477
  %2605 = vmatpush1.bf16.msra.mxu0 %v2476
  %2606 = vmatprep.subr.bf16.mxu0 %v2479
  %2607 = vmatpush1.bf16.msra.mxu0 %v2478
  %2608 = vmatprep.subr.bf16.mxu0 %v2481
  %2609 = vmatpush1.bf16.msra.mxu0 %v2480
  %2610 = vmatprep.subr.bf16.mxu0 %v2483
  %2611 = vmatpush1.bf16.msra.mxu0 %v2482
  %2612 = vmatprep.subr.bf16.mxu0 %v2485
  %2613 = vmatpush1.bf16.msra.mxu0 %v2484
  %2614 = vmatprep.subr.bf16.mxu0 %v2487
  %2615 = vmatpush1.bf16.msra.mxu0 %v2486
  %2616 = vmatprep.subr.bf16.mxu0 %v2489
  %2617 = vmatpush1.bf16.msra.mxu0 %v2488
  %2618 = vmatprep.subr.bf16.mxu0 %v2491
  %2619 = vmatpush1.bf16.msra.mxu0 %v2490
  %2620 = vmatprep.subr.bf16.mxu0 %v2493
  %2621 = vmatpush1.bf16.msra.mxu0 %v2492
  %2622 = vmatprep.subr.bf16.mxu0 %v2495
  %2623 = vmatpush1.bf16.msra.mxu0 %v2494
  %2624 = vmatprep.subr.bf16.mxu0 %v2497
  %2625 = vmatpush1.bf16.msra.mxu0 %v2496
  %2626 = vmatprep.subr.bf16.mxu0 %v2499
  %2627 = vmatpush1.bf16.msra.mxu0 %v2498
  %2628 = vmatprep.subr.bf16.mxu0 %v2501
  %2629 = vmatpush1.bf16.msra.mxu0 %v2500
  %2630 = vmatprep.subr.bf16.mxu0 %v2503
  %2631 = vmatpush1.bf16.msra.mxu0 %v2502
  %2632 = vmatprep.subr.bf16.mxu0 %v2505
  %2633 = vmatpush1.bf16.msra.mxu0 %v2504
  %2634 = vmatprep.mubr.bf16.mxu0 %v2263
  %2635 = vmatmul.mubr.bf16.gmra.mrb[0].mxu0 %v2256
  %v2636 = vpop.f32.mrb[0].mxu0
  %v2637 = vadd.f32 0.0, %v2636
  %v2638 = vpop.f32.mrb[0].mxu0
  %v2639 = vadd.f32 0.0, %v2638
  %v2640 = vpop.f32.mrb[0].mxu0
  %v2641 = vadd.f32 0.0, %v2640
  %v2642 = vpop.f32.mrb[0].mxu0
  %v2643 = vadd.f32 0.0, %v2642
  %2644 = vdwg.mxu0
  %2645 = vmatprep.subr.bf16.mxu0 %v2507
  %2646 = vmatpush1.bf16.msra.mxu0 %v2506
  %2647 = vmatprep.subr.bf16.mxu0 %v2509
  %2648 = vmatpush1.bf16.msra.mxu0 %v2508
  %2649 = vmatprep.subr.bf16.mxu0 %v2511
  %2650 = vmatpush1.bf16.msra.mxu0 %v2510
  %2651 = vmatprep.subr.bf16.mxu0 %v2513
  %2652 = vmatpush1.bf16.msra.mxu0 %v2512
  %2653 = vmatprep.subr.bf16.mxu0 %v2515
  %2654 = vmatpush1.bf16.msra.mxu0 %v2514
  %2655 = vmatprep.subr.bf16.mxu0 %v2517
  %2656 = vmatpush1.bf16.msra.mxu0 %v2516
  %2657 = vmatprep.subr.bf16.mxu0 %v2519
  %2658 = vmatpush1.bf16.msra.mxu0 %v2518
  %2659 = vmatprep.subr.bf16.mxu0 %v2521
  %2660 = vmatpush1.bf16.msra.mxu0 %v2520
  %2661 = vmatprep.subr.bf16.mxu0 %v2523
  %2662 = vmatpush1.bf16.msra.mxu0 %v2522
  %2663 = vmatprep.subr.bf16.mxu0 %v2525
  %2664 = vmatpush1.bf16.msra.mxu0 %v2524
  %2665 = vmatprep.subr.bf16.mxu0 %v2527
  %2666 = vmatpush1.bf16.msra.mxu0 %v2526
  %2667 = vmatprep.subr.bf16.mxu0 %v2529
  %2668 = vmatpush1.bf16.msra.mxu0 %v2528
  %2669 = vmatprep.subr.bf16.mxu0 %v2531
  %2670 = vmatpush1.bf16.msra.mxu0 %v2530
  %2671 = vmatprep.subr.bf16.mxu0 %v2533
  %2672 = vmatpush1.bf16.msra.mxu0 %v2532
  %2673 = vmatprep.subr.bf16.mxu0 %v2535
  %2674 = vmatpush1.bf16.msra.mxu0 %v2534
  %2675 = vmatprep.subr.bf16.mxu0 %v2537
  %2676 = vmatpush1.bf16.msra.mxu0 %v2536
  %2677 = vmatprep.mubr.bf16.mxu0 %v2277
  %2678 = vmatmul.mubr.bf16.gmra.mrb[0].mxu0 %v2270
  %v2679 = vpop.f32.mrb[0].mxu0
  %v2680 = vadd.f32 %v2637, %v2679
  %v2681 = vpop.f32.mrb[0].mxu0
  %v2682 = vadd.f32 %v2639, %v2681
  %v2683 = vpop.f32.mrb[0].mxu0
  %v2684 = vadd.f32 %v2641, %v2683
  %v2685 = vpop.f32.mrb[0].mxu0
  %v2686 = vadd.f32 %v2643, %v2685
  %2687 = vdwg.mxu0
  %v2752 = vunpack.c.l.b16 %v2122
  %v2753 = vunpack.c.h.b16 %v2122
  %v2754 = vunpack.c.l.b16 %v2123
  %v2755 = vunpack.c.h.b16 %v2123
  %v2756 = vunpack.c.l.b16 %v2124
  %v2757 = vunpack.c.h.b16 %v2124
  %v2758 = vunpack.c.l.b16 %v2125
  %v2759 = vunpack.c.h.b16 %v2125
  %v2760 = vunpack.c.l.b16 %v2126
  %v2761 = vunpack.c.h.b16 %v2126
  %v2762 = vunpack.c.l.b16 %v2127
  %v2763 = vunpack.c.h.b16 %v2127
  %v2764 = vunpack.c.l.b16 %v2128
  %v2765 = vunpack.c.h.b16 %v2128
  %v2766 = vunpack.c.l.b16 %v2129
  %v2767 = vunpack.c.h.b16 %v2129
  %v2768 = vunpack.c.l.b16 %v2130
  %v2769 = vunpack.c.h.b16 %v2130
  %v2770 = vunpack.c.l.b16 %v2131
  %v2771 = vunpack.c.h.b16 %v2131
  %v2772 = vunpack.c.l.b16 %v2132
  %v2773 = vunpack.c.h.b16 %v2132
  %v2774 = vunpack.c.l.b16 %v2133
  %v2775 = vunpack.c.h.b16 %v2133
  %v2776 = vunpack.c.l.b16 %v2134
  %v2777 = vunpack.c.h.b16 %v2134
  %v2778 = vunpack.c.l.b16 %v2135
  %v2779 = vunpack.c.h.b16 %v2135
  %v2780 = vunpack.c.l.b16 %v2136
  %v2781 = vunpack.c.h.b16 %v2136
  %v2782 = vunpack.c.l.b16 %v2137
  %v2783 = vunpack.c.h.b16 %v2137
  %v2784 = vunpack.c.l.b16 %v2138
  %v2785 = vunpack.c.h.b16 %v2138
  %v2786 = vunpack.c.l.b16 %v2139
  %v2787 = vunpack.c.h.b16 %v2139
  %v2788 = vunpack.c.l.b16 %v2140
  %v2789 = vunpack.c.h.b16 %v2140
  %v2790 = vunpack.c.l.b16 %v2141
  %v2791 = vunpack.c.h.b16 %v2141
  %v2792 = vunpack.c.l.b16 %v2142
  %v2793 = vunpack.c.h.b16 %v2142
  %v2794 = vunpack.c.l.b16 %v2143
  %v2795 = vunpack.c.h.b16 %v2143
  %v2796 = vunpack.c.l.b16 %v2144
  %v2797 = vunpack.c.h.b16 %v2144
  %v2798 = vunpack.c.l.b16 %v2145
  %v2799 = vunpack.c.h.b16 %v2145
  %v2800 = vunpack.c.l.b16 %v2146
  %v2801 = vunpack.c.h.b16 %v2146
  %v2802 = vunpack.c.l.b16 %v2147
  %v2803 = vunpack.c.h.b16 %v2147
  %v2804 = vunpack.c.l.b16 %v2148
  %v2805 = vunpack.c.h.b16 %v2148
  %v2806 = vunpack.c.l.b16 %v2149
  %v2807 = vunpack.c.h.b16 %v2149
  %v2808 = vunpack.c.l.b16 %v2150
  %v2809 = vunpack.c.h.b16 %v2150
  %v2810 = vunpack.c.l.b16 %v2151
  %v2811 = vunpack.c.h.b16 %v2151
  %v2812 = vunpack.c.l.b16 %v2152
  %v2813 = vunpack.c.h.b16 %v2152
  %v2814 = vunpack.c.l.b16 %v2153
  %v2815 = vunpack.c.h.b16 %v2153
  %v2816 = vunpack.c.l.b16 %v2154
  %v2817 = vunpack.c.h.b16 %v2154
  %v2818 = vunpack.c.l.b16 %v2155
  %v2819 = vunpack.c.h.b16 %v2155
  %v2820 = vunpack.c.l.b16 %v2156
  %v2821 = vunpack.c.h.b16 %v2156
  %v2822 = vunpack.c.l.b16 %v2157
  %v2823 = vunpack.c.h.b16 %v2157
  %v2824 = vunpack.c.l.b16 %v2158
  %v2825 = vunpack.c.h.b16 %v2158
  %v2826 = vunpack.c.l.b16 %v2159
  %v2827 = vunpack.c.h.b16 %v2159
  %v2828 = vunpack.c.l.b16 %v2160
  %v2829 = vunpack.c.h.b16 %v2160
  %v2830 = vunpack.c.l.b16 %v2161
  %v2831 = vunpack.c.h.b16 %v2161
  %v2832 = vunpack.c.l.b16 %v2162
  %v2833 = vunpack.c.h.b16 %v2162
  %v2834 = vunpack.c.l.b16 %v2163
  %v2835 = vunpack.c.h.b16 %v2163
  %v2836 = vunpack.c.l.b16 %v2164
  %v2837 = vunpack.c.h.b16 %v2164
  %v2838 = vunpack.c.l.b16 %v2165
  %v2839 = vunpack.c.h.b16 %v2165
  %v2840 = vunpack.c.l.b16 %v2166
  %v2841 = vunpack.c.h.b16 %v2166
  %v2842 = vunpack.c.l.b16 %v2167
  %v2843 = vunpack.c.h.b16 %v2167
  %v2844 = vunpack.c.l.b16 %v2168
  %v2845 = vunpack.c.h.b16 %v2168
  %v2846 = vunpack.c.l.b16 %v2169
  %v2847 = vunpack.c.h.b16 %v2169
  %v2848 = vunpack.c.l.b16 %v2170
  %v2849 = vunpack.c.h.b16 %v2170
  %v2850 = vunpack.c.l.b16 %v2171
  %v2851 = vunpack.c.h.b16 %v2171
  %v2852 = vunpack.c.l.b16 %v2172
  %v2853 = vunpack.c.h.b16 %v2172
  %v2854 = vunpack.c.l.b16 %v2173
  %v2855 = vunpack.c.h.b16 %v2173
  %v2856 = vunpack.c.l.b16 %v2174
  %v2857 = vunpack.c.h.b16 %v2174
  %v2858 = vunpack.c.l.b16 %v2175
  %v2859 = vunpack.c.h.b16 %v2175
  %v2860 = vunpack.c.l.b16 %v2176
  %v2861 = vunpack.c.h.b16 %v2176
  %v2862 = vunpack.c.l.b16 %v2177
  %v2863 = vunpack.c.h.b16 %v2177
  %v2864 = vunpack.c.l.b16 %v2178
  %v2865 = vunpack.c.h.b16 %v2178
  %v2866 = vunpack.c.l.b16 %v2179
  %v2867 = vunpack.c.h.b16 %v2179
  %v2868 = vunpack.c.l.b16 %v2180
  %v2869 = vunpack.c.h.b16 %v2180
  %v2870 = vunpack.c.l.b16 %v2181
  %v2871 = vunpack.c.h.b16 %v2181
  %v2872 = vunpack.c.l.b16 %v2182
  %v2873 = vunpack.c.h.b16 %v2182
  %v2874 = vunpack.c.l.b16 %v2183
  %v2875 = vunpack.c.h.b16 %v2183
  %v2876 = vunpack.c.l.b16 %v2184
  %v2877 = vunpack.c.h.b16 %v2184
  %v2878 = vunpack.c.l.b16 %v2185
  %v2879 = vunpack.c.h.b16 %v2185
  %v2880 = vpack.c.b16 %v2754, %v2752
  %v2881 = vpack.c.b16 %v2755, %v2753
  %v2882 = vpack.c.b16 %v2758, %v2756
  %v2883 = vpack.c.b16 %v2759, %v2757
  %v2884 = vpack.c.b16 %v2762, %v2760
  %v2885 = vpack.c.b16 %v2763, %v2761
  %v2886 = vpack.c.b16 %v2766, %v2764
  %v2887 = vpack.c.b16 %v2767, %v2765
  %v2888 = vpack.c.b16 %v2770, %v2768
  %v2889 = vpack.c.b16 %v2771, %v2769
  %v2890 = vpack.c.b16 %v2774, %v2772
  %v2891 = vpack.c.b16 %v2775, %v2773
  %v2892 = vpack.c.b16 %v2778, %v2776
  %v2893 = vpack.c.b16 %v2779, %v2777
  %v2894 = vpack.c.b16 %v2782, %v2780
  %v2895 = vpack.c.b16 %v2783, %v2781
  %v2896 = vpack.c.b16 %v2786, %v2784
  %v2897 = vpack.c.b16 %v2787, %v2785
  %v2898 = vpack.c.b16 %v2790, %v2788
  %v2899 = vpack.c.b16 %v2791, %v2789
  %v2900 = vpack.c.b16 %v2794, %v2792
  %v2901 = vpack.c.b16 %v2795, %v2793
  %v2902 = vpack.c.b16 %v2798, %v2796
  %v2903 = vpack.c.b16 %v2799, %v2797
  %v2904 = vpack.c.b16 %v2802, %v2800
  %v2905 = vpack.c.b16 %v2803, %v2801
  %v2906 = vpack.c.b16 %v2806, %v2804
  %v2907 = vpack.c.b16 %v2807, %v2805
  %v2908 = vpack.c.b16 %v2810, %v2808
  %v2909 = vpack.c.b16 %v2811, %v2809
  %v2910 = vpack.c.b16 %v2814, %v2812
  %v2911 = vpack.c.b16 %v2815, %v2813
  %v2912 = vpack.c.b16 %v2818, %v2816
  %v2913 = vpack.c.b16 %v2819, %v2817
  %v2914 = vpack.c.b16 %v2822, %v2820
  %v2915 = vpack.c.b16 %v2823, %v2821
  %v2916 = vpack.c.b16 %v2826, %v2824
  %v2917 = vpack.c.b16 %v2827, %v2825
  %v2918 = vpack.c.b16 %v2830, %v2828
  %v2919 = vpack.c.b16 %v2831, %v2829
  %v2920 = vpack.c.b16 %v2834, %v2832
  %v2921 = vpack.c.b16 %v2835, %v2833
  %v2922 = vpack.c.b16 %v2838, %v2836
  %v2923 = vpack.c.b16 %v2839, %v2837
  %v2924 = vpack.c.b16 %v2842, %v2840
  %v2925 = vpack.c.b16 %v2843, %v2841
  %v2926 = vpack.c.b16 %v2846, %v2844
  %v2927 = vpack.c.b16 %v2847, %v2845
  %v2928 = vpack.c.b16 %v2850, %v2848
  %v2929 = vpack.c.b16 %v2851, %v2849
  %v2930 = vpack.c.b16 %v2854, %v2852
  %v2931 = vpack.c.b16 %v2855, %v2853
  %v2932 = vpack.c.b16 %v2858, %v2856
  %v2933 = vpack.c.b16 %v2859, %v2857
  %v2934 = vpack.c.b16 %v2862, %v2860
  %v2935 = vpack.c.b16 %v2863, %v2861
  %v2936 = vpack.c.b16 %v2866, %v2864
  %v2937 = vpack.c.b16 %v2867, %v2865
  %v2938 = vpack.c.b16 %v2870, %v2868
  %v2939 = vpack.c.b16 %v2871, %v2869
  %v2940 = vpack.c.b16 %v2874, %v2872
  %v2941 = vpack.c.b16 %v2875, %v2873
  %v2942 = vpack.c.b16 %v2878, %v2876
  %v2943 = vpack.c.b16 %v2879, %v2877
  %3008 = vmatprep.subr.bf16.mxu0 %v2881
  %3009 = vmatpush1.bf16.msra.mxu0 %v2880
  %3010 = vmatprep.subr.bf16.mxu0 %v2883
  %3011 = vmatpush1.bf16.msra.mxu0 %v2882
  %3012 = vmatprep.subr.bf16.mxu0 %v2885
  %3013 = vmatpush1.bf16.msra.mxu0 %v2884
  %3014 = vmatprep.subr.bf16.mxu0 %v2887
  %3015 = vmatpush1.bf16.msra.mxu0 %v2886
  %3016 = vmatprep.subr.bf16.mxu0 %v2889
  %3017 = vmatpush1.bf16.msra.mxu0 %v2888
  %3018 = vmatprep.subr.bf16.mxu0 %v2891
  %3019 = vmatpush1.bf16.msra.mxu0 %v2890
  %3020 = vmatprep.subr.bf16.mxu0 %v2893
  %3021 = vmatpush1.bf16.msra.mxu0 %v2892
  %3022 = vmatprep.subr.bf16.mxu0 %v2895
  %3023 = vmatpush1.bf16.msra.mxu0 %v2894
  %3024 = vmatprep.subr.bf16.mxu0 %v2897
  %3025 = vmatpush1.bf16.msra.mxu0 %v2896
  %3026 = vmatprep.subr.bf16.mxu0 %v2899
  %3027 = vmatpush1.bf16.msra.mxu0 %v2898
  %3028 = vmatprep.subr.bf16.mxu0 %v2901
  %3029 = vmatpush1.bf16.msra.mxu0 %v2900
  %3030 = vmatprep.subr.bf16.mxu0 %v2903
  %3031 = vmatpush1.bf16.msra.mxu0 %v2902
  %3032 = vmatprep.subr.bf16.mxu0 %v2905
  %3033 = vmatpush1.bf16.msra.mxu0 %v2904
  %3034 = vmatprep.subr.bf16.mxu0 %v2907
  %3035 = vmatpush1.bf16.msra.mxu0 %v2906
  %3036 = vmatprep.subr.bf16.mxu0 %v2909
  %3037 = vmatpush1.bf16.msra.mxu0 %v2908
  %3038 = vmatprep.subr.bf16.mxu0 %v2911
  %3039 = vmatpush1.bf16.msra.mxu0 %v2910
  %3040 = vmatprep.mubr.bf16.mxu0 %v2107
  %3041 = vmatmul.mubr.bf16.gmra.mrb[0].mxu0 %v2106
  %v3042 = vpop.f32.mrb[0].mxu0
  %v3043 = vadd.f32 %v2680, %v3042
  %v3044 = vpop.f32.mrb[0].mxu0
  %v3045 = vadd.f32 %v2682, %v3044
  %v3046 = vpop.f32.mrb[0].mxu0
  %v3047 = vadd.f32 %v2684, %v3046
  %v3048 = vpop.f32.mrb[0].mxu0
  %v3049 = vadd.f32 %v2686, %v3048
  %3050 = vdwg.mxu0
  %3051 = vmatprep.subr.bf16.mxu0 %v2913
  %3052 = vmatpush1.bf16.msra.mxu0 %v2912
  %3053 = vmatprep.subr.bf16.mxu0 %v2915
  %3054 = vmatpush1.bf16.msra.mxu0 %v2914
  %3055 = vmatprep.subr.bf16.mxu0 %v2917
  %3056 = vmatpush1.bf16.msra.mxu0 %v2916
  %3057 = vmatprep.subr.bf16.mxu0 %v2919
  %3058 = vmatpush1.bf16.msra.mxu0 %v2918
  %3059 = vmatprep.subr.bf16.mxu0 %v2921
  %3060 = vmatpush1.bf16.msra.mxu0 %v2920
  %3061 = vmatprep.subr.bf16.mxu0 %v2923
  %3062 = vmatpush1.bf16.msra.mxu0 %v2922
  %3063 = vmatprep.subr.bf16.mxu0 %v2925
  %3064 = vmatpush1.bf16.msra.mxu0 %v2924
  %3065 = vmatprep.subr.bf16.mxu0 %v2927
  %3066 = vmatpush1.bf16.msra.mxu0 %v2926
  %3067 = vmatprep.subr.bf16.mxu0 %v2929
  %3068 = vmatpush1.bf16.msra.mxu0 %v2928
  %3069 = vmatprep.subr.bf16.mxu0 %v2931
  %3070 = vmatpush1.bf16.msra.mxu0 %v2930
  %3071 = vmatprep.subr.bf16.mxu0 %v2933
  %3072 = vmatpush1.bf16.msra.mxu0 %v2932
  %3073 = vmatprep.subr.bf16.mxu0 %v2935
  %3074 = vmatpush1.bf16.msra.mxu0 %v2934
  %3075 = vmatprep.subr.bf16.mxu0 %v2937
  %3076 = vmatpush1.bf16.msra.mxu0 %v2936
  %3077 = vmatprep.subr.bf16.mxu0 %v2939
  %3078 = vmatpush1.bf16.msra.mxu0 %v2938
  %3079 = vmatprep.subr.bf16.mxu0 %v2941
  %3080 = vmatpush1.bf16.msra.mxu0 %v2940
  %3081 = vmatprep.subr.bf16.mxu0 %v2943
  %3082 = vmatpush1.bf16.msra.mxu0 %v2942
  %3083 = vmatprep.mubr.bf16.mxu0 %v2109
  %3084 = vmatmul.mubr.bf16.gmra.mrb[0].mxu0 %v2108
  %v3085 = vpop.f32.mrb[0].mxu0
  %v3086 = vadd.f32 %v3043, %v3085
  %v3087 = vpop.f32.mrb[0].mxu0
  %v3088 = vadd.f32 %v3045, %v3087
  %v3089 = vpop.f32.mrb[0].mxu0
  %v3090 = vadd.f32 %v3047, %v3089
  %v3091 = vpop.f32.mrb[0].mxu0
  %v3092 = vadd.f32 %v3049, %v3091
  %3093 = vdwg.mxu0
  %vm3094 = vcmask 1043456
  %v3095 = vsel %vm3094, %v3086, 0.0
  %v3096 = vrot.slane %v3095, 4
  %v3097 = vadd.f32 %v3095, %v3096
  %v3098 = vrot.slane %v3097, 2
  %v3099 = vadd.f32 %v3097, %v3098
  %v3100 = vrot.slane %v3099, 1
  %v3101 = vadd.f32 %v3099, %v3100
  %v3102 = vsel %vm3094, %v3088, 0.0
  %v3103 = vrot.slane %v3102, 4
  %v3104 = vadd.f32 %v3102, %v3103
  %v3105 = vrot.slane %v3104, 2
  %v3106 = vadd.f32 %v3104, %v3105
  %v3107 = vrot.slane %v3106, 1
  %v3108 = vadd.f32 %v3106, %v3107
  %v3109 = vmul.f32 %v3086, %v3086
  %v3110 = vmul.f32 %v3088, %v3088
  %v3111 = vsel %vm3094, %v3109, 0.0
  %v3112 = vrot.slane %v3111, 4
  %v3113 = vadd.f32 %v3111, %v3112
  %v3114 = vrot.slane %v3113, 2
  %v3115 = vadd.f32 %v3113, %v3114
  %v3116 = vrot.slane %v3115, 1
  %v3117 = vadd.f32 %v3115, %v3116
  %v3118 = vsel %vm3094, %v3110, 0.0
  %v3119 = vrot.slane %v3118, 4
  %v3120 = vadd.f32 %v3118, %v3119
  %v3121 = vrot.slane %v3120, 2
  %v3122 = vadd.f32 %v3120, %v3121
  %v3123 = vrot.slane %v3122, 1
  %v3124 = vadd.f32 %v3122, %v3123
  %v3129 = vrot.slane %v3086, 5
  %v3130 = vrot.slane %v3090, 5
  %v3131 = vsel %vm470, %v3129, %v3130
  %v3132 = vrot.slane %v3088, 5
  %v3133 = vrot.slane %v3092, 5
  %v3134 = vsel %vm470, %v3132, %v3133
  %v3137 = vsel %vm3094, %v3131, 0.0
  %v3138 = vrot.slane %v3137, 4
  %v3139 = vadd.f32 %v3137, %v3138
  %v3140 = vrot.slane %v3139, 2
  %v3141 = vadd.f32 %v3139, %v3140
  %v3142 = vrot.slane %v3141, 1
  %v3143 = vadd.f32 %v3141, %v3142
  %v3144 = vsel %vm3094, %v3134, 0.0
  %v3145 = vrot.slane %v3144, 4
  %v3146 = vadd.f32 %v3144, %v3145
  %v3147 = vrot.slane %v3146, 2
  %v3148 = vadd.f32 %v3146, %v3147
  %v3149 = vrot.slane %v3148, 1
  %v3150 = vadd.f32 %v3148, %v3149
  %v3151 = vmul.f32 %v3090, %v3090
  %v3152 = vmul.f32 %v3092, %v3092
  %v3157 = vrot.slane %v3109, 5
  %v3158 = vrot.slane %v3151, 5
  %v3159 = vsel %vm470, %v3157, %v3158
  %v3160 = vrot.slane %v3110, 5
  %v3161 = vrot.slane %v3152, 5
  %v3162 = vsel %vm470, %v3160, %v3161
  %v3165 = vsel %vm3094, %v3159, 0.0
  %v3166 = vrot.slane %v3165, 4
  %v3167 = vadd.f32 %v3165, %v3166
  %v3168 = vrot.slane %v3167, 2
  %v3169 = vadd.f32 %v3167, %v3168
  %v3170 = vrot.slane %v3169, 1
  %v3171 = vadd.f32 %v3169, %v3170
  %v3172 = vsel %vm3094, %v3162, 0.0
  %v3173 = vrot.slane %v3172, 4
  %v3174 = vadd.f32 %v3172, %v3173
  %v3175 = vrot.slane %v3174, 2
  %v3176 = vadd.f32 %v3174, %v3175
  %v3177 = vrot.slane %v3176, 1
  %v3178 = vadd.f32 %v3176, %v3177
  %v3179 = vsel %vm464, %v3101, %v3117
  %v3180 = vsel %vm464, %v3108, %v3124
  %v3181 = vsel %vm467, %v3179, %v3143
  %v3182 = vsel %vm467, %v3180, %v3150
  %v3183 = vsel %vm470, %v3181, %v3171
  %v3184 = vsel %vm470, %v3182, %v3178
  %v3185 = vadd.f32 %v3183, %v3184
  %3186 = vrot.lane.b32.xlu0 %v3185, 64
  %v3187 = vpop.permute.xlu0 %3186
  %v3188 = vadd.f32 %v3185, %v3187
  %v3189 = vmul.f32 %v3188, 0.0625
  %v3190 = vmul.f32 %v3189, %v3189
  %v3192 = vrot.slane %v3190, 7
  %v3194 = vsub.f32 %v3189, %v3192
  %v3195 = vmax.f32 %v3194, 0.0
  %v3196 = vlaneseq
  %v3197 = vshrl.u32 %v3196, 7
  %v3198 = vsub.s32 0, %v3197
  %v3199 = vrot.slane %v3189, %v3198
  %v3200 = vsub.f32 %v3086, %v3199
  %v3201 = vsub.f32 %v3088, %v3199
  %v3202 = vadd.f32 %v3195, 1e-05
  %v3203 = vrsqrt.pop %v3202
  %v3204 = vlaneseq
  %v3205 = vshrl.u32 %v3204, 7
  %v3206 = vsub.s32 1, %v3205
  %v3207 = vrot.slane %v3203, %v3206
  %v3208 = vmul.f32 %v3200, %v3207
  %v3209 = vmul.f32 %v3201, %v3207
  %v3210 = vlaneseq
  %v3211 = vshrl.u32 %v3210, 7
  %v3212 = vsub.s32 2, %v3211
  %v3213 = vrot.slane %v3189, %v3212
  %v3214 = vsub.f32 %v3086, %v3213
  %v3215 = vsub.f32 %v3088, %v3213
  %v3216 = vsub.f32 %v3090, %v3213
  %v3217 = vsub.f32 %v3092, %v3213
  %v3218 = vlaneseq
  %v3219 = vshrl.u32 %v3218, 7
  %v3220 = vsub.s32 3, %v3219
  %v3221 = vrot.slane %v3203, %v3220
  %v3222 = vmul.f32 %v3214, %v3221
  %v3223 = vmul.f32 %v3215, %v3221
  %v3224 = vmul.f32 %v3216, %v3221
  %v3225 = vmul.f32 %v3217, %v3221
  %v3230 = vrot.slane %v3222, 1
  %v3231 = vrot.slane %v3224, 1
  %v3232 = vsel %vm395, %v3230, %v3231
  %v3233 = vrot.slane %v3223, 1
  %v3234 = vrot.slane %v3225, 1
  %v3235 = vsel %vm395, %v3233, %v3234
  %v3238 = vsel %vm3094, %v3208, %v3232
  %v3239 = vsel %vm3094, %v3209, %v3235
  %s3240 = scalar_lea.vmem %s2, 32
  %v3241 = vld [vmem:[%s3240] ss:$8 sm:$0x3]
  %s3242 = scalar_lea.vmem %s2, 33
  %v3243 = vld [vmem:[%s3242] ss:$8 sm:$0x3]
  %s3244 = scalar_lea.vmem %s2, 34
  %v3245 = vld [vmem:[%s3244] ss:$8 sm:$0x3]
  %v3247 = vlaneseq
  %v3248 = vshrl.u32 %v3247, 7
  %v3249 = vsub.s32 0, %v3248
  %v3250 = vrot.slane %v3241, %v3249
  %v3251 = vlaneseq
  %v3252 = vshrl.u32 %v3251, 7
  %v3253 = vsub.s32 1, %v3252
  %v3254 = vrot.slane %v3241, %v3253
  %v3257 = vmul.f32 %v3238, %v3250
  %v3258 = vmul.f32 %v3239, %v3254
  %v3260 = vlaneseq
  %v3261 = vshrl.u32 %v3260, 7
  %v3262 = vsub.s32 0, %v3261
  %v3263 = vrot.slane %v3243, %v3262
  %v3264 = vlaneseq
  %v3265 = vshrl.u32 %v3264, 7
  %v3266 = vsub.s32 1, %v3265
  %v3267 = vrot.slane %v3243, %v3266
  %v3270 = vadd.f32 %v3257, %v3263
  %v3271 = vadd.f32 %v3258, %v3267
  %vm3272 = vcmp.ge.f32.partialorder %v3270, 0.0
  %vm3273 = vcmp.ge.f32.partialorder %v3271, 0.0
  %v3275 = vlaneseq
  %v3276 = vshrl.u32 %v3275, 7
  %v3277 = vsub.s32 0, %v3276
  %v3278 = vrot.slane %v3245, %v3277
  %v3279 = vlaneseq
  %v3280 = vshrl.u32 %v3279, 7
  %v3281 = vsub.s32 1, %v3280
  %v3282 = vrot.slane %v3245, %v3281
  %v3285 = vmul.f32 %v3278, %v3270
  %v3286 = vmul.f32 %v3282, %v3271
  %v3287 = vsel %vm3272, %v3270, %v3285
  %v3288 = vsel %vm3273, %v3271, %v3286
  %v3289 = vld [vmem:[%s1 + $0xdd0] sm:$0xf]
  %v3290 = vld [vmem:[%s1 + $0xdd8] sm:$0xf]
  %v3291 = vpack.c.bf16 %v3287, %v3287
  %v3292 = vpack.c.bf16 %v3288, %v3288
  %v3295 = vunpack.c.l.b16 %v3289
  %v3296 = vunpack.c.l.b16 %v3290
  %v3297 = vpack.c.b16 %v3296, %v3295
  %vm3298 = vcmask 64512
  %v3300 = vsel %vm3298, %v3297, 0
  %v3303 = vsel %vm3094, %v3291, 0
  %v3306 = vsel %vm3094, %v3292, 0
  %3308 = vmatprep.subr.bf16.mxu0 %v3306
  %3309 = vmatpush1.bf16.msra.mxu0 %v3303
  %3310 = vmatprep.subr.bf16.mxu0 0
  %3311 = vmatpush1.bf16.msra.mxu0 0
  %3312 = vmatprep.subr.bf16.mxu0 0
  %3313 = vmatpush1.bf16.msra.mxu0 0
  %3314 = vmatprep.subr.bf16.mxu0 0
  %3315 = vmatpush1.bf16.msra.mxu0 0
  %3316 = vmatprep.subr.bf16.mxu0 0
  %3317 = vmatpush1.bf16.msra.mxu0 0
  %3318 = vmatprep.subr.bf16.mxu0 0
  %3319 = vmatpush1.bf16.msra.mxu0 0
  %3320 = vmatprep.subr.bf16.mxu0 0
  %3321 = vmatpush1.bf16.msra.mxu0 0
  %3322 = vmatprep.subr.bf16.mxu0 0
  %3323 = vmatpush1.bf16.msra.mxu0 0
  %3324 = vmatprep.subr.bf16.mxu0 0
  %3325 = vmatpush1.bf16.msra.mxu0 0
  %3326 = vmatprep.subr.bf16.mxu0 0
  %3327 = vmatpush1.bf16.msra.mxu0 0
  %3328 = vmatprep.subr.bf16.mxu0 0
  %3329 = vmatpush1.bf16.msra.mxu0 0
  %3330 = vmatprep.subr.bf16.mxu0 0
  %3331 = vmatpush1.bf16.msra.mxu0 0
  %3332 = vmatprep.subr.bf16.mxu0 0
  %3333 = vmatpush1.bf16.msra.mxu0 0
  %3334 = vmatprep.subr.bf16.mxu0 0
  %3335 = vmatpush1.bf16.msra.mxu0 0
  %3336 = vmatprep.subr.bf16.mxu0 0
  %3337 = vmatpush1.bf16.msra.mxu0 0
  %3338 = vmatprep.subr.bf16.mxu0 0
  %3339 = vmatpush1.bf16.msra.mxu0 0
  %3340 = vmatprep.mubr.bf16.mxu0 0
  %3341 = vmatmul.mubr.bf16.gmra.mrb[0].mxu0 %v3300
  %v3342 = vpop.f32.mrb[0].mxu0
  %v3343 = vadd.f32 0.0, %v3342
  %v3344 = vpop.f32.mrb[0].mxu0
  %v3345 = vadd.f32 0.0, %v3344
  %v3346 = vpop.f32.mrb[0].mxu0
  %v3347 = vadd.f32 0.0, %v3346
  %v3348 = vpop.f32.mrb[0].mxu0
  %v3349 = vadd.f32 0.0, %v3348
  %3350 = vdwg.mxu0
  %3351 = vst [vmem:[#allocation4] sm:$0x3f] %v3343
  %3352 = vst [vmem:[#allocation4 + $0x8] sm:$0x3f] %v3345
  %3353 = vst [vmem:[#allocation4 + $0x10] sm:$0x3f] %v3347
  %3354 = vst [vmem:[#allocation4 + $0x18] sm:$0x3f] %v3349
  %v3355 = vld [vmem:[#allocation4] sm:$0x3f]
  %v3356 = vld [vmem:[#allocation4 + $0x8] sm:$0x3f]
  %v3357 = vld [vmem:[#allocation4 + $0x10] sm:$0x3f]
  %v3358 = vld [vmem:[#allocation4 + $0x18] sm:$0x3f]
  %v3359 = vpack.c.bf16 %v3355, %v3355
  %v3360 = vpack.c.bf16 %v3356, %v3356
  %v3361 = vpack.c.bf16 %v3357, %v3357
  %v3362 = vpack.c.bf16 %v3358, %v3358
  %v3363 = vld [vmem:[#allocation4] sm:$0x7e]
  %v3364 = vld [vmem:[#allocation4 + $0x8] sm:$0x7e]
  %v3365 = vld [vmem:[#allocation4 + $0x10] sm:$0x7e]
  %v3366 = vld [vmem:[#allocation4 + $0x18] sm:$0x7e]
  %v3367 = vpack.c.bf16 %v3363, %v3363
  %v3368 = vpack.c.bf16 %v3364, %v3364
  %v3369 = vpack.c.bf16 %v3365, %v3365
  %v3370 = vpack.c.bf16 %v3366, %v3366
  %v3371 = vld [vmem:[%s1 + $0x900] sm:$0xff]
  %v3372 = vld [vmem:[%s1 + $0x908] sm:$0xff]
  %v3373 = vld [vmem:[%s1 + $0x910] sm:$0xff]
  %v3374 = vld [vmem:[%s1 + $0x918] sm:$0xff]
  %v3375 = vld [vmem:[%s1 + $0x920] sm:$0xff]
  %v3376 = vld [vmem:[%s1 + $0x928] sm:$0xff]
  %v3377 = vld [vmem:[%s1 + $0x930] sm:$0xff]
  %v3378 = vld [vmem:[%s1 + $0x938] sm:$0xff]
  %v3379 = vld [vmem:[%s1 + $0x940] sm:$0xff]
  %v3380 = vld [vmem:[%s1 + $0x948] sm:$0xff]
  %v3381 = vld [vmem:[%s1 + $0x950] sm:$0xff]
  %v3382 = vld [vmem:[%s1 + $0x958] sm:$0xff]
  %v3383 = vld [vmem:[%s1 + $0x960] sm:$0xff]
  %v3384 = vld [vmem:[%s1 + $0x968] sm:$0xff]
  %v3385 = vld [vmem:[%s1 + $0x970] sm:$0xff]
  %v3386 = vld [vmem:[%s1 + $0x978] sm:$0xff]
  %v3387 = vld [vmem:[%s1 + $0x980] sm:$0xff]
  %v3388 = vld [vmem:[%s1 + $0x988] sm:$0xff]
  %v3389 = vld [vmem:[%s1 + $0x990] sm:$0xff]
  %v3390 = vld [vmem:[%s1 + $0x998] sm:$0xff]
  %v3391 = vld [vmem:[%s1 + $0x9a0] sm:$0xff]
  %v3392 = vld [vmem:[%s1 + $0x9a8] sm:$0xff]
  %v3393 = vld [vmem:[%s1 + $0x9b0] sm:$0xff]
  %v3394 = vld [vmem:[%s1 + $0x9b8] sm:$0xff]
  %v3395 = vld [vmem:[%s1 + $0x9c0] sm:$0xff]
  %v3396 = vld [vmem:[%s1 + $0x9c8] sm:$0xff]
  %v3397 = vld [vmem:[%s1 + $0x9d0] sm:$0xff]
  %v3398 = vld [vmem:[%s1 + $0x9d8] sm:$0xff]
  %v3399 = vld [vmem:[%s1 + $0x9e0] sm:$0xff]
  %v3400 = vld [vmem:[%s1 + $0x9e8] sm:$0xff]
  %v3401 = vld [vmem:[%s1 + $0x9f0] sm:$0xff]
  %v3402 = vld [vmem:[%s1 + $0x9f8] sm:$0xff]
  %v3403 = vld [vmem:[%s1 + $0xa00] sm:$0xff]
  %v3404 = vld [vmem:[%s1 + $0xa08] sm:$0xff]
  %v3405 = vld [vmem:[%s1 + $0xa10] sm:$0xff]
  %v3406 = vld [vmem:[%s1 + $0xa18] sm:$0xff]
  %v3407 = vld [vmem:[%s1 + $0xa20] sm:$0xff]
  %v3408 = vld [vmem:[%s1 + $0xa28] sm:$0xff]
  %v3409 = vld [vmem:[%s1 + $0xa30] sm:$0xff]
  %v3410 = vld [vmem:[%s1 + $0xa38] sm:$0xff]
  %v3411 = vld [vmem:[%s1 + $0xa40] sm:$0xff]
  %v3412 = vld [vmem:[%s1 + $0xa48] sm:$0xff]
  %v3413 = vld [vmem:[%s1 + $0xa50] sm:$0xff]
  %v3414 = vld [vmem:[%s1 + $0xa58] sm:$0xff]
  %v3415 = vld [vmem:[%s1 + $0xa60] sm:$0xff]
  %v3416 = vld [vmem:[%s1 + $0xa68] sm:$0xff]
  %v3417 = vld [vmem:[%s1 + $0xa70] sm:$0xff]
  %v3418 = vld [vmem:[%s1 + $0xa78] sm:$0xff]
  %v3419 = vld [vmem:[%s1 + $0xa80] sm:$0xff]
  %v3420 = vld [vmem:[%s1 + $0xa88] sm:$0xff]
  %v3421 = vld [vmem:[%s1 + $0xa90] sm:$0xff]
  %v3422 = vld [vmem:[%s1 + $0xa98] sm:$0xff]
  %v3423 = vld [vmem:[%s1 + $0xaa0] sm:$0xff]
  %v3424 = vld [vmem:[%s1 + $0xaa8] sm:$0xff]
  %v3425 = vld [vmem:[%s1 + $0xab0] sm:$0xff]
  %v3426 = vld [vmem:[%s1 + $0xab8] sm:$0xff]
  %v3427 = vld [vmem:[%s1 + $0xac0] sm:$0xff]
  %v3428 = vld [vmem:[%s1 + $0xac8] sm:$0xff]
  %v3429 = vld [vmem:[%s1 + $0xad0] sm:$0xff]
  %v3430 = vld [vmem:[%s1 + $0xad8] sm:$0xff]
  %v3431 = vld [vmem:[%s1 + $0xae0] sm:$0xff]
  %v3432 = vld [vmem:[%s1 + $0xae8] sm:$0xff]
  %v3433 = vld [vmem:[%s1 + $0xaf0] sm:$0xff]
  %v3434 = vld [vmem:[%s1 + $0xaf8] sm:$0xff]
  %v3435 = vld [vmem:[%s1 + $0xb00] sm:$0xff]
  %v3436 = vld [vmem:[%s1 + $0xb08] sm:$0xff]
  %v3437 = vld [vmem:[%s1 + $0xb10] sm:$0xff]
  %v3438 = vld [vmem:[%s1 + $0xb18] sm:$0xff]
  %v3439 = vld [vmem:[%s1 + $0xb20] sm:$0xff]
  %v3440 = vld [vmem:[%s1 + $0xb28] sm:$0xff]
  %v3441 = vld [vmem:[%s1 + $0xb30] sm:$0xff]
  %v3442 = vld [vmem:[%s1 + $0xb38] sm:$0xff]
  %v3443 = vld [vmem:[%s1 + $0xb40] sm:$0xff]
  %v3444 = vld [vmem:[%s1 + $0xb48] sm:$0xff]
  %v3445 = vld [vmem:[%s1 + $0xb50] sm:$0xff]
  %v3446 = vld [vmem:[%s1 + $0xb58] sm:$0xff]
  %v3447 = vld [vmem:[%s1 + $0xb60] sm:$0xff]
  %v3448 = vld [vmem:[%s1 + $0xb68] sm:$0xff]
  %v3449 = vld [vmem:[%s1 + $0xb70] sm:$0xff]
  %v3450 = vld [vmem:[%s1 + $0xb78] sm:$0xff]
  %v3451 = vld [vmem:[%s1 + $0xb80] sm:$0xff]
  %v3452 = vld [vmem:[%s1 + $0xb88] sm:$0xff]
  %v3453 = vld [vmem:[%s1 + $0xb90] sm:$0xff]
  %v3454 = vld [vmem:[%s1 + $0xb98] sm:$0xff]
  %v3455 = vld [vmem:[%s1 + $0xba0] sm:$0xff]
  %v3456 = vld [vmem:[%s1 + $0xba8] sm:$0xff]
  %v3457 = vld [vmem:[%s1 + $0xbb0] sm:$0xff]
  %v3458 = vld [vmem:[%s1 + $0xbb8] sm:$0xff]
  %v3459 = vld [vmem:[%s1 + $0xbc0] sm:$0xff]
  %v3460 = vld [vmem:[%s1 + $0xbc8] sm:$0xff]
  %v3461 = vld [vmem:[%s1 + $0xbd0] sm:$0xff]
  %v3462 = vld [vmem:[%s1 + $0xbd8] sm:$0xff]
  %v3463 = vld [vmem:[%s1 + $0xbe0] sm:$0xff]
  %v3464 = vld [vmem:[%s1 + $0xbe8] sm:$0xff]
  %v3465 = vld [vmem:[%s1 + $0xbf0] sm:$0xff]
  %v3466 = vld [vmem:[%s1 + $0xbf8] sm:$0xff]
  %v3467 = vld [vmem:[%s1 + $0xc00] sm:$0xff]
  %v3468 = vld [vmem:[%s1 + $0xc08] sm:$0xff]
  %v3469 = vld [vmem:[%s1 + $0xc10] sm:$0xff]
  %v3470 = vld [vmem:[%s1 + $0xc18] sm:$0xff]
  %v3471 = vld [vmem:[%s1 + $0xc20] sm:$0xff]
  %v3472 = vld [vmem:[%s1 + $0xc28] sm:$0xff]
  %v3473 = vld [vmem:[%s1 + $0xc30] sm:$0xff]
  %v3474 = vld [vmem:[%s1 + $0xc38] sm:$0xff]
  %v3475 = vld [vmem:[%s1 + $0xc40] sm:$0xff]
  %v3476 = vld [vmem:[%s1 + $0xc48] sm:$0xff]
  %v3477 = vld [vmem:[%s1 + $0xc50] sm:$0xff]
  %v3478 = vld [vmem:[%s1 + $0xc58] sm:$0xff]
  %v3479 = vld [vmem:[%s1 + $0xc60] sm:$0xff]
  %v3480 = vld [vmem:[%s1 + $0xc68] sm:$0xff]
  %v3481 = vld [vmem:[%s1 + $0xc70] sm:$0xff]
  %v3482 = vld [vmem:[%s1 + $0xc78] sm:$0xff]
  %v3483 = vld [vmem:[%s1 + $0xc80] sm:$0xff]
  %v3484 = vld [vmem:[%s1 + $0xc88] sm:$0xff]
  %v3485 = vld [vmem:[%s1 + $0xc90] sm:$0xff]
  %v3486 = vld [vmem:[%s1 + $0xc98] sm:$0xff]
  %v3487 = vld [vmem:[%s1 + $0xca0] sm:$0xff]
  %v3488 = vld [vmem:[%s1 + $0xca8] sm:$0xff]
  %v3489 = vld [vmem:[%s1 + $0xcb0] sm:$0xff]
  %v3490 = vld [vmem:[%s1 + $0xcb8] sm:$0xff]
  %v3491 = vld [vmem:[%s1 + $0xcc0] sm:$0xff]
  %v3492 = vld [vmem:[%s1 + $0xcc8] sm:$0xff]
  %v3493 = vld [vmem:[%s1 + $0xcd0] sm:$0xff]
  %v3494 = vld [vmem:[%s1 + $0xcd8] sm:$0xff]
  %v3495 = vld [vmem:[%s1 + $0xce0] sm:$0xff]
  %v3496 = vld [vmem:[%s1 + $0xce8] sm:$0xff]
  %v3497 = vld [vmem:[%s1 + $0xcf0] sm:$0xff]
  %v3498 = vld [vmem:[%s1 + $0xcf8] sm:$0xff]
  %v3500 = vshrl.u32 %v3367, 16
  %v3502 = vshll.u32 %v3367, 16
  %v3504 = vrot.slane %v3502, 1
  %v3505 = vor.u32 %v3500, %v3504
  %v3507 = vshrl.u32 %v3368, 16
  %v3509 = vshll.u32 %v3368, 16
  %v3511 = vrot.slane %v3509, 1
  %v3512 = vor.u32 %v3507, %v3511
  %v3514 = vshrl.u32 %v3369, 16
  %v3516 = vshll.u32 %v3369, 16
  %v3518 = vrot.slane %v3516, 1
  %v3519 = vor.u32 %v3514, %v3518
  %v3521 = vshrl.u32 %v3370, 16
  %v3523 = vshll.u32 %v3370, 16
  %v3525 = vrot.slane %v3523, 1
  %v3526 = vor.u32 %v3521, %v3525
  %v3595 = vunpack.c.l.b16 %v3435
  %v3596 = vunpack.c.h.b16 %v3435
  %v3597 = vunpack.c.l.b16 %v3436
  %v3598 = vunpack.c.h.b16 %v3436
  %v3599 = vunpack.c.l.b16 %v3437
  %v3600 = vunpack.c.h.b16 %v3437
  %v3601 = vunpack.c.l.b16 %v3438
  %v3602 = vunpack.c.h.b16 %v3438
  %v3603 = vunpack.c.l.b16 %v3439
  %v3604 = vunpack.c.h.b16 %v3439
  %v3605 = vunpack.c.l.b16 %v3440
  %v3606 = vunpack.c.h.b16 %v3440
  %v3607 = vunpack.c.l.b16 %v3441
  %v3608 = vunpack.c.h.b16 %v3441
  %v3609 = vunpack.c.l.b16 %v3442
  %v3610 = vunpack.c.h.b16 %v3442
  %v3611 = vunpack.c.l.b16 %v3443
  %v3612 = vunpack.c.h.b16 %v3443
  %v3613 = vunpack.c.l.b16 %v3444
  %v3614 = vunpack.c.h.b16 %v3444
  %v3615 = vunpack.c.l.b16 %v3445
  %v3616 = vunpack.c.h.b16 %v3445
  %v3617 = vunpack.c.l.b16 %v3446
  %v3618 = vunpack.c.h.b16 %v3446
  %v3619 = vunpack.c.l.b16 %v3447
  %v3620 = vunpack.c.h.b16 %v3447
  %v3621 = vunpack.c.l.b16 %v3448
  %v3622 = vunpack.c.h.b16 %v3448
  %v3623 = vunpack.c.l.b16 %v3449
  %v3624 = vunpack.c.h.b16 %v3449
  %v3625 = vunpack.c.l.b16 %v3450
  %v3626 = vunpack.c.h.b16 %v3450
  %v3627 = vunpack.c.l.b16 %v3451
  %v3628 = vunpack.c.h.b16 %v3451
  %v3629 = vunpack.c.l.b16 %v3452
  %v3630 = vunpack.c.h.b16 %v3452
  %v3631 = vunpack.c.l.b16 %v3453
  %v3632 = vunpack.c.h.b16 %v3453
  %v3633 = vunpack.c.l.b16 %v3454
  %v3634 = vunpack.c.h.b16 %v3454
  %v3635 = vunpack.c.l.b16 %v3455
  %v3636 = vunpack.c.h.b16 %v3455
  %v3637 = vunpack.c.l.b16 %v3456
  %v3638 = vunpack.c.h.b16 %v3456
  %v3639 = vunpack.c.l.b16 %v3457
  %v3640 = vunpack.c.h.b16 %v3457
  %v3641 = vunpack.c.l.b16 %v3458
  %v3642 = vunpack.c.h.b16 %v3458
  %v3643 = vunpack.c.l.b16 %v3459
  %v3644 = vunpack.c.h.b16 %v3459
  %v3645 = vunpack.c.l.b16 %v3460
  %v3646 = vunpack.c.h.b16 %v3460
  %v3647 = vunpack.c.l.b16 %v3461
  %v3648 = vunpack.c.h.b16 %v3461
  %v3649 = vunpack.c.l.b16 %v3462
  %v3650 = vunpack.c.h.b16 %v3462
  %v3651 = vunpack.c.l.b16 %v3463
  %v3652 = vunpack.c.h.b16 %v3463
  %v3653 = vunpack.c.l.b16 %v3464
  %v3654 = vunpack.c.h.b16 %v3464
  %v3655 = vunpack.c.l.b16 %v3465
  %v3656 = vunpack.c.h.b16 %v3465
  %v3657 = vunpack.c.l.b16 %v3466
  %v3658 = vunpack.c.h.b16 %v3466
  %v3659 = vunpack.c.l.b16 %v3467
  %v3660 = vunpack.c.h.b16 %v3467
  %v3661 = vunpack.c.l.b16 %v3468
  %v3662 = vunpack.c.h.b16 %v3468
  %v3663 = vunpack.c.l.b16 %v3469
  %v3664 = vunpack.c.h.b16 %v3469
  %v3665 = vunpack.c.l.b16 %v3470
  %v3666 = vunpack.c.h.b16 %v3470
  %v3667 = vunpack.c.l.b16 %v3471
  %v3668 = vunpack.c.h.b16 %v3471
  %v3669 = vunpack.c.l.b16 %v3472
  %v3670 = vunpack.c.h.b16 %v3472
  %v3671 = vunpack.c.l.b16 %v3473
  %v3672 = vunpack.c.h.b16 %v3473
  %v3673 = vunpack.c.l.b16 %v3474
  %v3674 = vunpack.c.h.b16 %v3474
  %v3675 = vunpack.c.l.b16 %v3475
  %v3676 = vunpack.c.h.b16 %v3475
  %v3677 = vunpack.c.l.b16 %v3476
  %v3678 = vunpack.c.h.b16 %v3476
  %v3679 = vunpack.c.l.b16 %v3477
  %v3680 = vunpack.c.h.b16 %v3477
  %v3681 = vunpack.c.l.b16 %v3478
  %v3682 = vunpack.c.h.b16 %v3478
  %v3683 = vunpack.c.l.b16 %v3479
  %v3684 = vunpack.c.h.b16 %v3479
  %v3685 = vunpack.c.l.b16 %v3480
  %v3686 = vunpack.c.h.b16 %v3480
  %v3687 = vunpack.c.l.b16 %v3481
  %v3688 = vunpack.c.h.b16 %v3481
  %v3689 = vunpack.c.l.b16 %v3482
  %v3690 = vunpack.c.h.b16 %v3482
  %v3691 = vunpack.c.l.b16 %v3483
  %v3692 = vunpack.c.h.b16 %v3483
  %v3693 = vunpack.c.l.b16 %v3484
  %v3694 = vunpack.c.h.b16 %v3484
  %v3695 = vunpack.c.l.b16 %v3485
  %v3696 = vunpack.c.h.b16 %v3485
  %v3697 = vunpack.c.l.b16 %v3486
  %v3698 = vunpack.c.h.b16 %v3486
  %v3699 = vunpack.c.l.b16 %v3487
  %v3700 = vunpack.c.h.b16 %v3487
  %v3701 = vunpack.c.l.b16 %v3488
  %v3702 = vunpack.c.h.b16 %v3488
  %v3703 = vunpack.c.l.b16 %v3489
  %v3704 = vunpack.c.h.b16 %v3489
  %v3705 = vunpack.c.l.b16 %v3490
  %v3706 = vunpack.c.h.b16 %v3490
  %v3707 = vunpack.c.l.b16 %v3491
  %v3708 = vunpack.c.h.b16 %v3491
  %v3709 = vunpack.c.l.b16 %v3492
  %v3710 = vunpack.c.h.b16 %v3492
  %v3711 = vunpack.c.l.b16 %v3493
  %v3712 = vunpack.c.h.b16 %v3493
  %v3713 = vunpack.c.l.b16 %v3494
  %v3714 = vunpack.c.h.b16 %v3494
  %v3715 = vunpack.c.l.b16 %v3495
  %v3716 = vunpack.c.h.b16 %v3495
  %v3717 = vunpack.c.l.b16 %v3496
  %v3718 = vunpack.c.h.b16 %v3496
  %v3719 = vunpack.c.l.b16 %v3497
  %v3720 = vunpack.c.h.b16 %v3497
  %v3721 = vunpack.c.l.b16 %v3498
  %v3722 = vunpack.c.h.b16 %v3498
  %v3723 = vpack.c.b16 %v3597, %v3595
  %v3724 = vpack.c.b16 %v3598, %v3596
  %v3725 = vpack.c.b16 %v3601, %v3599
  %v3726 = vpack.c.b16 %v3602, %v3600
  %v3727 = vpack.c.b16 %v3605, %v3603
  %v3728 = vpack.c.b16 %v3606, %v3604
  %v3729 = vpack.c.b16 %v3609, %v3607
  %v3730 = vpack.c.b16 %v3610, %v3608
  %v3731 = vpack.c.b16 %v3613, %v3611
  %v3732 = vpack.c.b16 %v3614, %v3612
  %v3733 = vpack.c.b16 %v3617, %v3615
  %v3734 = vpack.c.b16 %v3618, %v3616
  %v3735 = vpack.c.b16 %v3621, %v3619
  %v3736 = vpack.c.b16 %v3622, %v3620
  %v3737 = vpack.c.b16 %v3625, %v3623
  %v3738 = vpack.c.b16 %v3626, %v3624
  %v3739 = vpack.c.b16 %v3629, %v3627
  %v3740 = vpack.c.b16 %v3630, %v3628
  %v3741 = vpack.c.b16 %v3633, %v3631
  %v3742 = vpack.c.b16 %v3634, %v3632
  %v3743 = vpack.c.b16 %v3637, %v3635
  %v3744 = vpack.c.b16 %v3638, %v3636
  %v3745 = vpack.c.b16 %v3641, %v3639
  %v3746 = vpack.c.b16 %v3642, %v3640
  %v3747 = vpack.c.b16 %v3645, %v3643
  %v3748 = vpack.c.b16 %v3646, %v3644
  %v3749 = vpack.c.b16 %v3649, %v3647
  %v3750 = vpack.c.b16 %v3650, %v3648
  %v3751 = vpack.c.b16 %v3653, %v3651
  %v3752 = vpack.c.b16 %v3654, %v3652
  %v3753 = vpack.c.b16 %v3657, %v3655
  %v3754 = vpack.c.b16 %v3658, %v3656
  %v3755 = vpack.c.b16 %v3661, %v3659
  %v3756 = vpack.c.b16 %v3662, %v3660
  %v3757 = vpack.c.b16 %v3665, %v3663
  %v3758 = vpack.c.b16 %v3666, %v3664
  %v3759 = vpack.c.b16 %v3669, %v3667
  %v3760 = vpack.c.b16 %v3670, %v3668
  %v3761 = vpack.c.b16 %v3673, %v3671
  %v3762 = vpack.c.b16 %v3674, %v3672
  %v3763 = vpack.c.b16 %v3677, %v3675
  %v3764 = vpack.c.b16 %v3678, %v3676
  %v3765 = vpack.c.b16 %v3681, %v3679
  %v3766 = vpack.c.b16 %v3682, %v3680
  %v3767 = vpack.c.b16 %v3685, %v3683
  %v3768 = vpack.c.b16 %v3686, %v3684
  %v3769 = vpack.c.b16 %v3689, %v3687
  %v3770 = vpack.c.b16 %v3690, %v3688
  %v3771 = vpack.c.b16 %v3693, %v3691
  %v3772 = vpack.c.b16 %v3694, %v3692
  %v3773 = vpack.c.b16 %v3697, %v3695
  %v3774 = vpack.c.b16 %v3698, %v3696
  %v3775 = vpack.c.b16 %v3701, %v3699
  %v3776 = vpack.c.b16 %v3702, %v3700
  %v3777 = vpack.c.b16 %v3705, %v3703
  %v3778 = vpack.c.b16 %v3706, %v3704
  %v3779 = vpack.c.b16 %v3709, %v3707
  %v3780 = vpack.c.b16 %v3710, %v3708
  %v3781 = vpack.c.b16 %v3713, %v3711
  %v3782 = vpack.c.b16 %v3714, %v3712
  %v3783 = vpack.c.b16 %v3717, %v3715
  %v3784 = vpack.c.b16 %v3718, %v3716
  %v3785 = vpack.c.b16 %v3721, %v3719
  %v3786 = vpack.c.b16 %v3722, %v3720
  %3851 = vmatprep.subr.bf16.mxu0 %v3724
  %3852 = vmatpush1.bf16.msra.mxu0 %v3723
  %3853 = vmatprep.subr.bf16.mxu0 %v3726
  %3854 = vmatpush1.bf16.msra.mxu0 %v3725
  %3855 = vmatprep.subr.bf16.mxu0 %v3728
  %3856 = vmatpush1.bf16.msra.mxu0 %v3727
  %3857 = vmatprep.subr.bf16.mxu0 %v3730
  %3858 = vmatpush1.bf16.msra.mxu0 %v3729
  %3859 = vmatprep.subr.bf16.mxu0 %v3732
  %3860 = vmatpush1.bf16.msra.mxu0 %v3731
  %3861 = vmatprep.subr.bf16.mxu0 %v3734
  %3862 = vmatpush1.bf16.msra.mxu0 %v3733
  %3863 = vmatprep.subr.bf16.mxu0 %v3736
  %3864 = vmatpush1.bf16.msra.mxu0 %v3735
  %3865 = vmatprep.subr.bf16.mxu0 %v3738
  %3866 = vmatpush1.bf16.msra.mxu0 %v3737
  %3867 = vmatprep.subr.bf16.mxu0 %v3740
  %3868 = vmatpush1.bf16.msra.mxu0 %v3739
  %3869 = vmatprep.subr.bf16.mxu0 %v3742
  %3870 = vmatpush1.bf16.msra.mxu0 %v3741
  %3871 = vmatprep.subr.bf16.mxu0 %v3744
  %3872 = vmatpush1.bf16.msra.mxu0 %v3743
  %3873 = vmatprep.subr.bf16.mxu0 %v3746
  %3874 = vmatpush1.bf16.msra.mxu0 %v3745
  %3875 = vmatprep.subr.bf16.mxu0 %v3748
  %3876 = vmatpush1.bf16.msra.mxu0 %v3747
  %3877 = vmatprep.subr.bf16.mxu0 %v3750
  %3878 = vmatpush1.bf16.msra.mxu0 %v3749
  %3879 = vmatprep.subr.bf16.mxu0 %v3752
  %3880 = vmatpush1.bf16.msra.mxu0 %v3751
  %3881 = vmatprep.subr.bf16.mxu0 %v3754
  %3882 = vmatpush1.bf16.msra.mxu0 %v3753
  %3883 = vmatprep.mubr.bf16.mxu0 %v3512
  %3884 = vmatmul.mubr.bf16.gmra.mrb[0].mxu0 %v3505
  %v3885 = vpop.f32.mrb[0].mxu0
  %v3886 = vadd.f32 0.0, %v3885
  %v3887 = vpop.f32.mrb[0].mxu0
  %v3888 = vadd.f32 0.0, %v3887
  %v3889 = vpop.f32.mrb[0].mxu0
  %v3890 = vpop.f32.mrb[0].mxu0
  %3891 = vdwg.mxu0
  %3892 = vmatprep.subr.bf16.mxu0 %v3756
  %3893 = vmatpush1.bf16.msra.mxu0 %v3755
  %3894 = vmatprep.subr.bf16.mxu0 %v3758
  %3895 = vmatpush1.bf16.msra.mxu0 %v3757
  %3896 = vmatprep.subr.bf16.mxu0 %v3760
  %3897 = vmatpush1.bf16.msra.mxu0 %v3759
  %3898 = vmatprep.subr.bf16.mxu0 %v3762
  %3899 = vmatpush1.bf16.msra.mxu0 %v3761
  %3900 = vmatprep.subr.bf16.mxu0 %v3764
  %3901 = vmatpush1.bf16.msra.mxu0 %v3763
  %3902 = vmatprep.subr.bf16.mxu0 %v3766
  %3903 = vmatpush1.bf16.msra.mxu0 %v3765
  %3904 = vmatprep.subr.bf16.mxu0 %v3768
  %3905 = vmatpush1.bf16.msra.mxu0 %v3767
  %3906 = vmatprep.subr.bf16.mxu0 %v3770
  %3907 = vmatpush1.bf16.msra.mxu0 %v3769
  %3908 = vmatprep.subr.bf16.mxu0 %v3772
  %3909 = vmatpush1.bf16.msra.mxu0 %v3771
  %3910 = vmatprep.subr.bf16.mxu0 %v3774
  %3911 = vmatpush1.bf16.msra.mxu0 %v3773
  %3912 = vmatprep.subr.bf16.mxu0 %v3776
  %3913 = vmatpush1.bf16.msra.mxu0 %v3775
  %3914 = vmatprep.subr.bf16.mxu0 %v3778
  %3915 = vmatpush1.bf16.msra.mxu0 %v3777
  %3916 = vmatprep.subr.bf16.mxu0 %v3780
  %3917 = vmatpush1.bf16.msra.mxu0 %v3779
  %3918 = vmatprep.subr.bf16.mxu0 %v3782
  %3919 = vmatpush1.bf16.msra.mxu0 %v3781
  %3920 = vmatprep.subr.bf16.mxu0 %v3784
  %3921 = vmatpush1.bf16.msra.mxu0 %v3783
  %3922 = vmatprep.subr.bf16.mxu0 %v3786
  %3923 = vmatpush1.bf16.msra.mxu0 %v3785
  %3924 = vmatprep.mubr.bf16.mxu0 %v3526
  %3925 = vmatmul.mubr.bf16.gmra.mrb[0].mxu0 %v3519
  %v3926 = vpop.f32.mrb[0].mxu0
  %v3927 = vadd.f32 %v3886, %v3926
  %v3928 = vpop.f32.mrb[0].mxu0
  %v3929 = vadd.f32 %v3888, %v3928
  %v3930 = vpop.f32.mrb[0].mxu0
  %v3931 = vpop.f32.mrb[0].mxu0
  %3932 = vdwg.mxu0
  %v3997 = vunpack.c.l.b16 %v3371
  %v3998 = vunpack.c.h.b16 %v3371
  %v3999 = vunpack.c.l.b16 %v3372
  %v4000 = vunpack.c.h.b16 %v3372
  %v4001 = vunpack.c.l.b16 %v3373
  %v4002 = vunpack.c.h.b16 %v3373
  %v4003 = vunpack.c.l.b16 %v3374
  %v4004 = vunpack.c.h.b16 %v3374
  %v4005 = vunpack.c.l.b16 %v3375
  %v4006 = vunpack.c.h.b16 %v3375
  %v4007 = vunpack.c.l.b16 %v3376
  %v4008 = vunpack.c.h.b16 %v3376
  %v4009 = vunpack.c.l.b16 %v3377
  %v4010 = vunpack.c.h.b16 %v3377
  %v4011 = vunpack.c.l.b16 %v3378
  %v4012 = vunpack.c.h.b16 %v3378
  %v4013 = vunpack.c.l.b16 %v3379
  %v4014 = vunpack.c.h.b16 %v3379
  %v4015 = vunpack.c.l.b16 %v3380
  %v4016 = vunpack.c.h.b16 %v3380
  %v4017 = vunpack.c.l.b16 %v3381
  %v4018 = vunpack.c.h.b16 %v3381
  %v4019 = vunpack.c.l.b16 %v3382
  %v4020 = vunpack.c.h.b16 %v3382
  %v4021 = vunpack.c.l.b16 %v3383
  %v4022 = vunpack.c.h.b16 %v3383
  %v4023 = vunpack.c.l.b16 %v3384
  %v4024 = vunpack.c.h.b16 %v3384
  %v4025 = vunpack.c.l.b16 %v3385
  %v4026 = vunpack.c.h.b16 %v3385
  %v4027 = vunpack.c.l.b16 %v3386
  %v4028 = vunpack.c.h.b16 %v3386
  %v4029 = vunpack.c.l.b16 %v3387
  %v4030 = vunpack.c.h.b16 %v3387
  %v4031 = vunpack.c.l.b16 %v3388
  %v4032 = vunpack.c.h.b16 %v3388
  %v4033 = vunpack.c.l.b16 %v3389
  %v4034 = vunpack.c.h.b16 %v3389
  %v4035 = vunpack.c.l.b16 %v3390
  %v4036 = vunpack.c.h.b16 %v3390
  %v4037 = vunpack.c.l.b16 %v3391
  %v4038 = vunpack.c.h.b16 %v3391
  %v4039 = vunpack.c.l.b16 %v3392
  %v4040 = vunpack.c.h.b16 %v3392
  %v4041 = vunpack.c.l.b16 %v3393
  %v4042 = vunpack.c.h.b16 %v3393
  %v4043 = vunpack.c.l.b16 %v3394
  %v4044 = vunpack.c.h.b16 %v3394
  %v4045 = vunpack.c.l.b16 %v3395
  %v4046 = vunpack.c.h.b16 %v3395
  %v4047 = vunpack.c.l.b16 %v3396
  %v4048 = vunpack.c.h.b16 %v3396
  %v4049 = vunpack.c.l.b16 %v3397
  %v4050 = vunpack.c.h.b16 %v3397
  %v4051 = vunpack.c.l.b16 %v3398
  %v4052 = vunpack.c.h.b16 %v3398
  %v4053 = vunpack.c.l.b16 %v3399
  %v4054 = vunpack.c.h.b16 %v3399
  %v4055 = vunpack.c.l.b16 %v3400
  %v4056 = vunpack.c.h.b16 %v3400
  %v4057 = vunpack.c.l.b16 %v3401
  %v4058 = vunpack.c.h.b16 %v3401
  %v4059 = vunpack.c.l.b16 %v3402
  %v4060 = vunpack.c.h.b16 %v3402
  %v4061 = vunpack.c.l.b16 %v3403
  %v4062 = vunpack.c.h.b16 %v3403
  %v4063 = vunpack.c.l.b16 %v3404
  %v4064 = vunpack.c.h.b16 %v3404
  %v4065 = vunpack.c.l.b16 %v3405
  %v4066 = vunpack.c.h.b16 %v3405
  %v4067 = vunpack.c.l.b16 %v3406
  %v4068 = vunpack.c.h.b16 %v3406
  %v4069 = vunpack.c.l.b16 %v3407
  %v4070 = vunpack.c.h.b16 %v3407
  %v4071 = vunpack.c.l.b16 %v3408
  %v4072 = vunpack.c.h.b16 %v3408
  %v4073 = vunpack.c.l.b16 %v3409
  %v4074 = vunpack.c.h.b16 %v3409
  %v4075 = vunpack.c.l.b16 %v3410
  %v4076 = vunpack.c.h.b16 %v3410
  %v4077 = vunpack.c.l.b16 %v3411
  %v4078 = vunpack.c.h.b16 %v3411
  %v4079 = vunpack.c.l.b16 %v3412
  %v4080 = vunpack.c.h.b16 %v3412
  %v4081 = vunpack.c.l.b16 %v3413
  %v4082 = vunpack.c.h.b16 %v3413
  %v4083 = vunpack.c.l.b16 %v3414
  %v4084 = vunpack.c.h.b16 %v3414
  %v4085 = vunpack.c.l.b16 %v3415
  %v4086 = vunpack.c.h.b16 %v3415
  %v4087 = vunpack.c.l.b16 %v3416
  %v4088 = vunpack.c.h.b16 %v3416
  %v4089 = vunpack.c.l.b16 %v3417
  %v4090 = vunpack.c.h.b16 %v3417
  %v4091 = vunpack.c.l.b16 %v3418
  %v4092 = vunpack.c.h.b16 %v3418
  %v4093 = vunpack.c.l.b16 %v3419
  %v4094 = vunpack.c.h.b16 %v3419
  %v4095 = vunpack.c.l.b16 %v3420
  %v4096 = vunpack.c.h.b16 %v3420
  %v4097 = vunpack.c.l.b16 %v3421
  %v4098 = vunpack.c.h.b16 %v3421
  %v4099 = vunpack.c.l.b16 %v3422
  %v4100 = vunpack.c.h.b16 %v3422
  %v4101 = vunpack.c.l.b16 %v3423
  %v4102 = vunpack.c.h.b16 %v3423
  %v4103 = vunpack.c.l.b16 %v3424
  %v4104 = vunpack.c.h.b16 %v3424
  %v4105 = vunpack.c.l.b16 %v3425
  %v4106 = vunpack.c.h.b16 %v3425
  %v4107 = vunpack.c.l.b16 %v3426
  %v4108 = vunpack.c.h.b16 %v3426
  %v4109 = vunpack.c.l.b16 %v3427
  %v4110 = vunpack.c.h.b16 %v3427
  %v4111 = vunpack.c.l.b16 %v3428
  %v4112 = vunpack.c.h.b16 %v3428
  %v4113 = vunpack.c.l.b16 %v3429
  %v4114 = vunpack.c.h.b16 %v3429
  %v4115 = vunpack.c.l.b16 %v3430
  %v4116 = vunpack.c.h.b16 %v3430
  %v4117 = vunpack.c.l.b16 %v3431
  %v4118 = vunpack.c.h.b16 %v3431
  %v4119 = vunpack.c.l.b16 %v3432
  %v4120 = vunpack.c.h.b16 %v3432
  %v4121 = vunpack.c.l.b16 %v3433
  %v4122 = vunpack.c.h.b16 %v3433
  %v4123 = vunpack.c.l.b16 %v3434
  %v4124 = vunpack.c.h.b16 %v3434
  %v4125 = vpack.c.b16 %v3999, %v3997
  %v4126 = vpack.c.b16 %v4000, %v3998
  %v4127 = vpack.c.b16 %v4003, %v4001
  %v4128 = vpack.c.b16 %v4004, %v4002
  %v4129 = vpack.c.b16 %v4007, %v4005
  %v4130 = vpack.c.b16 %v4008, %v4006
  %v4131 = vpack.c.b16 %v4011, %v4009
  %v4132 = vpack.c.b16 %v4012, %v4010
  %v4133 = vpack.c.b16 %v4015, %v4013
  %v4134 = vpack.c.b16 %v4016, %v4014
  %v4135 = vpack.c.b16 %v4019, %v4017
  %v4136 = vpack.c.b16 %v4020, %v4018
  %v4137 = vpack.c.b16 %v4023, %v4021
  %v4138 = vpack.c.b16 %v4024, %v4022
  %v4139 = vpack.c.b16 %v4027, %v4025
  %v4140 = vpack.c.b16 %v4028, %v4026
  %v4141 = vpack.c.b16 %v4031, %v4029
  %v4142 = vpack.c.b16 %v4032, %v4030
  %v4143 = vpack.c.b16 %v4035, %v4033
  %v4144 = vpack.c.b16 %v4036, %v4034
  %v4145 = vpack.c.b16 %v4039, %v4037
  %v4146 = vpack.c.b16 %v4040, %v4038
  %v4147 = vpack.c.b16 %v4043, %v4041
  %v4148 = vpack.c.b16 %v4044, %v4042
  %v4149 = vpack.c.b16 %v4047, %v4045
  %v4150 = vpack.c.b16 %v4048, %v4046
  %v4151 = vpack.c.b16 %v4051, %v4049
  %v4152 = vpack.c.b16 %v4052, %v4050
  %v4153 = vpack.c.b16 %v4055, %v4053
  %v4154 = vpack.c.b16 %v4056, %v4054
  %v4155 = vpack.c.b16 %v4059, %v4057
  %v4156 = vpack.c.b16 %v4060, %v4058
  %v4157 = vpack.c.b16 %v4063, %v4061
  %v4158 = vpack.c.b16 %v4064, %v4062
  %v4159 = vpack.c.b16 %v4067, %v4065
  %v4160 = vpack.c.b16 %v4068, %v4066
  %v4161 = vpack.c.b16 %v4071, %v4069
  %v4162 = vpack.c.b16 %v4072, %v4070
  %v4163 = vpack.c.b16 %v4075, %v4073
  %v4164 = vpack.c.b16 %v4076, %v4074
  %v4165 = vpack.c.b16 %v4079, %v4077
  %v4166 = vpack.c.b16 %v4080, %v4078
  %v4167 = vpack.c.b16 %v4083, %v4081
  %v4168 = vpack.c.b16 %v4084, %v4082
  %v4169 = vpack.c.b16 %v4087, %v4085
  %v4170 = vpack.c.b16 %v4088, %v4086
  %v4171 = vpack.c.b16 %v4091, %v4089
  %v4172 = vpack.c.b16 %v4092, %v4090
  %v4173 = vpack.c.b16 %v4095, %v4093
  %v4174 = vpack.c.b16 %v4096, %v4094
  %v4175 = vpack.c.b16 %v4099, %v4097
  %v4176 = vpack.c.b16 %v4100, %v4098
  %v4177 = vpack.c.b16 %v4103, %v4101
  %v4178 = vpack.c.b16 %v4104, %v4102
  %v4179 = vpack.c.b16 %v4107, %v4105
  %v4180 = vpack.c.b16 %v4108, %v4106
  %v4181 = vpack.c.b16 %v4111, %v4109
  %v4182 = vpack.c.b16 %v4112, %v4110
  %v4183 = vpack.c.b16 %v4115, %v4113
  %v4184 = vpack.c.b16 %v4116, %v4114
  %v4185 = vpack.c.b16 %v4119, %v4117
  %v4186 = vpack.c.b16 %v4120, %v4118
  %v4187 = vpack.c.b16 %v4123, %v4121
  %v4188 = vpack.c.b16 %v4124, %v4122
  %4253 = vmatprep.subr.bf16.mxu0 %v4126
  %4254 = vmatpush1.bf16.msra.mxu0 %v4125
  %4255 = vmatprep.subr.bf16.mxu0 %v4128
  %4256 = vmatpush1.bf16.msra.mxu0 %v4127
  %4257 = vmatprep.subr.bf16.mxu0 %v4130
  %4258 = vmatpush1.bf16.msra.mxu0 %v4129
  %4259 = vmatprep.subr.bf16.mxu0 %v4132
  %4260 = vmatpush1.bf16.msra.mxu0 %v4131
  %4261 = vmatprep.subr.bf16.mxu0 %v4134
  %4262 = vmatpush1.bf16.msra.mxu0 %v4133
  %4263 = vmatprep.subr.bf16.mxu0 %v4136
  %4264 = vmatpush1.bf16.msra.mxu0 %v4135
  %4265 = vmatprep.subr.bf16.mxu0 %v4138
  %4266 = vmatpush1.bf16.msra.mxu0 %v4137
  %4267 = vmatprep.subr.bf16.mxu0 %v4140
  %4268 = vmatpush1.bf16.msra.mxu0 %v4139
  %4269 = vmatprep.subr.bf16.mxu0 %v4142
  %4270 = vmatpush1.bf16.msra.mxu0 %v4141
  %4271 = vmatprep.subr.bf16.mxu0 %v4144
  %4272 = vmatpush1.bf16.msra.mxu0 %v4143
  %4273 = vmatprep.subr.bf16.mxu0 %v4146
  %4274 = vmatpush1.bf16.msra.mxu0 %v4145
  %4275 = vmatprep.subr.bf16.mxu0 %v4148
  %4276 = vmatpush1.bf16.msra.mxu0 %v4147
  %4277 = vmatprep.subr.bf16.mxu0 %v4150
  %4278 = vmatpush1.bf16.msra.mxu0 %v4149
  %4279 = vmatprep.subr.bf16.mxu0 %v4152
  %4280 = vmatpush1.bf16.msra.mxu0 %v4151
  %4281 = vmatprep.subr.bf16.mxu0 %v4154
  %4282 = vmatpush1.bf16.msra.mxu0 %v4153
  %4283 = vmatprep.subr.bf16.mxu0 %v4156
  %4284 = vmatpush1.bf16.msra.mxu0 %v4155
  %4285 = vmatprep.mubr.bf16.mxu0 %v3360
  %4286 = vmatmul.mubr.bf16.gmra.mrb[0].mxu0 %v3359
  %v4287 = vpop.f32.mrb[0].mxu0
  %v4288 = vadd.f32 %v3927, %v4287
  %v4289 = vpop.f32.mrb[0].mxu0
  %v4290 = vadd.f32 %v3929, %v4289
  %v4291 = vpop.f32.mrb[0].mxu0
  %v4292 = vpop.f32.mrb[0].mxu0
  %4293 = vdwg.mxu0
  %4294 = vmatprep.subr.bf16.mxu0 %v4158
  %4295 = vmatpush1.bf16.msra.mxu0 %v4157
  %4296 = vmatprep.subr.bf16.mxu0 %v4160
  %4297 = vmatpush1.bf16.msra.mxu0 %v4159
  %4298 = vmatprep.subr.bf16.mxu0 %v4162
  %4299 = vmatpush1.bf16.msra.mxu0 %v4161
  %4300 = vmatprep.subr.bf16.mxu0 %v4164
  %4301 = vmatpush1.bf16.msra.mxu0 %v4163
  %4302 = vmatprep.subr.bf16.mxu0 %v4166
  %4303 = vmatpush1.bf16.msra.mxu0 %v4165
  %4304 = vmatprep.subr.bf16.mxu0 %v4168
  %4305 = vmatpush1.bf16.msra.mxu0 %v4167
  %4306 = vmatprep.subr.bf16.mxu0 %v4170
  %4307 = vmatpush1.bf16.msra.mxu0 %v4169
  %4308 = vmatprep.subr.bf16.mxu0 %v4172
  %4309 = vmatpush1.bf16.msra.mxu0 %v4171
  %4310 = vmatprep.subr.bf16.mxu0 %v4174
  %4311 = vmatpush1.bf16.msra.mxu0 %v4173
  %4312 = vmatprep.subr.bf16.mxu0 %v4176
  %4313 = vmatpush1.bf16.msra.mxu0 %v4175
  %4314 = vmatprep.subr.bf16.mxu0 %v4178
  %4315 = vmatpush1.bf16.msra.mxu0 %v4177
  %4316 = vmatprep.subr.bf16.mxu0 %v4180
  %4317 = vmatpush1.bf16.msra.mxu0 %v4179
  %4318 = vmatprep.subr.bf16.mxu0 %v4182
  %4319 = vmatpush1.bf16.msra.mxu0 %v4181
  %4320 = vmatprep.subr.bf16.mxu0 %v4184
  %4321 = vmatpush1.bf16.msra.mxu0 %v4183
  %4322 = vmatprep.subr.bf16.mxu0 %v4186
  %4323 = vmatpush1.bf16.msra.mxu0 %v4185
  %4324 = vmatprep.subr.bf16.mxu0 %v4188
  %4325 = vmatpush1.bf16.msra.mxu0 %v4187
  %4326 = vmatprep.mubr.bf16.mxu0 %v3362
  %4327 = vmatmul.mubr.bf16.gmra.mrb[0].mxu0 %v3361
  %v4328 = vpop.f32.mrb[0].mxu0
  %v4329 = vadd.f32 %v4288, %v4328
  %v4330 = vpop.f32.mrb[0].mxu0
  %v4331 = vadd.f32 %v4290, %v4330
  %v4332 = vpop.f32.mrb[0].mxu0
  %v4333 = vpop.f32.mrb[0].mxu0
  %4334 = vdwg.mxu0
  %v4335 = vsel %vm467, %v4329, 0.0
  %v4336 = vrot.slane %v4335, 4
  %v4337 = vadd.f32 %v4335, %v4336
  %v4338 = vrot.slane %v4337, 2
  %v4339 = vadd.f32 %v4337, %v4338
  %v4340 = vrot.slane %v4339, 1
  %v4341 = vadd.f32 %v4339, %v4340
  %v4342 = vsel %vm467, %v4331, 0.0
  %v4343 = vrot.slane %v4342, 4
  %v4344 = vadd.f32 %v4342, %v4343
  %v4345 = vrot.slane %v4344, 2
  %v4346 = vadd.f32 %v4344, %v4345
  %v4347 = vrot.slane %v4346, 1
  %v4348 = vadd.f32 %v4346, %v4347
  %v4349 = vmul.f32 %v4329, %v4329
  %v4350 = vmul.f32 %v4331, %v4331
  %v4351 = vsel %vm467, %v4349, 0.0
  %v4352 = vrot.slane %v4351, 4
  %v4353 = vadd.f32 %v4351, %v4352
  %v4354 = vrot.slane %v4353, 2
  %v4355 = vadd.f32 %v4353, %v4354
  %v4356 = vrot.slane %v4355, 1
  %v4357 = vadd.f32 %v4355, %v4356
  %v4358 = vsel %vm467, %v4350, 0.0
  %v4359 = vrot.slane %v4358, 4
  %v4360 = vadd.f32 %v4358, %v4359
  %v4361 = vrot.slane %v4360, 2
  %v4362 = vadd.f32 %v4360, %v4361
  %v4363 = vrot.slane %v4362, 1
  %v4364 = vadd.f32 %v4362, %v4363
  %v4367 = vrot.slane %v4329, 3
  %v4368 = vrot.slane %v4331, 3
  %v4371 = vsel %vm467, %v4367, 0.0
  %v4372 = vrot.slane %v4371, 4
  %v4373 = vadd.f32 %v4371, %v4372
  %v4374 = vrot.slane %v4373, 2
  %v4375 = vadd.f32 %v4373, %v4374
  %v4376 = vrot.slane %v4375, 1
  %v4377 = vadd.f32 %v4375, %v4376
  %v4378 = vsel %vm467, %v4368, 0.0
  %v4379 = vrot.slane %v4378, 4
  %v4380 = vadd.f32 %v4378, %v4379
  %v4381 = vrot.slane %v4380, 2
  %v4382 = vadd.f32 %v4380, %v4381
  %v4383 = vrot.slane %v4382, 1
  %v4384 = vadd.f32 %v4382, %v4383
  %v4387 = vrot.slane %v4349, 3
  %v4388 = vrot.slane %v4350, 3
  %v4391 = vsel %vm467, %v4387, 0.0
  %v4392 = vrot.slane %v4391, 4
  %v4393 = vadd.f32 %v4391, %v4392
  %v4394 = vrot.slane %v4393, 2
  %v4395 = vadd.f32 %v4393, %v4394
  %v4396 = vrot.slane %v4395, 1
  %v4397 = vadd.f32 %v4395, %v4396
  %v4398 = vsel %vm467, %v4388, 0.0
  %v4399 = vrot.slane %v4398, 4
  %v4400 = vadd.f32 %v4398, %v4399
  %v4401 = vrot.slane %v4400, 2
  %v4402 = vadd.f32 %v4400, %v4401
  %v4403 = vrot.slane %v4402, 1
  %v4404 = vadd.f32 %v4402, %v4403
  %v4405 = vsel %vm464, %v4341, %v4357
  %v4406 = vsel %vm464, %v4348, %v4364
  %v4407 = vsel %vm467, %v4405, %v4377
  %v4408 = vsel %vm467, %v4406, %v4384
  %v4409 = vsel %vm470, %v4407, %v4397
  %v4410 = vsel %vm470, %v4408, %v4404
  %v4411 = vadd.f32 %v4409, %v4410
  %v4412 = vmul.f32 %v4411, 0.25
  %v4413 = vmul.f32 %v4412, %v4412
  %v4415 = vrot.slane %v4413, 7
  %v4417 = vsub.f32 %v4412, %v4415
  %v4418 = vmax.f32 %v4417, 0.0
  %v4419 = vlaneseq
  %v4420 = vshrl.u32 %v4419, 7
  %v4421 = vsub.s32 0, %v4420
  %v4422 = vrot.slane %v4412, %v4421
  %v4423 = vsub.f32 %v4329, %v4422
  %v4424 = vsub.f32 %v4331, %v4422
  %v4425 = vadd.f32 %v4418, 1e-05
  %v4426 = vrsqrt.pop %v4425
  %v4427 = vlaneseq
  %v4428 = vshrl.u32 %v4427, 7
  %v4429 = vsub.s32 1, %v4428
  %v4430 = vrot.slane %v4426, %v4429
  %v4431 = vmul.f32 %v4423, %v4430
  %v4432 = vmul.f32 %v4424, %v4430
  %v4433 = vlaneseq
  %v4434 = vshrl.u32 %v4433, 7
  %v4435 = vsub.s32 2, %v4434
  %v4436 = vrot.slane %v4412, %v4435
  %v4437 = vsub.f32 %v4329, %v4436
  %v4438 = vsub.f32 %v4331, %v4436
  %v4439 = vlaneseq
  %v4440 = vshrl.u32 %v4439, 7
  %v4441 = vsub.s32 3, %v4440
  %v4442 = vrot.slane %v4426, %v4441
  %v4443 = vmul.f32 %v4437, %v4442
  %v4444 = vmul.f32 %v4438, %v4442
  %v4447 = vrot.slane %v4443, 1
  %v4448 = vrot.slane %v4444, 1
  %v4451 = vsel %vm467, %v4431, %v4447
  %v4452 = vsel %vm467, %v4432, %v4448
  %s4453 = scalar_lea.vmem %s2, 48
  %v4454 = vld [vmem:[%s4453] ss:$8 sm:$0x3]
  %s4455 = scalar_lea.vmem %s2, 49
  %v4456 = vld [vmem:[%s4455] ss:$8 sm:$0x3]
  %s4457 = scalar_lea.vmem %s2, 50
  %v4458 = vld [vmem:[%s4457] ss:$8 sm:$0x3]
  %v4460 = vlaneseq
  %v4461 = vshrl.u32 %v4460, 7
  %v4462 = vsub.s32 0, %v4461
  %v4463 = vrot.slane %v4454, %v4462
  %v4464 = vlaneseq
  %v4465 = vshrl.u32 %v4464, 7
  %v4466 = vsub.s32 1, %v4465
  %v4467 = vrot.slane %v4454, %v4466
  %v4470 = vmul.f32 %v4451, %v4463
  %v4471 = vmul.f32 %v4452, %v4467
  %v4473 = vlaneseq
  %v4474 = vshrl.u32 %v4473, 7
  %v4475 = vsub.s32 0, %v4474
  %v4476 = vrot.slane %v4456, %v4475
  %v4477 = vlaneseq
  %v4478 = vshrl.u32 %v4477, 7
  %v4479 = vsub.s32 1, %v4478
  %v4480 = vrot.slane %v4456, %v4479
  %v4483 = vadd.f32 %v4470, %v4476
  %v4484 = vadd.f32 %v4471, %v4480
  %vm4485 = vcmp.ge.f32.partialorder %v4483, 0.0
  %vm4486 = vcmp.ge.f32.partialorder %v4484, 0.0
  %v4488 = vlaneseq
  %v4489 = vshrl.u32 %v4488, 7
  %v4490 = vsub.s32 0, %v4489
  %v4491 = vrot.slane %v4458, %v4490
  %v4492 = vlaneseq
  %v4493 = vshrl.u32 %v4492, 7
  %v4494 = vsub.s32 1, %v4493
  %v4495 = vrot.slane %v4458, %v4494
  %v4498 = vmul.f32 %v4491, %v4483
  %v4499 = vmul.f32 %v4495, %v4484
  %v4500 = vsel %vm4485, %v4483, %v4498
  %v4501 = vsel %vm4486, %v4484, %v4499
  %v4502 = vsel %vm467, %v4500, -inf
  %v4503 = vrot.slane %v4502, 4
  %v4504 = vmax.f32 %v4502, %v4503
  %v4505 = vrot.slane %v4504, 2
  %v4506 = vmax.f32 %v4504, %v4505
  %v4507 = vrot.slane %v4506, 1
  %v4508 = vmax.f32 %v4506, %v4507
  %v4509 = vsel %vm467, %v4501, -inf
  %v4510 = vrot.slane %v4509, 4
  %v4511 = vmax.f32 %v4509, %v4510
  %v4512 = vrot.slane %v4511, 2
  %v4513 = vmax.f32 %v4511, %v4512
  %v4514 = vrot.slane %v4513, 1
  %v4515 = vmax.f32 %v4513, %v4514
  %v4516 = vmax.f32 %v4508, %v4515
  %vm4517 = vcmask 1043458
  %v4518 = vsel %vm4517, %v4500, -inf
  %v4519 = vrot.slane %v4518, 4
  %v4520 = vmax.f32 %v4518, %v4519
  %v4521 = vrot.slane %v4520, 2
  %v4522 = vmax.f32 %v4520, %v4521
  %v4523 = vrot.slane %v4522, 1
  %v4524 = vmax.f32 %v4522, %v4523
  %v4525 = vsel %vm4517, %v4501, -inf
  %v4526 = vrot.slane %v4525, 4
  %v4527 = vmax.f32 %v4525, %v4526
  %v4528 = vrot.slane %v4527, 2
  %v4529 = vmax.f32 %v4527, %v4528
  %v4530 = vrot.slane %v4529, 1
  %v4531 = vmax.f32 %v4529, %v4530
  %v4532 = vmax.f32 %v4524, %v4531
  %v4533 = vsel %vm464, %v4516, %v4532
  %v4534 = vld [vmem:[%s1 + $0xd00] sm:$0xf]
  %v4535 = vld [vmem:[%s1 + $0xd08] sm:$0xf]
  %v4536 = vld [vmem:[%s1 + $0xd10] sm:$0xf]
  %v4537 = vld [vmem:[%s1 + $0xd18] sm:$0xf]
  %v4538 = vld [vmem:[%s1 + $0xd20] sm:$0xf]
  %v4539 = vld [vmem:[%s1 + $0xd28] sm:$0xf]
  %v4540 = vld [vmem:[%s1 + $0xd30] sm:$0xf]
  %v4541 = vld [vmem:[%s1 + $0xd38] sm:$0xf]
  %v4542 = vld [vmem:[%s1 + $0xd40] sm:$0xf]
  %v4543 = vld [vmem:[%s1 + $0xd48] sm:$0xf]
  %v4544 = vld [vmem:[%s1 + $0xd50] sm:$0xf]
  %v4545 = vld [vmem:[%s1 + $0xd58] sm:$0xf]
  %v4546 = vld [vmem:[%s1 + $0xd60] sm:$0xf]
  %v4547 = vld [vmem:[%s1 + $0xd68] sm:$0xf]
  %v4548 = vld [vmem:[%s1 + $0xd70] sm:$0xf]
  %v4549 = vld [vmem:[%s1 + $0xd78] sm:$0xf]
  %v4550 = vld [vmem:[%s2 + $0x40] ss:$0 sm:$0xff]
  %v4551 = vld [vmem:[%s2 + $0x41] ss:$0 sm:$0xff]
  %v4552 = vld [vmem:[%s2 + $0x42] ss:$0 sm:$0xff]
  %v4553 = vld [vmem:[%s2 + $0x43] ss:$0 sm:$0xff]
  %v4554 = vpack.c.bf16 %v4533, %v4533
  %v4571 = vunpack.c.l.b16 %v4534
  %v4572 = vunpack.c.l.b16 %v4535
  %v4573 = vunpack.c.l.b16 %v4536
  %v4574 = vunpack.c.l.b16 %v4537
  %v4575 = vunpack.c.l.b16 %v4538
  %v4576 = vunpack.c.l.b16 %v4539
  %v4577 = vunpack.c.l.b16 %v4540
  %v4578 = vunpack.c.l.b16 %v4541
  %v4579 = vunpack.c.l.b16 %v4542
  %v4580 = vunpack.c.l.b16 %v4543
  %v4581 = vunpack.c.l.b16 %v4544
  %v4582 = vunpack.c.l.b16 %v4545
  %v4583 = vunpack.c.l.b16 %v4546
  %v4584 = vunpack.c.l.b16 %v4547
  %v4585 = vunpack.c.l.b16 %v4548
  %v4586 = vunpack.c.l.b16 %v4549
  %v4587 = vpack.c.b16 %v4572, %v4571
  %v4588 = vpack.c.b16 %v4574, %v4573
  %v4589 = vpack.c.b16 %v4576, %v4575
  %v4590 = vpack.c.b16 %v4578, %v4577
  %v4591 = vpack.c.b16 %v4580, %v4579
  %v4592 = vpack.c.b16 %v4582, %v4581
  %v4593 = vpack.c.b16 %v4584, %v4583
  %v4594 = vpack.c.b16 %v4586, %v4585
  %4603 = vmatprep.subr.bf16.mxu0 0
  %4604 = vmatpush1.bf16.msra.mxu0 %v4587
  %4605 = vmatprep.subr.bf16.mxu0 0
  %4606 = vmatpush1.bf16.msra.mxu0 %v4588
  %4607 = vmatprep.subr.bf16.mxu0 0
  %4608 = vmatpush1.bf16.msra.mxu0 %v4589
  %4609 = vmatprep.subr.bf16.mxu0 0
  %4610 = vmatpush1.bf16.msra.mxu0 %v4590
  %4611 = vmatprep.subr.bf16.mxu0 0
  %4612 = vmatpush1.bf16.msra.mxu0 %v4591
  %4613 = vmatprep.subr.bf16.mxu0 0
  %4614 = vmatpush1.bf16.msra.mxu0 %v4592
  %4615 = vmatprep.subr.bf16.mxu0 0
  %4616 = vmatpush1.bf16.msra.mxu0 %v4593
  %4617 = vmatprep.subr.bf16.mxu0 0
  %4618 = vmatpush1.bf16.msra.mxu0 %v4594
  %4619 = vmatprep.subr.bf16.mxu0 0
  %4620 = vmatpush1.bf16.msra.mxu0 0
  %4621 = vmatprep.subr.bf16.mxu0 0
  %4622 = vmatpush1.bf16.msra.mxu0 0
  %4623 = vmatprep.subr.bf16.mxu0 0
  %4624 = vmatpush1.bf16.msra.mxu0 0
  %4625 = vmatprep.subr.bf16.mxu0 0
  %4626 = vmatpush1.bf16.msra.mxu0 0
  %4627 = vmatprep.subr.bf16.mxu0 0
  %4628 = vmatpush1.bf16.msra.mxu0 0
  %4629 = vmatprep.subr.bf16.mxu0 0
  %4630 = vmatpush1.bf16.msra.mxu0 0
  %4631 = vmatprep.subr.bf16.mxu0 0
  %4632 = vmatpush1.bf16.msra.mxu0 0
  %4633 = vmatprep.subr.bf16.mxu0 0
  %4634 = vmatpush1.bf16.msra.mxu0 0
  %4635 = vmatprep.mubr.bf16.mxu0 0
  %4636 = vmatmul.mubr.bf16.gmra.mrb[0].mxu0 %v4554
  %v4637 = vpop.f32.mrb[0].mxu0
  %v4638 = vadd.f32 %v4550, %v4637
  %v4639 = vpop.f32.mrb[0].mxu0
  %v4640 = vpop.f32.mrb[0].mxu0
  %v4641 = vpop.f32.mrb[0].mxu0
  %4642 = vdwg.mxu0
  %vm4643 = vcmp.ge.f32.partialorder %v4638, 0.0
  %v4644 = vmul.f32 %v4551, %v4638
  %v4645 = vsel %vm4643, %v4638, %v4644
  %v4646 = vmul.f32 %v4645, %v4552
  %vm4647 = vcmask 517120
  %v4648 = vsel %vm4647, %v4646, 0.0
  %4649 = vadd.xlane.f32.xlu0 %v4648
  %v4650 = vpop.xlane.xlu0 %4649
  %v4651 = vadd.f32 %v4650, %v4553
  %4653 = vrot.lane.b32.xlu0 %v4651, 1
  %v4654 = vpop.permute.xlu0 %4653
  %v4656 = vmul.f32 %v4553, %v4654
  %v4657 = vsub.f32 0.0, %v4656
  %v4658 = vmul.f32 %v4657, 1.442695
  %v4659 = vpow.pop %v4658
  %v4660 = vadd.f32 %v4659, 1.0
  %v4661 = vrcp.pop %v4660
  %v4662 = vmul.f32 1.0, %v4661
  %4664 = vrot.lane.b32.xlu0 %v4662, 127
  %v4665 = vpop.permute.xlu0 %4664
  %vm4667 = vcmask 1024
  %4668 = vst.msk [vmem:[%s3] sm:$0x3] %vm4667, %v4665
  // Predicated region
  $region14: #{_lambda_.1} parent=0 // pred_check
    _
  $region15: #{_lambda_.1} parent=0 // pred_check_branch
    %4670 = sbr.rel (0) target = $region17
  $region16: #{_lambda_.1} parent=0 // pred_region
    _
  $region17: #{_lambda_.1} parent=0 // pred_fallthru
    _
  // Predicated region
  $region18: #{_lambda_.1} parent=0 // pred_check
    _
  $region19: #{_lambda_.1} parent=0 // pred_check_branch
    %4672 = sbr.rel (0) target = $region21
  $region20: #{_lambda_.1} parent=0 // pred_region
    _
  $region21: #{_lambda_.1} parent=0 // pred_fallthru
    _

</llo_original>
